<compile_context>
chip_gen: v7x
topology: tpu7x:2x2x1
jax: 0.10.0
libtpu: 0.0.40
codegen_flags: <defaults>
</compile_context>

<pallas_src>
import math
import jax
import jax.numpy as jnp
from jax.experimental import pallas as pl
from jax.experimental.pallas import tpu as pltpu

# ---- problem sizes (small, consistent with the module) ----
BATCH   = 2
SEQ     = 8
D_MODEL = 32
HEADS   = 4
D_SPLIT = D_MODEL // HEADS
D_FF    = 64
BS      = BATCH * SEQ            # fused row count (B*S)
EPS     = 1e-6
NEG_INF = -1e9
SLAB_LANES = 64                  # lane width of the packed parameter slabs


# ---------------- in-kernel helpers (pure jnp, traced inside the kernel) ----------------
def _norm(x, alpha, bias):
    # matches: alpha * (x - x.mean(-1)) / (x.std(-1, unbiased=True) + eps) + bias
    mean = jnp.mean(x, axis=-1, keepdims=True)
    var = jnp.sum((x - mean) ** 2, axis=-1, keepdims=True) / (x.shape[-1] - 1)
    inv = pl.reciprocal(jnp.sqrt(var) + EPS, approx=False)     # EUP, exact
    return alpha * (x - mean) * inv + bias


def _softmax_lastdim(s):
    m = jnp.max(s, axis=-1, keepdims=True)
    e = jnp.exp(s - m)
    return e * pl.reciprocal(jnp.sum(e, axis=-1, keepdims=True), approx=False)


def _mha(x2, wkv, bkv, wo, bo, mask_bias):
    """Multi-head self-attention on the fused (B*S, D) slab.

    Reproduces the reference bug q = k_linear(x), i.e. q == k.
    mask_bias is an additive (B*S, B*S) bias, block-diagonal over the batch, so the fused
    softmax is exactly equivalent to per-batch-element attention.
    """
    # fused K|V projection: one MXU matmul instead of two
    kv = jnp.dot(x2, wkv, preferred_element_type=jnp.float32) + bkv            # (BS, 2D)
    # head-major views (H, BS, D_SPLIT) — built once, then all heads handled by batched einsums
    k_h = jnp.stack([kv[:, h * D_SPLIT:(h + 1) * D_SPLIT] for h in range(HEADS)], axis=0)
    v_h = jnp.stack([kv[:, D_MODEL + h * D_SPLIT:D_MODEL + (h + 1) * D_SPLIT]
                     for h in range(HEADS)], axis=0)
    scale = 1.0 / math.sqrt(D_SPLIT)
    s = jnp.einsum("hqd,hkd->hqk", k_h, k_h,                    # q == k (reference bug)
                   preferred_element_type=jnp.float32) * scale  # (H, BS, BS)
    p = _softmax_lastdim(s + mask_bias)                         # mask + batch blocks via one add
    o_h = jnp.einsum("hqk,hkd->hqd", p, v_h,
                     preferred_element_type=jnp.float32)        # (H, BS, D_SPLIT)
    # output projection: accumulate per-head partial products (same MXU work as
    # concat(heads) @ Wo, but without the lane concatenate / relayout)
    out = bo
    for h in range(HEADS):
        out = out + jnp.dot(o_h[h], wo[h * D_SPLIT:(h + 1) * D_SPLIT, :],
                            preferred_element_type=jnp.float32)
    return out


# ---------------- the Pallas kernel: full decoder layer, whole batch in one step ----------------
def decoder_layer_kernel(x_ref, mask_ref, w_ref, b_ref, o_ref):
    x = x_ref[...].astype(jnp.float32)       # (BS, D)
    mb = mask_ref[...]                       # (2*BS, BS) additive mask biases
    w = w_ref[...]                           # (224, 64)  packed weights
    b = b_ref[...]                           # (12, 64)   packed biases / norm params

    trg_bias = mb[0:BS, :]
    src_bias = mb[BS:2 * BS, :]

    # static views into the packed weight slab (row ranges fixed at trace time)
    D, F = D_MODEL, D_FF
    a1_wkv = w[0 * D:1 * D, :]                 # (32, 64) = [Wk | Wv]
    a2_wkv = w[1 * D:2 * D, :]                 # (32, 64)
    ff_w1  = w[2 * D:3 * D, :]                 # (32, 64)
    ff_w2  = w[3 * D:3 * D + F, 0:D]           # (64, 32)
    a1_wo  = w[3 * D + F:4 * D + F, 0:D]       # (32, 32)
    a2_wo  = w[4 * D + F:5 * D + F, 0:D]       # (32, 32)

    n1a, n1b = b[0:1, 0:D], b[1:2, 0:D]
    n2a, n2b = b[2:3, 0:D], b[3:4, 0:D]
    n3a, n3b = b[4:5, 0:D], b[5:6, 0:D]
    a1_bkv, a1_bo = b[6:7, :], b[7:8, 0:D]
    a2_bkv, a2_bo = b[8:9, :], b[9:10, 0:D]
    ff_b1,  ff_b2 = b[10:11, :], b[11:12, 0:D]

    # --- block 1: x = x + attn_1(norm_1(x), trg_mask) ---
    x = x + _mha(_norm(x, n1a, n1b), a1_wkv, a1_bkv, a1_wo, a1_bo, trg_bias)

    # --- block 2: x = x + attn_2(norm_2(x), src_mask) ---
    # TODO(synk): e_outputs cannot be consumed — MultiHeadAttention.forward(x, mask) takes a
    # single tensor input in the reference; reproduced as self-attention on x2 with src_mask.
    x = x + _mha(_norm(x, n2a, n2b), a2_wkv, a2_bkv, a2_wo, a2_bo, src_bias)

    # --- block 3: x = x + ff(norm_3(x)) ---
    x2 = _norm(x, n3a, n3b)
    hdn = jnp.maximum(jnp.dot(x2, ff_w1, preferred_element_type=jnp.float32) + ff_b1, 0.0)
    x = x + jnp.dot(hdn, ff_w2, preferred_element_type=jnp.float32) + ff_b2

    o_ref[...] = x.astype(o_ref.dtype)


# ---------------- wrapper-side packing (plain XLA, one-time prep) ----------------
def _pad_lanes(a, lanes=SLAB_LANES):
    return jnp.pad(a, ((0, 0), (0, lanes - a.shape[-1])))


def _pack_weight_slab(p):
    return jnp.concatenate([
        jnp.concatenate([p["a1_wk"], p["a1_wv"]], axis=1),   # (32, 64) fused K|V
        jnp.concatenate([p["a2_wk"], p["a2_wv"]], axis=1),   # (32, 64)
        p["ff_w1"],                                          # (32, 64)
        _pad_lanes(p["ff_w2"]),                              # (64, 64)
        _pad_lanes(p["a1_wo"]),                              # (32, 64)
        _pad_lanes(p["a2_wo"]),                              # (32, 64)
    ], axis=0)                                               # (224, 64)


def _pack_bias_slab(p):
    return jnp.concatenate([
        _pad_lanes(p["n1_a"]), _pad_lanes(p["n1_b"]),
        _pad_lanes(p["n2_a"]), _pad_lanes(p["n2_b"]),
        _pad_lanes(p["n3_a"]), _pad_lanes(p["n3_b"]),
        jnp.concatenate([p["a1_bk"], p["a1_bv"]], axis=1),   # (1, 64)
        _pad_lanes(p["a1_bo"]),
        jnp.concatenate([p["a2_bk"], p["a2_bv"]], axis=1),
        _pad_lanes(p["a2_bo"]),
        p["ff_b1"],                                          # (1, 64)
        _pad_lanes(p["ff_b2"]),
    ], axis=0)                                               # (12, 64)


def _mask_to_blockdiag_bias(mask):
    """(B,S,S) 0/1 mask -> (B*S, B*S) additive bias, block-diagonal over the batch."""
    B, S, _ = mask.shape
    bias = jnp.where(mask == 0, NEG_INF, 0.0).astype(jnp.float32)   # (B, S, S)
    same_batch = jnp.eye(B, dtype=bool)[:, None, :, None]           # (B, 1, B, 1)
    full = jnp.where(same_batch, bias[:, :, None, :], NEG_INF)      # (B, S, B, S)
    return full.reshape(B * S, B * S)


# ---------------- wrapper ----------------
def decoder_layer(x, e_outputs, src_mask, trg_mask, params):
    """x: (B,S,D); e_outputs unused (see TODO in kernel); masks: (B,S,S) with 0/1 entries."""
    del e_outputs  # not consumable by the reference forward signature
    B, S, D = x.shape
    bs = B * S

    x_flat = x.reshape(bs, D)
    mask_slab = jnp.concatenate(
        [_mask_to_blockdiag_bias(trg_mask), _mask_to_blockdiag_bias(src_mask)], axis=0)
    w_slab = _pack_weight_slab(params)
    b_slab = _pack_bias_slab(params)

    out_flat = pl.pallas_call(
        decoder_layer_kernel,
        out_shape=jax.ShapeDtypeStruct((bs, D), x.dtype),
        grid=(1,),   # batch fused into one step: no serial grid, no megacore needed
        in_specs=[
            pl.BlockSpec((bs, D), lambda i: (0, 0)),
            pl.BlockSpec(mask_slab.shape, lambda i: (0, 0)),
            pl.BlockSpec(w_slab.shape, lambda i: (0, 0)),
            pl.BlockSpec(b_slab.shape, lambda i: (0, 0)),
        ],
        out_specs=pl.BlockSpec((bs, D), lambda i: (0, 0)),
        compiler_params=pltpu.CompilerParams(dimension_semantics=("arbitrary",)),
    )(x_flat, mask_slab, w_slab, b_slab)
    return out_flat.reshape(B, S, D)


# ---------------- deterministic parameter init ----------------
def init_params(key):
    ks = jax.random.split(key, 20)
    s = 0.05

    def lin(k, din, dout):  # returns W already in (in, out) layout, zero bias
        return s * jax.random.normal(k, (din, dout), jnp.float32), \
               jnp.zeros((1, dout), jnp.float32)

    p = {}
    for i in (1, 2, 3):
        p[f"n{i}_a"] = jnp.ones((1, D_MODEL), jnp.float32)
        p[f"n{i}_b"] = jnp.zeros((1, D_MODEL), jnp.float32)
    # attn_1 / attn_2 (q_linear params exist in the module but are never used in forward
    # since q = k_linear(x); they are therefore not materialized)
    p["a1_wk"], p["a1_bk"] = lin(ks[0], D_MODEL, D_MODEL)
    p["a1_wv"], p["a1_bv"] = lin(ks[1], D_MODEL, D_MODEL)
    p["a1_wo"], p["a1_bo"] = lin(ks[2], D_MODEL, D_MODEL)
    p["a2_wk"], p["a2_bk"] = lin(ks[3], D_MODEL, D_MODEL)
    p["a2_wv"], p["a2_bv"] = lin(ks[4], D_MODEL, D_MODEL)
    p["a2_wo"], p["a2_bo"] = lin(ks[5], D_MODEL, D_MODEL)
    p["ff_w1"], p["ff_b1"] = lin(ks[6], D_MODEL, D_FF)
    p["ff_w2"], p["ff_b2"] = lin(ks[7], D_FF, D_MODEL)
    # nonzero deterministic biases / norm params so every packed path is exercised
    p["a1_bk"] = s * jax.random.normal(ks[8],  (1, D_MODEL), jnp.float32)
    p["a1_bv"] = s * jax.random.normal(ks[9],  (1, D_MODEL), jnp.float32)
    p["a1_bo"] = s * jax.random.normal(ks[10], (1, D_MODEL), jnp.float32)
    p["a2_bk"] = s * jax.random.normal(ks[11], (1, D_MODEL), jnp.float32)
    p["a2_bv"] = s * jax.random.normal(ks[12], (1, D_MODEL), jnp.float32)
    p["a2_bo"] = s * jax.random.normal(ks[13], (1, D_MODEL), jnp.float32)
    p["ff_b1"] = s * jax.random.normal(ks[14], (1, D_FF),    jnp.float32)
    p["ff_b2"] = s * jax.random.normal(ks[15], (1, D_MODEL), jnp.float32)
    p["n1_a"]  = 1.0 + s * jax.random.normal(ks[16], (1, D_MODEL), jnp.float32)
    p["n2_b"]  = s * jax.random.normal(ks[17], (1, D_MODEL), jnp.float32)
    return p


# ---------------- pure-JAX reference (same math, no Pallas) for a sanity check ----------------
def reference(x, src_mask, trg_mask, p):
    def mha_ref(xin, wk, bk, wv, bv, wo, bo, mask):
        k = xin @ wk + bk
        q = k                                           # reference bug: q uses k_linear
        v = xin @ wv + bv
        B, S, _ = xin.shape
        kh = k.reshape(B, S, HEADS, D_SPLIT).transpose(0, 2, 1, 3)
        qh = q.reshape(B, S, HEADS, D_SPLIT).transpose(0, 2, 1, 3)
        vh = v.reshape(B, S, HEADS, D_SPLIT).transpose(0, 2, 1, 3)
        sc = jnp.einsum("bhqd,bhkd->bhqk", qh, kh) / math.sqrt(D_SPLIT)
        sc = jnp.where(mask[:, None] == 0, NEG_INF, sc)
        pr = jax.nn.softmax(sc, axis=-1)
        o = jnp.einsum("bhqk,bhkd->bhqd", pr, vh).transpose(0, 2, 1, 3).reshape(B, S, D_MODEL)
        return o @ wo + bo

    def norm_ref(v, a, b):
        mean = v.mean(-1, keepdims=True)
        std = jnp.sqrt(((v - mean) ** 2).sum(-1, keepdims=True) / (v.shape[-1] - 1))
        return a * (v - mean) / (std + EPS) + b

    x2 = norm_ref(x, p["n1_a"], p["n1_b"])
    x = x + mha_ref(x2, p["a1_wk"], p["a1_bk"], p["a1_wv"], p["a1_bv"], p["a1_wo"], p["a1_bo"], trg_mask)
    x2 = norm_ref(x, p["n2_a"], p["n2_b"])
    x = x + mha_ref(x2, p["a2_wk"], p["a2_bk"], p["a2_wv"], p["a2_bv"], p["a2_wo"], p["a2_bo"], src_mask)
    x2 = norm_ref(x, p["n3_a"], p["n3_b"])
    h = jax.nn.relu(x2 @ p["ff_w1"] + p["ff_b1"])
    return x + h @ p["ff_w2"] + p["ff_b2"]


if __name__ == "__main__":
    key = jax.random.PRNGKey(0)
    kx, ke, kp = jax.random.split(key, 3)

    x = jax.random.normal(kx, (BATCH, SEQ, D_MODEL), jnp.float32)
    e_outputs = jax.random.normal(ke, (BATCH, SEQ, D_MODEL), jnp.float32)  # unused (see TODO)
    trg_mask = jnp.broadcast_to(
        jnp.tril(jnp.ones((SEQ, SEQ), jnp.float32)), (BATCH, SEQ, SEQ))     # causal
    src_mask = jnp.ones((BATCH, SEQ, SEQ), jnp.float32)                     # all visible
    params = init_params(kp)

    out = decoder_layer(x, e_outputs, src_mask, trg_mask, params)
    out = jax.block_until_ready(out)

    ref = reference(x, src_mask, trg_mask, params)
    assert out.shape == (BATCH, SEQ, D_MODEL)
    assert jnp.allclose(out, ref, atol=1e-4, rtol=1e-4), "mismatch vs pure-JAX reference"

    print("KERNEL_OK")
</pallas_src>

<mosaic_0001>
module attributes {stable_mosaic.version = 11 : i64} {
  func.func @decoder_layer_kernel(%arg0: i32, %arg1: memref<16x32xf32, #tpu.memory_space<vmem>>, %arg2: memref<32x16xf32, #tpu.memory_space<vmem>>, %arg3: memref<224x64xf32, #tpu.memory_space<vmem>>, %arg4: memref<12x64xf32, #tpu.memory_space<vmem>>, %arg5: memref<16x32xf32, #tpu.memory_space<vmem>>) attributes {dimension_semantics = [#tpu.dimension_semantics<arbitrary>], iteration_bounds = array<i64: 1>, scalar_prefetch = 0 : i64, scratch_operands = 0 : i64, tpu.core_type = #tpu.core_type<tc>, window_params = [{pipeline_mode = #tpu.pipeline_mode<synchronous>, transform_indices = @transform_0, window_bounds = array<i64: 16, 32>}, {pipeline_mode = #tpu.pipeline_mode<synchronous>, transform_indices = @transform_1, window_bounds = array<i64: 32, 16>}, {pipeline_mode = #tpu.pipeline_mode<synchronous>, transform_indices = @transform_2, window_bounds = array<i64: 224, 64>}, {pipeline_mode = #tpu.pipeline_mode<synchronous>, transform_indices = @transform_3, window_bounds = array<i64: 12, 64>}, {pipeline_mode = #tpu.pipeline_mode<synchronous>, transform_indices = @transform_4, window_bounds = array<i64: 16, 32>}]} {
    %c0 = arith.constant 0 : index
    %c0_0 = arith.constant 0 : index
    %0 = vector.load %arg1[%c0, %c0_0] : memref<16x32xf32, #tpu.memory_space<vmem>>, vector<16x32xf32>
    %c0_1 = arith.constant 0 : index
    %c0_2 = arith.constant 0 : index
    %1 = vector.load %arg2[%c0_1, %c0_2] : memref<32x16xf32, #tpu.memory_space<vmem>>, vector<32x16xf32>
    %c0_3 = arith.constant 0 : index
    %c0_4 = arith.constant 0 : index
    %2 = vector.load %arg3[%c0_3, %c0_4] : memref<224x64xf32, #tpu.memory_space<vmem>>, vector<224x64xf32>
    %c0_5 = arith.constant 0 : index
    %c0_6 = arith.constant 0 : index
    %3 = vector.load %arg4[%c0_5, %c0_6] : memref<12x64xf32, #tpu.memory_space<vmem>>, vector<12x64xf32>
    %4 = vector.extract_strided_slice %1 {offsets = [0, 0], sizes = [16, 16], strides = [1, 1]} : vector<32x16xf32> to vector<16x16xf32>
    %5 = vector.extract_strided_slice %1 {offsets = [16, 0], sizes = [16, 16], strides = [1, 1]} : vector<32x16xf32> to vector<16x16xf32>
    %6 = vector.extract_strided_slice %2 {offsets = [0, 0], sizes = [32, 64], strides = [1, 1]} : vector<224x64xf32> to vector<32x64xf32>
    %7 = vector.extract_strided_slice %2 {offsets = [32, 0], sizes = [32, 64], strides = [1, 1]} : vector<224x64xf32> to vector<32x64xf32>
    %8 = vector.extract_strided_slice %2 {offsets = [64, 0], sizes = [32, 64], strides = [1, 1]} : vector<224x64xf32> to vector<32x64xf32>
    %9 = vector.extract_strided_slice %2 {offsets = [96, 0], sizes = [64, 32], strides = [1, 1]} : vector<224x64xf32> to vector<64x32xf32>
    %10 = vector.extract_strided_slice %2 {offsets = [160, 0], sizes = [32, 32], strides = [1, 1]} : vector<224x64xf32> to vector<32x32xf32>
    %11 = vector.extract_strided_slice %2 {offsets = [192, 0], sizes = [32, 32], strides = [1, 1]} : vector<224x64xf32> to vector<32x32xf32>
    %12 = vector.extract_strided_slice %3 {offsets = [0, 0], sizes = [1, 32], strides = [1, 1]} : vector<12x64xf32> to vector<1x32xf32>
    %13 = vector.extract_strided_slice %3 {offsets = [1, 0], sizes = [1, 32], strides = [1, 1]} : vector<12x64xf32> to vector<1x32xf32>
    %14 = vector.extract_strided_slice %3 {offsets = [2, 0], sizes = [1, 32], strides = [1, 1]} : vector<12x64xf32> to vector<1x32xf32>
    %15 = vector.extract_strided_slice %3 {offsets = [3, 0], sizes = [1, 32], strides = [1, 1]} : vector<12x64xf32> to vector<1x32xf32>
    %16 = vector.extract_strided_slice %3 {offsets = [4, 0], sizes = [1, 32], strides = [1, 1]} : vector<12x64xf32> to vector<1x32xf32>
    %17 = vector.extract_strided_slice %3 {offsets = [5, 0], sizes = [1, 32], strides = [1, 1]} : vector<12x64xf32> to vector<1x32xf32>
    %18 = vector.extract_strided_slice %3 {offsets = [6, 0], sizes = [1, 64], strides = [1, 1]} : vector<12x64xf32> to vector<1x64xf32>
    %19 = vector.extract_strided_slice %3 {offsets = [7, 0], sizes = [1, 32], strides = [1, 1]} : vector<12x64xf32> to vector<1x32xf32>
    %20 = vector.extract_strided_slice %3 {offsets = [8, 0], sizes = [1, 64], strides = [1, 1]} : vector<12x64xf32> to vector<1x64xf32>
    %21 = vector.extract_strided_slice %3 {offsets = [9, 0], sizes = [1, 32], strides = [1, 1]} : vector<12x64xf32> to vector<1x32xf32>
    %22 = vector.extract_strided_slice %3 {offsets = [10, 0], sizes = [1, 64], strides = [1, 1]} : vector<12x64xf32> to vector<1x64xf32>
    %23 = vector.extract_strided_slice %3 {offsets = [11, 0], sizes = [1, 32], strides = [1, 1]} : vector<12x64xf32> to vector<1x32xf32>
    %cst = arith.constant dense<0.000000e+00> : vector<16xf32>
    %24 = vector.multi_reduction <add>, %0, %cst [1] : vector<16x32xf32> to vector<16xf32>
    %25 = vector.shape_cast %24 : vector<16xf32> to vector<16x1xf32>
    %cst_7 = arith.constant 3.200000e+01 : f32
    %26 = vector.broadcast %cst_7 : f32 to vector<16x1xf32>
    %27 = arith.divf %25, %26 : vector<16x1xf32>
    %28 = vector.broadcast %27 : vector<16x1xf32> to vector<16x32xf32>
    %29 = arith.subf %0, %28 : vector<16x32xf32>
    %30 = arith.mulf %29, %29 : vector<16x32xf32>
    %cst_8 = arith.constant dense<0.000000e+00> : vector<16xf32>
    %31 = vector.multi_reduction <add>, %30, %cst_8 [1] : vector<16x32xf32> to vector<16xf32>
    %32 = vector.shape_cast %31 : vector<16xf32> to vector<16x1xf32>
    %cst_9 = arith.constant 3.100000e+01 : f32
    %33 = vector.broadcast %cst_9 : f32 to vector<16x1xf32>
    %34 = arith.divf %32, %33 : vector<16x1xf32>
    %35 = math.sqrt %34 : vector<16x1xf32>
    %cst_10 = arith.constant 9.99999997E-7 : f32
    %36 = vector.broadcast %cst_10 : f32 to vector<16x1xf32>
    %37 = arith.addf %35, %36 : vector<16x1xf32>
    %38 = tpu.reciprocal %37 : vector<16x1xf32> -> vector<16x1xf32>
    %39 = vector.broadcast %27 : vector<16x1xf32> to vector<16x32xf32>
    %40 = arith.subf %0, %39 : vector<16x32xf32>
    %41 = vector.broadcast %12 : vector<1x32xf32> to vector<16x32xf32>
    %42 = arith.mulf %41, %40 : vector<16x32xf32>
    %43 = vector.broadcast %38 : vector<16x1xf32> to vector<16x32xf32>
    %44 = arith.mulf %42, %43 : vector<16x32xf32>
    %45 = vector.broadcast %13 : vector<1x32xf32> to vector<16x32xf32>
    %46 = arith.addf %44, %45 : vector<16x32xf32>
    %cst_11 = arith.constant dense<0.000000e+00> : vector<16x64xf32>
    %47 = tpu.matmul %46, %6, %cst_11 {dimension_numbers = #tpu.dot_dimension_numbers<[1], [0], [0], [1], [0, 0, 1, 1], [], []>} : vector<16x32xf32>, vector<32x64xf32>, vector<16x64xf32> -> vector<16x64xf32>
    %48 = vector.broadcast %18 : vector<1x64xf32> to vector<16x64xf32>
    %49 = arith.addf %47, %48 : vector<16x64xf32>
    %50 = vector.extract_strided_slice %49 {offsets = [0, 0], sizes = [16, 8], strides = [1, 1]} : vector<16x64xf32> to vector<16x8xf32>
    %51 = vector.extract_strided_slice %49 {offsets = [0, 8], sizes = [16, 8], strides = [1, 1]} : vector<16x64xf32> to vector<16x8xf32>
    %52 = vector.extract_strided_slice %49 {offsets = [0, 16], sizes = [16, 8], strides = [1, 1]} : vector<16x64xf32> to vector<16x8xf32>
    %53 = vector.extract_strided_slice %49 {offsets = [0, 24], sizes = [16, 8], strides = [1, 1]} : vector<16x64xf32> to vector<16x8xf32>
    %54 = vector.shape_cast %50 : vector<16x8xf32> to vector<1x16x8xf32>
    %55 = vector.shape_cast %51 : vector<16x8xf32> to vector<1x16x8xf32>
    %56 = vector.shape_cast %52 : vector<16x8xf32> to vector<1x16x8xf32>
    %57 = vector.shape_cast %53 : vector<16x8xf32> to vector<1x16x8xf32>
    %58 = tpu.concatenate %54, %55, %56, %57 in 0 : vector<1x16x8xf32>, vector<1x16x8xf32>, vector<1x16x8xf32>, vector<1x16x8xf32> -> vector<4x16x8xf32>
    %59 = vector.extract_strided_slice %49 {offsets = [0, 32], sizes = [16, 8], strides = [1, 1]} : vector<16x64xf32> to vector<16x8xf32>
    %60 = vector.extract_strided_slice %49 {offsets = [0, 40], sizes = [16, 8], strides = [1, 1]} : vector<16x64xf32> to vector<16x8xf32>
    %61 = vector.extract_strided_slice %49 {offsets = [0, 48], sizes = [16, 8], strides = [1, 1]} : vector<16x64xf32> to vector<16x8xf32>
    %62 = vector.extract_strided_slice %49 {offsets = [0, 56], sizes = [16, 8], strides = [1, 1]} : vector<16x64xf32> to vector<16x8xf32>
    %63 = vector.shape_cast %59 : vector<16x8xf32> to vector<1x16x8xf32>
    %64 = vector.shape_cast %60 : vector<16x8xf32> to vector<1x16x8xf32>
    %65 = vector.shape_cast %61 : vector<16x8xf32> to vector<1x16x8xf32>
    %66 = vector.shape_cast %62 : vector<16x8xf32> to vector<1x16x8xf32>
    %67 = tpu.concatenate %63, %64, %65, %66 in 0 : vector<1x16x8xf32>, vector<1x16x8xf32>, vector<1x16x8xf32>, vector<1x16x8xf32> -> vector<4x16x8xf32>
    "tpu.trace_start"() <{level = 10 : i32, message = "hqd,hkd->hqk"}> : () -> ()
    %cst_12 = arith.constant dense<0.000000e+00> : vector<4x16x16xf32>
    %68 = tpu.matmul %58, %58, %cst_12 {dimension_numbers = #tpu.dot_dimension_numbers<[2], [2], [1], [1], [0, 0, 0, 1, 1, 1], [0], [0]>} : vector<4x16x8xf32>, vector<4x16x8xf32>, vector<4x16x16xf32> -> vector<4x16x16xf32>
    "tpu.trace_stop"() : () -> ()
    %cst_13 = arith.constant 0.353553385 : f32
    %69 = vector.broadcast %cst_13 : f32 to vector<4x16x16xf32>
    %70 = arith.mulf %68, %69 : vector<4x16x16xf32>
    %71 = vector.shape_cast %4 : vector<16x16xf32> to vector<1x16x16xf32>
    %72 = vector.broadcast %71 : vector<1x16x16xf32> to vector<4x16x16xf32>
    %73 = arith.addf %70, %72 : vector<4x16x16xf32>
    %cst_14 = arith.constant dense<0xFF800000> : vector<4x16xf32>
    %74 = vector.multi_reduction <maximumf>, %73, %cst_14 [2] : vector<4x16x16xf32> to vector<4x16xf32>
    %75 = vector.shape_cast %74 : vector<4x16xf32> to vector<4x16x1xf32>
    %76 = vector.broadcast %75 : vector<4x16x1xf32> to vector<4x16x16xf32>
    %77 = arith.subf %73, %76 : vector<4x16x16xf32>
    %78 = math.exp %77 : vector<4x16x16xf32>
    %cst_15 = arith.constant dense<0.000000e+00> : vector<4x16xf32>
    %79 = vector.multi_reduction <add>, %78, %cst_15 [2] : vector<4x16x16xf32> to vector<4x16xf32>
    %80 = vector.shape_cast %79 : vector<4x16xf32> to vector<4x16x1xf32>
    %81 = tpu.reciprocal %80 : vector<4x16x1xf32> -> vector<4x16x1xf32>
    %82 = vector.broadcast %81 : vector<4x16x1xf32> to vector<4x16x16xf32>
    %83 = arith.mulf %78, %82 : vector<4x16x16xf32>
    "tpu.trace_start"() <{level = 10 : i32, message = "hqk,hkd->hqd"}> : () -> ()
    %cst_16 = arith.constant dense<0.000000e+00> : vector<4x16x8xf32>
    %84 = tpu.matmul %83, %67, %cst_16 {dimension_numbers = #tpu.dot_dimension_numbers<[2], [1], [1], [2], [0, 0, 0, 1, 1, 2], [0], [0]>} : vector<4x16x16xf32>, vector<4x16x8xf32>, vector<4x16x8xf32> -> vector<4x16x8xf32>
    "tpu.trace_stop"() : () -> ()
    %85 = vector.extract_strided_slice %84 {offsets = [0, 0, 0], sizes = [1, 16, 8], strides = [1, 1, 1]} : vector<4x16x8xf32> to vector<1x16x8xf32>
    %86 = vector.shape_cast %85 : vector<1x16x8xf32> to vector<16x8xf32>
    %87 = vector.extract_strided_slice %10 {offsets = [0, 0], sizes = [8, 32], strides = [1, 1]} : vector<32x32xf32> to vector<8x32xf32>
    %cst_17 = arith.constant dense<0.000000e+00> : vector<16x32xf32>
    %88 = tpu.matmul %86, %87, %cst_17 {dimension_numbers = #tpu.dot_dimension_numbers<[1], [0], [0], [1], [0, 0, 1, 1], [], []>} : vector<16x8xf32>, vector<8x32xf32>, vector<16x32xf32> -> vector<16x32xf32>
    %89 = vector.broadcast %19 : vector<1x32xf32> to vector<16x32xf32>
    %90 = arith.addf %89, %88 : vector<16x32xf32>
    %91 = vector.extract_strided_slice %84 {offsets = [1, 0, 0], sizes = [1, 16, 8], strides = [1, 1, 1]} : vector<4x16x8xf32> to vector<1x16x8xf32>
    %92 = vector.shape_cast %91 : vector<1x16x8xf32> to vector<16x8xf32>
    %93 = vector.extract_strided_slice %10 {offsets = [8, 0], sizes = [8, 32], strides = [1, 1]} : vector<32x32xf32> to vector<8x32xf32>
    %cst_18 = arith.constant dense<0.000000e+00> : vector<16x32xf32>
    %94 = tpu.matmul %92, %93, %cst_18 {dimension_numbers = #tpu.dot_dimension_numbers<[1], [0], [0], [1], [0, 0, 1, 1], [], []>} : vector<16x8xf32>, vector<8x32xf32>, vector<16x32xf32> -> vector<16x32xf32>
    %95 = arith.addf %90, %94 : vector<16x32xf32>
    %96 = vector.extract_strided_slice %84 {offsets = [2, 0, 0], sizes = [1, 16, 8], strides = [1, 1, 1]} : vector<4x16x8xf32> to vector<1x16x8xf32>
    %97 = vector.shape_cast %96 : vector<1x16x8xf32> to vector<16x8xf32>
    %98 = vector.extract_strided_slice %10 {offsets = [16, 0], sizes = [8, 32], strides = [1, 1]} : vector<32x32xf32> to vector<8x32xf32>
    %cst_19 = arith.constant dense<0.000000e+00> : vector<16x32xf32>
    %99 = tpu.matmul %97, %98, %cst_19 {dimension_numbers = #tpu.dot_dimension_numbers<[1], [0], [0], [1], [0, 0, 1, 1], [], []>} : vector<16x8xf32>, vector<8x32xf32>, vector<16x32xf32> -> vector<16x32xf32>
    %100 = arith.addf %95, %99 : vector<16x32xf32>
    %101 = vector.extract_strided_slice %84 {offsets = [3, 0, 0], sizes = [1, 16, 8], strides = [1, 1, 1]} : vector<4x16x8xf32> to vector<1x16x8xf32>
    %102 = vector.shape_cast %101 : vector<1x16x8xf32> to vector<16x8xf32>
    %103 = vector.extract_strided_slice %10 {offsets = [24, 0], sizes = [8, 32], strides = [1, 1]} : vector<32x32xf32> to vector<8x32xf32>
    %cst_20 = arith.constant dense<0.000000e+00> : vector<16x32xf32>
    %104 = tpu.matmul %102, %103, %cst_20 {dimension_numbers = #tpu.dot_dimension_numbers<[1], [0], [0], [1], [0, 0, 1, 1], [], []>} : vector<16x8xf32>, vector<8x32xf32>, vector<16x32xf32> -> vector<16x32xf32>
    %105 = arith.addf %100, %104 : vector<16x32xf32>
    %106 = arith.addf %0, %105 : vector<16x32xf32>
    %cst_21 = arith.constant dense<0.000000e+00> : vector<16xf32>
    %107 = vector.multi_reduction <add>, %106, %cst_21 [1] : vector<16x32xf32> to vector<16xf32>
    %108 = vector.shape_cast %107 : vector<16xf32> to vector<16x1xf32>
    %cst_22 = arith.constant 3.200000e+01 : f32
    %109 = vector.broadcast %cst_22 : f32 to vector<16x1xf32>
    %110 = arith.divf %108, %109 : vector<16x1xf32>
    %111 = vector.broadcast %110 : vector<16x1xf32> to vector<16x32xf32>
    %112 = arith.subf %106, %111 : vector<16x32xf32>
    %113 = arith.mulf %112, %112 : vector<16x32xf32>
    %cst_23 = arith.constant dense<0.000000e+00> : vector<16xf32>
    %114 = vector.multi_reduction <add>, %113, %cst_23 [1] : vector<16x32xf32> to vector<16xf32>
    %115 = vector.shape_cast %114 : vector<16xf32> to vector<16x1xf32>
    %cst_24 = arith.constant 3.100000e+01 : f32
    %116 = vector.broadcast %cst_24 : f32 to vector<16x1xf32>
    %117 = arith.divf %115, %116 : vector<16x1xf32>
    %118 = math.sqrt %117 : vector<16x1xf32>
    %cst_25 = arith.constant 9.99999997E-7 : f32
    %119 = vector.broadcast %cst_25 : f32 to vector<16x1xf32>
    %120 = arith.addf %118, %119 : vector<16x1xf32>
    %121 = tpu.reciprocal %120 : vector<16x1xf32> -> vector<16x1xf32>
    %122 = vector.broadcast %110 : vector<16x1xf32> to vector<16x32xf32>
    %123 = arith.subf %106, %122 : vector<16x32xf32>
    %124 = vector.broadcast %14 : vector<1x32xf32> to vector<16x32xf32>
    %125 = arith.mulf %124, %123 : vector<16x32xf32>
    %126 = vector.broadcast %121 : vector<16x1xf32> to vector<16x32xf32>
    %127 = arith.mulf %125, %126 : vector<16x32xf32>
    %128 = vector.broadcast %15 : vector<1x32xf32> to vector<16x32xf32>
    %129 = arith.addf %127, %128 : vector<16x32xf32>
    %cst_26 = arith.constant dense<0.000000e+00> : vector<16x64xf32>
    %130 = tpu.matmul %129, %7, %cst_26 {dimension_numbers = #tpu.dot_dimension_numbers<[1], [0], [0], [1], [0, 0, 1, 1], [], []>} : vector<16x32xf32>, vector<32x64xf32>, vector<16x64xf32> -> vector<16x64xf32>
    %131 = vector.broadcast %20 : vector<1x64xf32> to vector<16x64xf32>
    %132 = arith.addf %130, %131 : vector<16x64xf32>
    %133 = vector.extract_strided_slice %132 {offsets = [0, 0], sizes = [16, 8], strides = [1, 1]} : vector<16x64xf32> to vector<16x8xf32>
    %134 = vector.extract_strided_slice %132 {offsets = [0, 8], sizes = [16, 8], strides = [1, 1]} : vector<16x64xf32> to vector<16x8xf32>
    %135 = vector.extract_strided_slice %132 {offsets = [0, 16], sizes = [16, 8], strides = [1, 1]} : vector<16x64xf32> to vector<16x8xf32>
    %136 = vector.extract_strided_slice %132 {offsets = [0, 24], sizes = [16, 8], strides = [1, 1]} : vector<16x64xf32> to vector<16x8xf32>
    %137 = vector.shape_cast %133 : vector<16x8xf32> to vector<1x16x8xf32>
    %138 = vector.shape_cast %134 : vector<16x8xf32> to vector<1x16x8xf32>
    %139 = vector.shape_cast %135 : vector<16x8xf32> to vector<1x16x8xf32>
    %140 = vector.shape_cast %136 : vector<16x8xf32> to vector<1x16x8xf32>
    %141 = tpu.concatenate %137, %138, %139, %140 in 0 : vector<1x16x8xf32>, vector<1x16x8xf32>, vector<1x16x8xf32>, vector<1x16x8xf32> -> vector<4x16x8xf32>
    %142 = vector.extract_strided_slice %132 {offsets = [0, 32], sizes = [16, 8], strides = [1, 1]} : vector<16x64xf32> to vector<16x8xf32>
    %143 = vector.extract_strided_slice %132 {offsets = [0, 40], sizes = [16, 8], strides = [1, 1]} : vector<16x64xf32> to vector<16x8xf32>
    %144 = vector.extract_strided_slice %132 {offsets = [0, 48], sizes = [16, 8], strides = [1, 1]} : vector<16x64xf32> to vector<16x8xf32>
    %145 = vector.extract_strided_slice %132 {offsets = [0, 56], sizes = [16, 8], strides = [1, 1]} : vector<16x64xf32> to vector<16x8xf32>
    %146 = vector.shape_cast %142 : vector<16x8xf32> to vector<1x16x8xf32>
    %147 = vector.shape_cast %143 : vector<16x8xf32> to vector<1x16x8xf32>
    %148 = vector.shape_cast %144 : vector<16x8xf32> to vector<1x16x8xf32>
    %149 = vector.shape_cast %145 : vector<16x8xf32> to vector<1x16x8xf32>
    %150 = tpu.concatenate %146, %147, %148, %149 in 0 : vector<1x16x8xf32>, vector<1x16x8xf32>, vector<1x16x8xf32>, vector<1x16x8xf32> -> vector<4x16x8xf32>
    "tpu.trace_start"() <{level = 10 : i32, message = "hqd,hkd->hqk"}> : () -> ()
    %cst_27 = arith.constant dense<0.000000e+00> : vector<4x16x16xf32>
    %151 = tpu.matmul %141, %141, %cst_27 {dimension_numbers = #tpu.dot_dimension_numbers<[2], [2], [1], [1], [0, 0, 0, 1, 1, 1], [0], [0]>} : vector<4x16x8xf32>, vector<4x16x8xf32>, vector<4x16x16xf32> -> vector<4x16x16xf32>
    "tpu.trace_stop"() : () -> ()
    %cst_28 = arith.constant 0.353553385 : f32
    %152 = vector.broadcast %cst_28 : f32 to vector<4x16x16xf32>
    %153 = arith.mulf %151, %152 : vector<4x16x16xf32>
    %154 = vector.shape_cast %5 : vector<16x16xf32> to vector<1x16x16xf32>
    %155 = vector.broadcast %154 : vector<1x16x16xf32> to vector<4x16x16xf32>
    %156 = arith.addf %153, %155 : vector<4x16x16xf32>
    %cst_29 = arith.constant dense<0xFF800000> : vector<4x16xf32>
    %157 = vector.multi_reduction <maximumf>, %156, %cst_29 [2] : vector<4x16x16xf32> to vector<4x16xf32>
    %158 = vector.shape_cast %157 : vector<4x16xf32> to vector<4x16x1xf32>
    %159 = vector.broadcast %158 : vector<4x16x1xf32> to vector<4x16x16xf32>
    %160 = arith.subf %156, %159 : vector<4x16x16xf32>
    %161 = math.exp %160 : vector<4x16x16xf32>
    %cst_30 = arith.constant dense<0.000000e+00> : vector<4x16xf32>
    %162 = vector.multi_reduction <add>, %161, %cst_30 [2] : vector<4x16x16xf32> to vector<4x16xf32>
    %163 = vector.shape_cast %162 : vector<4x16xf32> to vector<4x16x1xf32>
    %164 = tpu.reciprocal %163 : vector<4x16x1xf32> -> vector<4x16x1xf32>
    %165 = vector.broadcast %164 : vector<4x16x1xf32> to vector<4x16x16xf32>
    %166 = arith.mulf %161, %165 : vector<4x16x16xf32>
    "tpu.trace_start"() <{level = 10 : i32, message = "hqk,hkd->hqd"}> : () -> ()
    %cst_31 = arith.constant dense<0.000000e+00> : vector<4x16x8xf32>
    %167 = tpu.matmul %166, %150, %cst_31 {dimension_numbers = #tpu.dot_dimension_numbers<[2], [1], [1], [2], [0, 0, 0, 1, 1, 2], [0], [0]>} : vector<4x16x16xf32>, vector<4x16x8xf32>, vector<4x16x8xf32> -> vector<4x16x8xf32>
    "tpu.trace_stop"() : () -> ()
    %168 = vector.extract_strided_slice %167 {offsets = [0, 0, 0], sizes = [1, 16, 8], strides = [1, 1, 1]} : vector<4x16x8xf32> to vector<1x16x8xf32>
    %169 = vector.shape_cast %168 : vector<1x16x8xf32> to vector<16x8xf32>
    %170 = vector.extract_strided_slice %11 {offsets = [0, 0], sizes = [8, 32], strides = [1, 1]} : vector<32x32xf32> to vector<8x32xf32>
    %cst_32 = arith.constant dense<0.000000e+00> : vector<16x32xf32>
    %171 = tpu.matmul %169, %170, %cst_32 {dimension_numbers = #tpu.dot_dimension_numbers<[1], [0], [0], [1], [0, 0, 1, 1], [], []>} : vector<16x8xf32>, vector<8x32xf32>, vector<16x32xf32> -> vector<16x32xf32>
    %172 = vector.broadcast %21 : vector<1x32xf32> to vector<16x32xf32>
    %173 = arith.addf %172, %171 : vector<16x32xf32>
    %174 = vector.extract_strided_slice %167 {offsets = [1, 0, 0], sizes = [1, 16, 8], strides = [1, 1, 1]} : vector<4x16x8xf32> to vector<1x16x8xf32>
    %175 = vector.shape_cast %174 : vector<1x16x8xf32> to vector<16x8xf32>
    %176 = vector.extract_strided_slice %11 {offsets = [8, 0], sizes = [8, 32], strides = [1, 1]} : vector<32x32xf32> to vector<8x32xf32>
    %cst_33 = arith.constant dense<0.000000e+00> : vector<16x32xf32>
    %177 = tpu.matmul %175, %176, %cst_33 {dimension_numbers = #tpu.dot_dimension_numbers<[1], [0], [0], [1], [0, 0, 1, 1], [], []>} : vector<16x8xf32>, vector<8x32xf32>, vector<16x32xf32> -> vector<16x32xf32>
    %178 = arith.addf %173, %177 : vector<16x32xf32>
    %179 = vector.extract_strided_slice %167 {offsets = [2, 0, 0], sizes = [1, 16, 8], strides = [1, 1, 1]} : vector<4x16x8xf32> to vector<1x16x8xf32>
    %180 = vector.shape_cast %179 : vector<1x16x8xf32> to vector<16x8xf32>
    %181 = vector.extract_strided_slice %11 {offsets = [16, 0], sizes = [8, 32], strides = [1, 1]} : vector<32x32xf32> to vector<8x32xf32>
    %cst_34 = arith.constant dense<0.000000e+00> : vector<16x32xf32>
    %182 = tpu.matmul %180, %181, %cst_34 {dimension_numbers = #tpu.dot_dimension_numbers<[1], [0], [0], [1], [0, 0, 1, 1], [], []>} : vector<16x8xf32>, vector<8x32xf32>, vector<16x32xf32> -> vector<16x32xf32>
    %183 = arith.addf %178, %182 : vector<16x32xf32>
    %184 = vector.extract_strided_slice %167 {offsets = [3, 0, 0], sizes = [1, 16, 8], strides = [1, 1, 1]} : vector<4x16x8xf32> to vector<1x16x8xf32>
    %185 = vector.shape_cast %184 : vector<1x16x8xf32> to vector<16x8xf32>
    %186 = vector.extract_strided_slice %11 {offsets = [24, 0], sizes = [8, 32], strides = [1, 1]} : vector<32x32xf32> to vector<8x32xf32>
    %cst_35 = arith.constant dense<0.000000e+00> : vector<16x32xf32>
    %187 = tpu.matmul %185, %186, %cst_35 {dimension_numbers = #tpu.dot_dimension_numbers<[1], [0], [0], [1], [0, 0, 1, 1], [], []>} : vector<16x8xf32>, vector<8x32xf32>, vector<16x32xf32> -> vector<16x32xf32>
    %188 = arith.addf %183, %187 : vector<16x32xf32>
    %189 = arith.addf %106, %188 : vector<16x32xf32>
    %cst_36 = arith.constant dense<0.000000e+00> : vector<16xf32>
    %190 = vector.multi_reduction <add>, %189, %cst_36 [1] : vector<16x32xf32> to vector<16xf32>
    %191 = vector.shape_cast %190 : vector<16xf32> to vector<16x1xf32>
    %cst_37 = arith.constant 3.200000e+01 : f32
    %192 = vector.broadcast %cst_37 : f32 to vector<16x1xf32>
    %193 = arith.divf %191, %192 : vector<16x1xf32>
    %194 = vector.broadcast %193 : vector<16x1xf32> to vector<16x32xf32>
    %195 = arith.subf %189, %194 : vector<16x32xf32>
    %196 = arith.mulf %195, %195 : vector<16x32xf32>
    %cst_38 = arith.constant dense<0.000000e+00> : vector<16xf32>
    %197 = vector.multi_reduction <add>, %196, %cst_38 [1] : vector<16x32xf32> to vector<16xf32>
    %198 = vector.shape_cast %197 : vector<16xf32> to vector<16x1xf32>
    %cst_39 = arith.constant 3.100000e+01 : f32
    %199 = vector.broadcast %cst_39 : f32 to vector<16x1xf32>
    %200 = arith.divf %198, %199 : vector<16x1xf32>
    %201 = math.sqrt %200 : vector<16x1xf32>
    %cst_40 = arith.constant 9.99999997E-7 : f32
    %202 = vector.broadcast %cst_40 : f32 to vector<16x1xf32>
    %203 = arith.addf %201, %202 : vector<16x1xf32>
    %204 = tpu.reciprocal %203 : vector<16x1xf32> -> vector<16x1xf32>
    %205 = vector.broadcast %193 : vector<16x1xf32> to vector<16x32xf32>
    %206 = arith.subf %189, %205 : vector<16x32xf32>
    %207 = vector.broadcast %16 : vector<1x32xf32> to vector<16x32xf32>
    %208 = arith.mulf %207, %206 : vector<16x32xf32>
    %209 = vector.broadcast %204 : vector<16x1xf32> to vector<16x32xf32>
    %210 = arith.mulf %208, %209 : vector<16x32xf32>
    %211 = vector.broadcast %17 : vector<1x32xf32> to vector<16x32xf32>
    %212 = arith.addf %210, %211 : vector<16x32xf32>
    %cst_41 = arith.constant dense<0.000000e+00> : vector<16x64xf32>
    %213 = tpu.matmul %212, %8, %cst_41 {dimension_numbers = #tpu.dot_dimension_numbers<[1], [0], [0], [1], [0, 0, 1, 1], [], []>} : vector<16x32xf32>, vector<32x64xf32>, vector<16x64xf32> -> vector<16x64xf32>
    %214 = vector.broadcast %22 : vector<1x64xf32> to vector<16x64xf32>
    %215 = arith.addf %213, %214 : vector<16x64xf32>
    %cst_42 = arith.constant 0.000000e+00 : f32
    %216 = vector.broadcast %cst_42 : f32 to vector<16x64xf32>
    %217 = arith.maximumf %215, %216 : vector<16x64xf32>
    %cst_43 = arith.constant dense<0.000000e+00> : vector<16x32xf32>
    %218 = tpu.matmul %217, %9, %cst_43 {dimension_numbers = #tpu.dot_dimension_numbers<[1], [0], [0], [1], [0, 0, 1, 1], [], []>} : vector<16x64xf32>, vector<64x32xf32>, vector<16x32xf32> -> vector<16x32xf32>
    %219 = arith.addf %189, %218 : vector<16x32xf32>
    %220 = vector.broadcast %23 : vector<1x32xf32> to vector<16x32xf32>
    %221 = arith.addf %219, %220 : vector<16x32xf32>
    %c0_44 = arith.constant 0 : index
    %c0_45 = arith.constant 0 : index
    %222 = vector.load %arg5[%c0_44, %c0_45] : memref<16x32xf32, #tpu.memory_space<vmem>>, vector<16x32xf32>
    tpu.vector_store %arg5[%c0_44, %c0_45], %221 {strides = array<i32>} : memref<16x32xf32, #tpu.memory_space<vmem>>, vector<16x32xf32>,
    return
  }
  func.func @transform_0(%arg0: i32) -> (i32, i32) {
    %c0_i32 = arith.constant 0 : i32
    %c0_i32_0 = arith.constant 0 : i32
    %c0_i32_1 = arith.constant 0 : i32
    return %c0_i32, %c0_i32_0 : i32, i32
  }
  func.func @transform_1(%arg0: i32) -> (i32, i32) {
    %c0_i32 = arith.constant 0 : i32
    %c0_i32_0 = arith.constant 0 : i32
    %c0_i32_1 = arith.constant 0 : i32
    return %c0_i32, %c0_i32_0 : i32, i32
  }
  func.func @transform_2(%arg0: i32) -> (i32, i32) {
    %c0_i32 = arith.constant 0 : i32
    %c0_i32_0 = arith.constant 0 : i32
    %c0_i32_1 = arith.constant 0 : i32
    return %c0_i32, %c0_i32_0 : i32, i32
  }
  func.func @transform_3(%arg0: i32) -> (i32, i32) {
    %c0_i32 = arith.constant 0 : i32
    %c0_i32_0 = arith.constant 0 : i32
    %c0_i32_1 = arith.constant 0 : i32
    return %c0_i32, %c0_i32_0 : i32, i32
  }
  func.func @transform_4(%arg0: i32) -> (i32, i32) {
    %c0_i32 = arith.constant 0 : i32
    %c0_i32_0 = arith.constant 0 : i32
    %c0_i32_1 = arith.constant 0 : i32
    return %c0_i32, %c0_i32_0 : i32, i32
  }
}

</mosaic_0001>

<llo_original>
// kernel: tpu_custom_call.1
$region0: #{tpu_custom_call.1}
  #allocation0 [shape = 'u32[]', space=smem, size = 0x4, offset = 0x4, fixed_abs, tag = 'smem constant byte address 0x4 - core index']
  #allocation1 [shape = 'u32[144,128]{1,0:T(1,128)}', space=vmem, size = 0x12000, scoped, tag = 'internal scratch']
  %s0 = inlined_call_operand.vmem [shape: f32[16,32], index: 0, kind: input, shape index: {}]
  %s1 = inlined_call_operand.vmem [shape: f32[32,16], index: 1, kind: input, shape index: {}]
  %s2 = inlined_call_operand.vmem [shape: f32[224,64], index: 2, kind: input, shape index: {}]
  %s3 = inlined_call_operand.vmem [shape: f32[12,64], index: 3, kind: input, shape index: {}]
  %s4 = inlined_call_operand.hbm [shape: f32[16,32], index: 4, kind: output, shape index: {}]
  %s5 = sld [smem:[#allocation0]]
  $region26: #{tpu_custom_call.1} parent=0
    _
  %s7 = ssub.s32 1, %s5
  %s8 = scalar_select 0, %s7, %s5
  $region1: #{tpu_custom_call.1} parent=0
    #allocation2 [shape = 'u8[8192]{0}', space=vmem, size = 0x2000, scoped, tag = 'output window, operand 0, single buffered']
    #allocation3 [shape = 's32[1]{0}', space=sflag, size = 0x4, scoped, tag = 'scoped memory for tpu_custom_call.1']
    %9 = vsyncpa [#allocation3], 0
    // Predicated region
    $region2: #{tpu_custom_call.1} parent=1 // pred_check
      _
    $region3: #{tpu_custom_call.1} parent=1 // pred_check_branch
      %11 = sbr.rel (0) target = $region5
    $region4: #{tpu_custom_call.1} parent=1 // pred_region
      _
    $region5: #{tpu_custom_call.1} parent=1 // pred_fallthru
      _
    // Predicated region
    $region6: #{tpu_custom_call.1} parent=1 // pred_check
      _
    $region7: #{tpu_custom_call.1} parent=1 // pred_check_branch
      %13 = sbr.rel (0) target = $region9
    $region8: #{tpu_custom_call.1} parent=1 // pred_region
      _
    $region9: #{tpu_custom_call.1} parent=1 // pred_fallthru
      _
    // Predicated region
    $region10: #{tpu_custom_call.1} parent=1 // pred_check
      _
    $region11: #{tpu_custom_call.1} parent=1 // pred_check_branch
      %15 = sbr.rel (0) target = $region13
    $region12: #{tpu_custom_call.1} parent=1 // pred_region
      _
    $region13: #{tpu_custom_call.1} parent=1 // pred_fallthru
      _
    // Predicated region
    $region14: #{tpu_custom_call.1} parent=1 // pred_check
      _
    $region15: #{tpu_custom_call.1} parent=1 // pred_check_branch
      %17 = sbr.rel (0) target = $region17
    $region16: #{tpu_custom_call.1} parent=1 // pred_region
      _
    $region17: #{tpu_custom_call.1} parent=1 // pred_fallthru
      _
    %v18 = vld [vmem:[%s0] sm:$0xff]
    %v19 = vld [vmem:[%s0 + $0x8] sm:$0xff]
    %v20 = vld [vmem:[%s1] sm:$0xff]
    %v21 = vld [vmem:[%s1 + $0x8] sm:$0xff]
    %v22 = vld [vmem:[%s1 + $0x10] sm:$0xff]
    %v23 = vld [vmem:[%s1 + $0x18] sm:$0xff]
    %v24 = vld [vmem:[%s2] sm:$0xff]
    %v25 = vld [vmem:[%s2 + $0x8] sm:$0xff]
    %v26 = vld [vmem:[%s2 + $0x10] sm:$0xff]
    %v27 = vld [vmem:[%s2 + $0x18] sm:$0xff]
    %v28 = vld [vmem:[%s2 + $0x20] sm:$0xff]
    %v29 = vld [vmem:[%s2 + $0x28] sm:$0xff]
    %v30 = vld [vmem:[%s2 + $0x30] sm:$0xff]
    %v31 = vld [vmem:[%s2 + $0x38] sm:$0xff]
    %v32 = vld [vmem:[%s2 + $0x40] sm:$0xff]
    %v33 = vld [vmem:[%s2 + $0x48] sm:$0xff]
    %v34 = vld [vmem:[%s2 + $0x50] sm:$0xff]
    %v35 = vld [vmem:[%s2 + $0x58] sm:$0xff]
    %v36 = vld [vmem:[%s2 + $0x60] sm:$0xff]
    %v37 = vld [vmem:[%s2 + $0x68] sm:$0xff]
    %v38 = vld [vmem:[%s2 + $0x70] sm:$0xff]
    %v39 = vld [vmem:[%s2 + $0x78] sm:$0xff]
    %v40 = vld [vmem:[%s2 + $0x80] sm:$0xff]
    %v41 = vld [vmem:[%s2 + $0x88] sm:$0xff]
    %v42 = vld [vmem:[%s2 + $0x90] sm:$0xff]
    %v43 = vld [vmem:[%s2 + $0x98] sm:$0xff]
    %v44 = vld [vmem:[%s2 + $0xa0] sm:$0xff]
    %v45 = vld [vmem:[%s2 + $0xa8] sm:$0xff]
    %v46 = vld [vmem:[%s2 + $0xb0] sm:$0xff]
    %v47 = vld [vmem:[%s2 + $0xb8] sm:$0xff]
    %v48 = vld [vmem:[%s2 + $0xc0] sm:$0xff]
    %v49 = vld [vmem:[%s2 + $0xc8] sm:$0xff]
    %v50 = vld [vmem:[%s2 + $0xd0] sm:$0xff]
    %v51 = vld [vmem:[%s2 + $0xd8] sm:$0xff]
    %v52 = vld [vmem:[%s3] sm:$0xff]
    %v53 = vld [vmem:[%s3 + $0x8] sm:$0xf]
    %vm54 = vcmask 261120
    %v55 = vsel %vm54, %v18, 0.0
    %56 = vadd.xlane.f32.xlu0 %v55
    %v57 = vpop.xlane.xlu0 %56
    %v58 = vsel %vm54, %v19, 0.0
    %59 = vadd.xlane.f32.xlu0 %v58
    %v60 = vpop.xlane.xlu0 %59
    %v61 = vrcp.pop 32.0
    %v62 = vmul.f32 %v57, %v61
    %v63 = vmul.f32 %v60, %v61
    %v64 = vsub.f32 %v18, %v62
    %v65 = vsub.f32 %v19, %v63
    %v66 = vmul.f32 %v64, %v64
    %v67 = vmul.f32 %v65, %v65
    %v68 = vsel %vm54, %v66, 0.0
    %69 = vadd.xlane.f32.xlu0 %v68
    %v70 = vpop.xlane.xlu0 %69
    %v71 = vsel %vm54, %v67, 0.0
    %72 = vadd.xlane.f32.xlu0 %v71
    %v73 = vpop.xlane.xlu0 %72
    %v74 = vrcp.pop 31.0
    %v75 = vmul.f32 %v70, %v74
    %v76 = vmul.f32 %v73, %v74
    %v77 = vrsqrt.pop %v75
    %v78 = vmul.f32 %v75, %v77
    %vm79 = vcmp.eq.f32.partialorder %v75, inf
    %v80 = vsel %vm79, %v75, %v78
    %vm81 = vcmp.eq.f32.partialorder %v75, 0.0
    %v82 = vand.u32 %v75, 2147483648
    %v83 = vsel %vm81, %v82, %v80
    %v84 = vrsqrt.pop %v76
    %v85 = vmul.f32 %v76, %v84
    %vm86 = vcmp.eq.f32.partialorder %v76, inf
    %v87 = vsel %vm86, %v76, %v85
    %vm88 = vcmp.eq.f32.partialorder %v76, 0.0
    %v89 = vand.u32 %v76, 2147483648
    %v90 = vsel %vm88, %v89, %v87
    %v91 = vadd.f32 %v83, 1e-06
    %v92 = vadd.f32 %v90, 1e-06
    %v93 = vrcp.pop %v91
    %v94 = vrcp.pop %v92
    %v95 = vlaneseq
    %v96 = vshrl.u32 %v95, 7
    %v97 = vsub.s32 0, %v96
    %v98 = vrot.slane %v52, %v97
    %v99 = vmul.f32 %v98, %v64
    %v100 = vmul.f32 %v98, %v65
    %v101 = vmul.f32 %v99, %v93
    %v102 = vmul.f32 %v100, %v94
    %v103 = vlaneseq
    %v104 = vshrl.u32 %v103, 7
    %v105 = vsub.s32 1, %v104
    %v106 = vrot.slane %v52, %v105
    %v107 = vadd.f32 %v101, %v106
    %v108 = vadd.f32 %v102, %v106
    %v109 = vlaneseq
    %v110 = vshrl.u32 %v109, 7
    %v111 = vsub.s32 6, %v110
    %v112 = vrot.slane %v52, %v111
    %v114 = vsel %vm54, %v107, 0
    %v117 = vsel %vm54, %v108, 0
    %119 = vmatprep.subr.mxu0 0.0
    %120 = vmatpush1.msra.mxu0 %v24
    %121 = vmatprep.subr.mxu0 0.0
    %122 = vmatpush1.msra.mxu0 %v25
    %123 = vmatprep.subr.mxu0 0.0
    %124 = vmatpush1.msra.mxu0 %v26
    %125 = vmatprep.subr.mxu0 0.0
    %126 = vmatpush1.msra.mxu0 %v27
    %127 = vmatprep.subr.mxu0 0.0
    %128 = vmatpush1.msra.mxu0 0.0
    %129 = vmatprep.subr.mxu0 0.0
    %130 = vmatpush1.msra.mxu0 0.0
    %131 = vmatprep.subr.mxu0 0.0
    %132 = vmatpush1.msra.mxu0 0.0
    %133 = vmatprep.subr.mxu0 0.0
    %134 = vmatpush1.msra.mxu0 0.0
    %135 = vmatprep.subr.mxu0 0.0
    %136 = vmatpush1.msra.mxu0 0.0
    %137 = vmatprep.subr.mxu0 0.0
    %138 = vmatpush1.msra.mxu0 0.0
    %139 = vmatprep.subr.mxu0 0.0
    %140 = vmatpush1.msra.mxu0 0.0
    %141 = vmatprep.subr.mxu0 0.0
    %142 = vmatpush1.msra.mxu0 0.0
    %143 = vmatprep.subr.mxu0 0.0
    %144 = vmatpush1.msra.mxu0 0.0
    %145 = vmatprep.subr.mxu0 0.0
    %146 = vmatpush1.msra.mxu0 0.0
    %147 = vmatprep.subr.mxu0 0.0
    %148 = vmatpush1.msra.mxu0 0.0
    %149 = vmatprep.subr.mxu0 0.0
    %150 = vmatpush1.msra.mxu0 0.0
    %151 = vmatprep.subr.mxu0 0.0
    %152 = vmatpush1.msra.mxu0 0.0
    %153 = vmatprep.subr.mxu0 0.0
    %154 = vmatpush1.msra.mxu0 0.0
    %155 = vmatprep.subr.mxu0 0.0
    %156 = vmatpush1.msra.mxu0 0.0
    %157 = vmatprep.subr.mxu0 0.0
    %158 = vmatpush1.msra.mxu0 0.0
    %159 = vmatprep.subr.mxu0 0.0
    %160 = vmatpush1.msra.mxu0 0.0
    %161 = vmatprep.subr.mxu0 0.0
    %162 = vmatpush1.msra.mxu0 0.0
    %163 = vmatprep.subr.mxu0 0.0
    %164 = vmatpush1.msra.mxu0 0.0
    %165 = vmatprep.subr.mxu0 0.0
    %166 = vmatpush1.msra.mxu0 0.0
    %167 = vmatprep.subr.mxu0 0.0
    %168 = vmatpush1.msra.mxu0 0.0
    %169 = vmatprep.subr.mxu0 0.0
    %170 = vmatpush1.msra.mxu0 0.0
    %171 = vmatprep.subr.mxu0 0.0
    %172 = vmatpush1.msra.mxu0 0.0
    %173 = vmatprep.subr.mxu0 0.0
    %174 = vmatpush1.msra.mxu0 0.0
    %175 = vmatprep.subr.mxu0 0.0
    %176 = vmatpush1.msra.mxu0 0.0
    %177 = vmatprep.subr.mxu0 0.0
    %178 = vmatpush1.msra.mxu0 0.0
    %179 = vmatprep.subr.mxu0 0.0
    %180 = vmatpush1.msra.mxu0 0.0
    %181 = vmatprep.subr.mxu0 0.0
    %182 = vmatpush1.msra.mxu0 0.0
    %183 = vmatprep.mubr.f32.mxu0 0.0
    %184 = vmatmul.mubr.f32.gmra.mrb[0].mxu0 %v114
    %v185 = vpop.f32.mrb[0].mxu0
    %v186 = vadd.f32 %v112, %v185
    %v187 = vpop.f32.mrb[0].mxu0
    %188 = vmatprep.mubr.f32.mxu0 0.0
    %189 = vmatmul.mubr.f32.gmra.mrb[0].mxu0 %v117
    %v190 = vpop.f32.mrb[0].mxu0
    %v191 = vadd.f32 %v112, %v190
    %v192 = vpop.f32.mrb[0].mxu0
    %193 = vdwg.mxu0
    %196 = vrot.lane.b32.xlu0 %v186, 120
    %v197 = vpop.permute.xlu0 %196
    %198 = vrot.lane.b32.xlu0 %v191, 120
    %v199 = vpop.permute.xlu0 %198
    %200 = vrot.lane.b32.xlu0 %v186, 112
    %v201 = vpop.permute.xlu0 %200
    %202 = vrot.lane.b32.xlu0 %v191, 112
    %v203 = vpop.permute.xlu0 %202
    %204 = vrot.lane.b32.xlu0 %v186, 104
    %v205 = vpop.permute.xlu0 %204
    %206 = vrot.lane.b32.xlu0 %v191, 104
    %v207 = vpop.permute.xlu0 %206
    %vm208 = vcmask 64512
    %v209 = vsel %vm208, %v186, 0
    %v211 = vsel %vm208, %v191, 0
    %213 = vmatprep.subr.mxu0 0.0
    %214 = vmatpush1.xpose.msra.mxu0 %v209
    %215 = vmatprep.subr.mxu0 0.0
    %216 = vmatpush1.xpose.msra.mxu0 %v211
    %217 = vmatprep.subr.mxu0 0.0
    %218 = vmatpush1.xpose.msra.mxu0 0.0
    %219 = vmatprep.subr.mxu0 0.0
    %220 = vmatpush1.xpose.msra.mxu0 0.0
    %221 = vmatprep.subr.mxu0 0.0
    %222 = vmatpush1.xpose.msra.mxu0 0.0
    %223 = vmatprep.subr.mxu0 0.0
    %224 = vmatpush1.xpose.msra.mxu0 0.0
    %225 = vmatprep.subr.mxu0 0.0
    %226 = vmatpush1.xpose.msra.mxu0 0.0
    %227 = vmatprep.subr.mxu0 0.0
    %228 = vmatpush1.xpose.msra.mxu0 0.0
    %229 = vmatprep.subr.mxu0 0.0
    %230 = vmatpush1.xpose.msra.mxu0 0.0
    %231 = vmatprep.subr.mxu0 0.0
    %232 = vmatpush1.xpose.msra.mxu0 0.0
    %233 = vmatprep.subr.mxu0 0.0
    %234 = vmatpush1.xpose.msra.mxu0 0.0
    %235 = vmatprep.subr.mxu0 0.0
    %236 = vmatpush1.xpose.msra.mxu0 0.0
    %237 = vmatprep.subr.mxu0 0.0
    %238 = vmatpush1.xpose.msra.mxu0 0.0
    %239 = vmatprep.subr.mxu0 0.0
    %240 = vmatpush1.xpose.msra.mxu0 0.0
    %241 = vmatprep.subr.mxu0 0.0
    %242 = vmatpush1.xpose.msra.mxu0 0.0
    %243 = vmatprep.subr.mxu0 0.0
    %244 = vmatpush1.xpose.msra.mxu0 0.0
    %245 = vmatprep.subr.mxu0 0.0
    %246 = vmatpush1.xpose.msra.mxu0 0.0
    %247 = vmatprep.subr.mxu0 0.0
    %248 = vmatpush1.xpose.msra.mxu0 0.0
    %249 = vmatprep.subr.mxu0 0.0
    %250 = vmatpush1.xpose.msra.mxu0 0.0
    %251 = vmatprep.subr.mxu0 0.0
    %252 = vmatpush1.xpose.msra.mxu0 0.0
    %253 = vmatprep.subr.mxu0 0.0
    %254 = vmatpush1.xpose.msra.mxu0 0.0
    %255 = vmatprep.subr.mxu0 0.0
    %256 = vmatpush1.xpose.msra.mxu0 0.0
    %257 = vmatprep.subr.mxu0 0.0
    %258 = vmatpush1.xpose.msra.mxu0 0.0
    %259 = vmatprep.subr.mxu0 0.0
    %260 = vmatpush1.xpose.msra.mxu0 0.0
    %261 = vmatprep.subr.mxu0 0.0
    %262 = vmatpush1.xpose.msra.mxu0 0.0
    %263 = vmatprep.subr.mxu0 0.0
    %264 = vmatpush1.xpose.msra.mxu0 0.0
    %265 = vmatprep.subr.mxu0 0.0
    %266 = vmatpush1.xpose.msra.mxu0 0.0
    %267 = vmatprep.subr.mxu0 0.0
    %268 = vmatpush1.xpose.msra.mxu0 0.0
    %269 = vmatprep.subr.mxu0 0.0
    %270 = vmatpush1.xpose.msra.mxu0 0.0
    %271 = vmatprep.subr.mxu0 0.0
    %272 = vmatpush1.xpose.msra.mxu0 0.0
    %273 = vmatprep.subr.mxu0 0.0
    %274 = vmatpush1.xpose.msra.mxu0 0.0
    %275 = vmatprep.subr.mxu0 0.0
    %276 = vmatpush1.xpose.msra.mxu0 0.0
    %277 = vmatprep.mubr.f32.mxu0 0.0
    %278 = vmatmul.mubr.f32.gmra.mrb[0].mxu0 %v209
    %v279 = vpop.f32.mrb[0].mxu0
    %v280 = vadd.f32 0.0, %v279
    %v281 = vpop.f32.mrb[0].mxu0
    %282 = vmatprep.mubr.f32.mxu0 0.0
    %283 = vmatmul.mubr.f32.gmra.mrb[0].mxu0 %v211
    %v284 = vpop.f32.mrb[0].mxu0
    %v285 = vadd.f32 0.0, %v284
    %v286 = vpop.f32.mrb[0].mxu0
    %287 = vdwg.mxu0
    %v288 = vsel %vm208, %v197, 0
    %v290 = vsel %vm208, %v199, 0
    %292 = vmatprep.subr.mxu0 0.0
    %293 = vmatpush1.xpose.msra.mxu0 %v288
    %294 = vmatprep.subr.mxu0 0.0
    %295 = vmatpush1.xpose.msra.mxu0 %v290
    %296 = vmatprep.subr.mxu0 0.0
    %297 = vmatpush1.xpose.msra.mxu0 0.0
    %298 = vmatprep.subr.mxu0 0.0
    %299 = vmatpush1.xpose.msra.mxu0 0.0
    %300 = vmatprep.subr.mxu0 0.0
    %301 = vmatpush1.xpose.msra.mxu0 0.0
    %302 = vmatprep.subr.mxu0 0.0
    %303 = vmatpush1.xpose.msra.mxu0 0.0
    %304 = vmatprep.subr.mxu0 0.0
    %305 = vmatpush1.xpose.msra.mxu0 0.0
    %306 = vmatprep.subr.mxu0 0.0
    %307 = vmatpush1.xpose.msra.mxu0 0.0
    %308 = vmatprep.subr.mxu0 0.0
    %309 = vmatpush1.xpose.msra.mxu0 0.0
    %310 = vmatprep.subr.mxu0 0.0
    %311 = vmatpush1.xpose.msra.mxu0 0.0
    %312 = vmatprep.subr.mxu0 0.0
    %313 = vmatpush1.xpose.msra.mxu0 0.0
    %314 = vmatprep.subr.mxu0 0.0
    %315 = vmatpush1.xpose.msra.mxu0 0.0
    %316 = vmatprep.subr.mxu0 0.0
    %317 = vmatpush1.xpose.msra.mxu0 0.0
    %318 = vmatprep.subr.mxu0 0.0
    %319 = vmatpush1.xpose.msra.mxu0 0.0
    %320 = vmatprep.subr.mxu0 0.0
    %321 = vmatpush1.xpose.msra.mxu0 0.0
    %322 = vmatprep.subr.mxu0 0.0
    %323 = vmatpush1.xpose.msra.mxu0 0.0
    %324 = vmatprep.subr.mxu0 0.0
    %325 = vmatpush1.xpose.msra.mxu0 0.0
    %326 = vmatprep.subr.mxu0 0.0
    %327 = vmatpush1.xpose.msra.mxu0 0.0
    %328 = vmatprep.subr.mxu0 0.0
    %329 = vmatpush1.xpose.msra.mxu0 0.0
    %330 = vmatprep.subr.mxu0 0.0
    %331 = vmatpush1.xpose.msra.mxu0 0.0
    %332 = vmatprep.subr.mxu0 0.0
    %333 = vmatpush1.xpose.msra.mxu0 0.0
    %334 = vmatprep.subr.mxu0 0.0
    %335 = vmatpush1.xpose.msra.mxu0 0.0
    %336 = vmatprep.subr.mxu0 0.0
    %337 = vmatpush1.xpose.msra.mxu0 0.0
    %338 = vmatprep.subr.mxu0 0.0
    %339 = vmatpush1.xpose.msra.mxu0 0.0
    %340 = vmatprep.subr.mxu0 0.0
    %341 = vmatpush1.xpose.msra.mxu0 0.0
    %342 = vmatprep.subr.mxu0 0.0
    %343 = vmatpush1.xpose.msra.mxu0 0.0
    %344 = vmatprep.subr.mxu0 0.0
    %345 = vmatpush1.xpose.msra.mxu0 0.0
    %346 = vmatprep.subr.mxu0 0.0
    %347 = vmatpush1.xpose.msra.mxu0 0.0
    %348 = vmatprep.subr.mxu0 0.0
    %349 = vmatpush1.xpose.msra.mxu0 0.0
    %350 = vmatprep.subr.mxu0 0.0
    %351 = vmatpush1.xpose.msra.mxu0 0.0
    %352 = vmatprep.subr.mxu0 0.0
    %353 = vmatpush1.xpose.msra.mxu0 0.0
    %354 = vmatprep.subr.mxu0 0.0
    %355 = vmatpush1.xpose.msra.mxu0 0.0
    %356 = vmatprep.mubr.f32.mxu0 0.0
    %357 = vmatmul.mubr.f32.gmra.mrb[0].mxu0 %v288
    %v358 = vpop.f32.mrb[0].mxu0
    %v359 = vadd.f32 0.0, %v358
    %v360 = vpop.f32.mrb[0].mxu0
    %361 = vmatprep.mubr.f32.mxu0 0.0
    %362 = vmatmul.mubr.f32.gmra.mrb[0].mxu0 %v290
    %v363 = vpop.f32.mrb[0].mxu0
    %v364 = vadd.f32 0.0, %v363
    %v365 = vpop.f32.mrb[0].mxu0
    %366 = vdwg.mxu0
    %v367 = vsel %vm208, %v201, 0
    %v369 = vsel %vm208, %v203, 0
    %371 = vmatprep.subr.mxu0 0.0
    %372 = vmatpush1.xpose.msra.mxu0 %v367
    %373 = vmatprep.subr.mxu0 0.0
    %374 = vmatpush1.xpose.msra.mxu0 %v369
    %375 = vmatprep.subr.mxu0 0.0
    %376 = vmatpush1.xpose.msra.mxu0 0.0
    %377 = vmatprep.subr.mxu0 0.0
    %378 = vmatpush1.xpose.msra.mxu0 0.0
    %379 = vmatprep.subr.mxu0 0.0
    %380 = vmatpush1.xpose.msra.mxu0 0.0
    %381 = vmatprep.subr.mxu0 0.0
    %382 = vmatpush1.xpose.msra.mxu0 0.0
    %383 = vmatprep.subr.mxu0 0.0
    %384 = vmatpush1.xpose.msra.mxu0 0.0
    %385 = vmatprep.subr.mxu0 0.0
    %386 = vmatpush1.xpose.msra.mxu0 0.0
    %387 = vmatprep.subr.mxu0 0.0
    %388 = vmatpush1.xpose.msra.mxu0 0.0
    %389 = vmatprep.subr.mxu0 0.0
    %390 = vmatpush1.xpose.msra.mxu0 0.0
    %391 = vmatprep.subr.mxu0 0.0
    %392 = vmatpush1.xpose.msra.mxu0 0.0
    %393 = vmatprep.subr.mxu0 0.0
    %394 = vmatpush1.xpose.msra.mxu0 0.0
    %395 = vmatprep.subr.mxu0 0.0
    %396 = vmatpush1.xpose.msra.mxu0 0.0
    %397 = vmatprep.subr.mxu0 0.0
    %398 = vmatpush1.xpose.msra.mxu0 0.0
    %399 = vmatprep.subr.mxu0 0.0
    %400 = vmatpush1.xpose.msra.mxu0 0.0
    %401 = vmatprep.subr.mxu0 0.0
    %402 = vmatpush1.xpose.msra.mxu0 0.0
    %403 = vmatprep.subr.mxu0 0.0
    %404 = vmatpush1.xpose.msra.mxu0 0.0
    %405 = vmatprep.subr.mxu0 0.0
    %406 = vmatpush1.xpose.msra.mxu0 0.0
    %407 = vmatprep.subr.mxu0 0.0
    %408 = vmatpush1.xpose.msra.mxu0 0.0
    %409 = vmatprep.subr.mxu0 0.0
    %410 = vmatpush1.xpose.msra.mxu0 0.0
    %411 = vmatprep.subr.mxu0 0.0
    %412 = vmatpush1.xpose.msra.mxu0 0.0
    %413 = vmatprep.subr.mxu0 0.0
    %414 = vmatpush1.xpose.msra.mxu0 0.0
    %415 = vmatprep.subr.mxu0 0.0
    %416 = vmatpush1.xpose.msra.mxu0 0.0
    %417 = vmatprep.subr.mxu0 0.0
    %418 = vmatpush1.xpose.msra.mxu0 0.0
    %419 = vmatprep.subr.mxu0 0.0
    %420 = vmatpush1.xpose.msra.mxu0 0.0
    %421 = vmatprep.subr.mxu0 0.0
    %422 = vmatpush1.xpose.msra.mxu0 0.0
    %423 = vmatprep.subr.mxu0 0.0
    %424 = vmatpush1.xpose.msra.mxu0 0.0
    %425 = vmatprep.subr.mxu0 0.0
    %426 = vmatpush1.xpose.msra.mxu0 0.0
    %427 = vmatprep.subr.mxu0 0.0
    %428 = vmatpush1.xpose.msra.mxu0 0.0
    %429 = vmatprep.subr.mxu0 0.0
    %430 = vmatpush1.xpose.msra.mxu0 0.0
    %431 = vmatprep.subr.mxu0 0.0
    %432 = vmatpush1.xpose.msra.mxu0 0.0
    %433 = vmatprep.subr.mxu0 0.0
    %434 = vmatpush1.xpose.msra.mxu0 0.0
    %435 = vmatprep.mubr.f32.mxu0 0.0
    %436 = vmatmul.mubr.f32.gmra.mrb[0].mxu0 %v367
    %v437 = vpop.f32.mrb[0].mxu0
    %v438 = vadd.f32 0.0, %v437
    %v439 = vpop.f32.mrb[0].mxu0
    %440 = vmatprep.mubr.f32.mxu0 0.0
    %441 = vmatmul.mubr.f32.gmra.mrb[0].mxu0 %v369
    %v442 = vpop.f32.mrb[0].mxu0
    %v443 = vadd.f32 0.0, %v442
    %v444 = vpop.f32.mrb[0].mxu0
    %445 = vdwg.mxu0
    %v446 = vsel %vm208, %v205, 0
    %v448 = vsel %vm208, %v207, 0
    %450 = vmatprep.subr.mxu0 0.0
    %451 = vmatpush1.xpose.msra.mxu0 %v446
    %452 = vmatprep.subr.mxu0 0.0
    %453 = vmatpush1.xpose.msra.mxu0 %v448
    %454 = vmatprep.subr.mxu0 0.0
    %455 = vmatpush1.xpose.msra.mxu0 0.0
    %456 = vmatprep.subr.mxu0 0.0
    %457 = vmatpush1.xpose.msra.mxu0 0.0
    %458 = vmatprep.subr.mxu0 0.0
    %459 = vmatpush1.xpose.msra.mxu0 0.0
    %460 = vmatprep.subr.mxu0 0.0
    %461 = vmatpush1.xpose.msra.mxu0 0.0
    %462 = vmatprep.subr.mxu0 0.0
    %463 = vmatpush1.xpose.msra.mxu0 0.0
    %464 = vmatprep.subr.mxu0 0.0
    %465 = vmatpush1.xpose.msra.mxu0 0.0
    %466 = vmatprep.subr.mxu0 0.0
    %467 = vmatpush1.xpose.msra.mxu0 0.0
    %468 = vmatprep.subr.mxu0 0.0
    %469 = vmatpush1.xpose.msra.mxu0 0.0
    %470 = vmatprep.subr.mxu0 0.0
    %471 = vmatpush1.xpose.msra.mxu0 0.0
    %472 = vmatprep.subr.mxu0 0.0
    %473 = vmatpush1.xpose.msra.mxu0 0.0
    %474 = vmatprep.subr.mxu0 0.0
    %475 = vmatpush1.xpose.msra.mxu0 0.0
    %476 = vmatprep.subr.mxu0 0.0
    %477 = vmatpush1.xpose.msra.mxu0 0.0
    %478 = vmatprep.subr.mxu0 0.0
    %479 = vmatpush1.xpose.msra.mxu0 0.0
    %480 = vmatprep.subr.mxu0 0.0
    %481 = vmatpush1.xpose.msra.mxu0 0.0
    %482 = vmatprep.subr.mxu0 0.0
    %483 = vmatpush1.xpose.msra.mxu0 0.0
    %484 = vmatprep.subr.mxu0 0.0
    %485 = vmatpush1.xpose.msra.mxu0 0.0
    %486 = vmatprep.subr.mxu0 0.0
    %487 = vmatpush1.xpose.msra.mxu0 0.0
    %488 = vmatprep.subr.mxu0 0.0
    %489 = vmatpush1.xpose.msra.mxu0 0.0
    %490 = vmatprep.subr.mxu0 0.0
    %491 = vmatpush1.xpose.msra.mxu0 0.0
    %492 = vmatprep.subr.mxu0 0.0
    %493 = vmatpush1.xpose.msra.mxu0 0.0
    %494 = vmatprep.subr.mxu0 0.0
    %495 = vmatpush1.xpose.msra.mxu0 0.0
    %496 = vmatprep.subr.mxu0 0.0
    %497 = vmatpush1.xpose.msra.mxu0 0.0
    %498 = vmatprep.subr.mxu0 0.0
    %499 = vmatpush1.xpose.msra.mxu0 0.0
    %500 = vmatprep.subr.mxu0 0.0
    %501 = vmatpush1.xpose.msra.mxu0 0.0
    %502 = vmatprep.subr.mxu0 0.0
    %503 = vmatpush1.xpose.msra.mxu0 0.0
    %504 = vmatprep.subr.mxu0 0.0
    %505 = vmatpush1.xpose.msra.mxu0 0.0
    %506 = vmatprep.subr.mxu0 0.0
    %507 = vmatpush1.xpose.msra.mxu0 0.0
    %508 = vmatprep.subr.mxu0 0.0
    %509 = vmatpush1.xpose.msra.mxu0 0.0
    %510 = vmatprep.subr.mxu0 0.0
    %511 = vmatpush1.xpose.msra.mxu0 0.0
    %512 = vmatprep.subr.mxu0 0.0
    %513 = vmatpush1.xpose.msra.mxu0 0.0
    %514 = vmatprep.mubr.f32.mxu0 0.0
    %515 = vmatmul.mubr.f32.gmra.mrb[0].mxu0 %v446
    %v516 = vpop.f32.mrb[0].mxu0
    %v517 = vadd.f32 0.0, %v516
    %v518 = vpop.f32.mrb[0].mxu0
    %519 = vmatprep.mubr.f32.mxu0 0.0
    %520 = vmatmul.mubr.f32.gmra.mrb[0].mxu0 %v448
    %v521 = vpop.f32.mrb[0].mxu0
    %v522 = vadd.f32 0.0, %v521
    %v523 = vpop.f32.mrb[0].mxu0
    %524 = vdwg.mxu0
    %v525 = vmul.f32 %v280, 0.35355338
    %v526 = vmul.f32 %v285, 0.35355338
    %v527 = vmul.f32 %v359, 0.35355338
    %v528 = vmul.f32 %v364, 0.35355338
    %v529 = vmul.f32 %v438, 0.35355338
    %v530 = vmul.f32 %v443, 0.35355338
    %v531 = vmul.f32 %v517, 0.35355338
    %v532 = vmul.f32 %v522, 0.35355338
    %v533 = vadd.f32 %v525, %v20
    %v534 = vadd.f32 %v526, %v21
    %v535 = vadd.f32 %v527, %v20
    %v536 = vadd.f32 %v528, %v21
    %v537 = vadd.f32 %v529, %v20
    %v538 = vadd.f32 %v530, %v21
    %v539 = vadd.f32 %v531, %v20
    %v540 = vadd.f32 %v532, %v21
    %vm541 = vcmask 130048
    %v542 = vsel %vm541, %v533, -inf
    %543 = vmax.xlane.f32.xlu0 %v542
    %v544 = vpop.xlane.xlu0 %543
    %v545 = vsel %vm541, %v534, -inf
    %546 = vmax.xlane.f32.xlu0 %v545
    %v547 = vpop.xlane.xlu0 %546
    %v548 = vsel %vm541, %v535, -inf
    %549 = vmax.xlane.f32.xlu0 %v548
    %v550 = vpop.xlane.xlu0 %549
    %v551 = vsel %vm541, %v536, -inf
    %552 = vmax.xlane.f32.xlu0 %v551
    %v553 = vpop.xlane.xlu0 %552
    %v554 = vsel %vm541, %v537, -inf
    %555 = vmax.xlane.f32.xlu0 %v554
    %v556 = vpop.xlane.xlu0 %555
    %v557 = vsel %vm541, %v538, -inf
    %558 = vmax.xlane.f32.xlu0 %v557
    %v559 = vpop.xlane.xlu0 %558
    %v560 = vsel %vm541, %v539, -inf
    %561 = vmax.xlane.f32.xlu0 %v560
    %v562 = vpop.xlane.xlu0 %561
    %v563 = vsel %vm541, %v540, -inf
    %564 = vmax.xlane.f32.xlu0 %v563
    %v565 = vpop.xlane.xlu0 %564
    %v566 = vsub.f32 %v533, %v544
    %v567 = vsub.f32 %v534, %v547
    %v568 = vsub.f32 %v535, %v550
    %v569 = vsub.f32 %v536, %v553
    %v570 = vsub.f32 %v537, %v556
    %v571 = vsub.f32 %v538, %v559
    %v572 = vsub.f32 %v539, %v562
    %v573 = vsub.f32 %v540, %v565
    %v574 = vmul.f32 %v566, 1.442695
    %v575 = vpow.pop %v574
    %v576 = vmul.f32 %v567, 1.442695
    %v577 = vpow.pop %v576
    %v578 = vmul.f32 %v568, 1.442695
    %v579 = vpow.pop %v578
    %v580 = vmul.f32 %v569, 1.442695
    %v581 = vpow.pop %v580
    %v582 = vmul.f32 %v570, 1.442695
    %v583 = vpow.pop %v582
    %v584 = vmul.f32 %v571, 1.442695
    %v585 = vpow.pop %v584
    %v586 = vmul.f32 %v572, 1.442695
    %v587 = vpow.pop %v586
    %v588 = vmul.f32 %v573, 1.442695
    %v589 = vpow.pop %v588
    %v590 = vsel %vm541, %v575, 0.0
    %591 = vadd.xlane.f32.xlu0 %v590
    %v592 = vpop.xlane.xlu0 %591
    %v593 = vsel %vm541, %v577, 0.0
    %594 = vadd.xlane.f32.xlu0 %v593
    %v595 = vpop.xlane.xlu0 %594
    %v596 = vsel %vm541, %v579, 0.0
    %597 = vadd.xlane.f32.xlu0 %v596
    %v598 = vpop.xlane.xlu0 %597
    %v599 = vsel %vm541, %v581, 0.0
    %600 = vadd.xlane.f32.xlu0 %v599
    %v601 = vpop.xlane.xlu0 %600
    %v602 = vsel %vm541, %v583, 0.0
    %603 = vadd.xlane.f32.xlu0 %v602
    %v604 = vpop.xlane.xlu0 %603
    %v605 = vsel %vm541, %v585, 0.0
    %606 = vadd.xlane.f32.xlu0 %v605
    %v607 = vpop.xlane.xlu0 %606
    %v608 = vsel %vm541, %v587, 0.0
    %609 = vadd.xlane.f32.xlu0 %v608
    %v610 = vpop.xlane.xlu0 %609
    %v611 = vsel %vm541, %v589, 0.0
    %612 = vadd.xlane.f32.xlu0 %v611
    %v613 = vpop.xlane.xlu0 %612
    %v614 = vrcp.pop %v592
    %v615 = vrcp.pop %v595
    %v616 = vrcp.pop %v598
    %v617 = vrcp.pop %v601
    %v618 = vrcp.pop %v604
    %v619 = vrcp.pop %v607
    %v620 = vrcp.pop %v610
    %v621 = vrcp.pop %v613
    %v622 = vmul.f32 %v575, %v614
    %v623 = vmul.f32 %v577, %v615
    %v624 = vmul.f32 %v579, %v616
    %v625 = vmul.f32 %v581, %v617
    %v626 = vmul.f32 %v583, %v618
    %v627 = vmul.f32 %v585, %v619
    %v628 = vmul.f32 %v587, %v620
    %v629 = vmul.f32 %v589, %v621
    %630 = vrot.lane.b32.xlu0 %v186, 96
    %v631 = vpop.permute.xlu0 %630
    %632 = vrot.lane.b32.xlu0 %v191, 96
    %v633 = vpop.permute.xlu0 %632
    %v637 = vsel %vm541, %v622, 0
    %v640 = vsel %vm541, %v623, 0
    %642 = vmatprep.subr.mxu0 0.0
    %643 = vmatpush1.msra.mxu0 %v631
    %644 = vmatprep.subr.mxu0 0.0
    %645 = vmatpush1.msra.mxu0 %v633
    %646 = vmatprep.subr.mxu0 0.0
    %647 = vmatpush1.msra.mxu0 0.0
    %648 = vmatprep.subr.mxu0 0.0
    %649 = vmatpush1.msra.mxu0 0.0
    %650 = vmatprep.subr.mxu0 0.0
    %651 = vmatpush1.msra.mxu0 0.0
    %652 = vmatprep.subr.mxu0 0.0
    %653 = vmatpush1.msra.mxu0 0.0
    %654 = vmatprep.subr.mxu0 0.0
    %655 = vmatpush1.msra.mxu0 0.0
    %656 = vmatprep.subr.mxu0 0.0
    %657 = vmatpush1.msra.mxu0 0.0
    %658 = vmatprep.subr.mxu0 0.0
    %659 = vmatpush1.msra.mxu0 0.0
    %660 = vmatprep.subr.mxu0 0.0
    %661 = vmatpush1.msra.mxu0 0.0
    %662 = vmatprep.subr.mxu0 0.0
    %663 = vmatpush1.msra.mxu0 0.0
    %664 = vmatprep.subr.mxu0 0.0
    %665 = vmatpush1.msra.mxu0 0.0
    %666 = vmatprep.subr.mxu0 0.0
    %667 = vmatpush1.msra.mxu0 0.0
    %668 = vmatprep.subr.mxu0 0.0
    %669 = vmatpush1.msra.mxu0 0.0
    %670 = vmatprep.subr.mxu0 0.0
    %671 = vmatpush1.msra.mxu0 0.0
    %672 = vmatprep.subr.mxu0 0.0
    %673 = vmatpush1.msra.mxu0 0.0
    %674 = vmatprep.subr.mxu0 0.0
    %675 = vmatpush1.msra.mxu0 0.0
    %676 = vmatprep.subr.mxu0 0.0
    %677 = vmatpush1.msra.mxu0 0.0
    %678 = vmatprep.subr.mxu0 0.0
    %679 = vmatpush1.msra.mxu0 0.0
    %680 = vmatprep.subr.mxu0 0.0
    %681 = vmatpush1.msra.mxu0 0.0
    %682 = vmatprep.subr.mxu0 0.0
    %683 = vmatpush1.msra.mxu0 0.0
    %684 = vmatprep.subr.mxu0 0.0
    %685 = vmatpush1.msra.mxu0 0.0
    %686 = vmatprep.subr.mxu0 0.0
    %687 = vmatpush1.msra.mxu0 0.0
    %688 = vmatprep.subr.mxu0 0.0
    %689 = vmatpush1.msra.mxu0 0.0
    %690 = vmatprep.subr.mxu0 0.0
    %691 = vmatpush1.msra.mxu0 0.0
    %692 = vmatprep.subr.mxu0 0.0
    %693 = vmatpush1.msra.mxu0 0.0
    %694 = vmatprep.subr.mxu0 0.0
    %695 = vmatpush1.msra.mxu0 0.0
    %696 = vmatprep.subr.mxu0 0.0
    %697 = vmatpush1.msra.mxu0 0.0
    %698 = vmatprep.subr.mxu0 0.0
    %699 = vmatpush1.msra.mxu0 0.0
    %700 = vmatprep.subr.mxu0 0.0
    %701 = vmatpush1.msra.mxu0 0.0
    %702 = vmatprep.subr.mxu0 0.0
    %703 = vmatpush1.msra.mxu0 0.0
    %704 = vmatprep.subr.mxu0 0.0
    %705 = vmatpush1.msra.mxu0 0.0
    %706 = vmatprep.mubr.f32.mxu0 0.0
    %707 = vmatmul.mubr.f32.gmra.mrb[0].mxu0 %v637
    %v708 = vpop.f32.mrb[0].mxu0
    %v709 = vadd.f32 0.0, %v708
    %v710 = vpop.f32.mrb[0].mxu0
    %711 = vmatprep.mubr.f32.mxu0 0.0
    %712 = vmatmul.mubr.f32.gmra.mrb[0].mxu0 %v640
    %v713 = vpop.f32.mrb[0].mxu0
    %v714 = vadd.f32 0.0, %v713
    %v715 = vpop.f32.mrb[0].mxu0
    %716 = vdwg.mxu0
    %717 = vrot.lane.b32.xlu0 %v197, 96
    %v718 = vpop.permute.xlu0 %717
    %719 = vrot.lane.b32.xlu0 %v199, 96
    %v720 = vpop.permute.xlu0 %719
    %v724 = vsel %vm541, %v624, 0
    %v727 = vsel %vm541, %v625, 0
    %729 = vmatprep.subr.mxu0 0.0
    %730 = vmatpush1.msra.mxu0 %v718
    %731 = vmatprep.subr.mxu0 0.0
    %732 = vmatpush1.msra.mxu0 %v720
    %733 = vmatprep.subr.mxu0 0.0
    %734 = vmatpush1.msra.mxu0 0.0
    %735 = vmatprep.subr.mxu0 0.0
    %736 = vmatpush1.msra.mxu0 0.0
    %737 = vmatprep.subr.mxu0 0.0
    %738 = vmatpush1.msra.mxu0 0.0
    %739 = vmatprep.subr.mxu0 0.0
    %740 = vmatpush1.msra.mxu0 0.0
    %741 = vmatprep.subr.mxu0 0.0
    %742 = vmatpush1.msra.mxu0 0.0
    %743 = vmatprep.subr.mxu0 0.0
    %744 = vmatpush1.msra.mxu0 0.0
    %745 = vmatprep.subr.mxu0 0.0
    %746 = vmatpush1.msra.mxu0 0.0
    %747 = vmatprep.subr.mxu0 0.0
    %748 = vmatpush1.msra.mxu0 0.0
    %749 = vmatprep.subr.mxu0 0.0
    %750 = vmatpush1.msra.mxu0 0.0
    %751 = vmatprep.subr.mxu0 0.0
    %752 = vmatpush1.msra.mxu0 0.0
    %753 = vmatprep.subr.mxu0 0.0
    %754 = vmatpush1.msra.mxu0 0.0
    %755 = vmatprep.subr.mxu0 0.0
    %756 = vmatpush1.msra.mxu0 0.0
    %757 = vmatprep.subr.mxu0 0.0
    %758 = vmatpush1.msra.mxu0 0.0
    %759 = vmatprep.subr.mxu0 0.0
    %760 = vmatpush1.msra.mxu0 0.0
    %761 = vmatprep.subr.mxu0 0.0
    %762 = vmatpush1.msra.mxu0 0.0
    %763 = vmatprep.subr.mxu0 0.0
    %764 = vmatpush1.msra.mxu0 0.0
    %765 = vmatprep.subr.mxu0 0.0
    %766 = vmatpush1.msra.mxu0 0.0
    %767 = vmatprep.subr.mxu0 0.0
    %768 = vmatpush1.msra.mxu0 0.0
    %769 = vmatprep.subr.mxu0 0.0
    %770 = vmatpush1.msra.mxu0 0.0
    %771 = vmatprep.subr.mxu0 0.0
    %772 = vmatpush1.msra.mxu0 0.0
    %773 = vmatprep.subr.mxu0 0.0
    %774 = vmatpush1.msra.mxu0 0.0
    %775 = vmatprep.subr.mxu0 0.0
    %776 = vmatpush1.msra.mxu0 0.0
    %777 = vmatprep.subr.mxu0 0.0
    %778 = vmatpush1.msra.mxu0 0.0
    %779 = vmatprep.subr.mxu0 0.0
    %780 = vmatpush1.msra.mxu0 0.0
    %781 = vmatprep.subr.mxu0 0.0
    %782 = vmatpush1.msra.mxu0 0.0
    %783 = vmatprep.subr.mxu0 0.0
    %784 = vmatpush1.msra.mxu0 0.0
    %785 = vmatprep.subr.mxu0 0.0
    %786 = vmatpush1.msra.mxu0 0.0
    %787 = vmatprep.subr.mxu0 0.0
    %788 = vmatpush1.msra.mxu0 0.0
    %789 = vmatprep.subr.mxu0 0.0
    %790 = vmatpush1.msra.mxu0 0.0
    %791 = vmatprep.subr.mxu0 0.0
    %792 = vmatpush1.msra.mxu0 0.0
    %793 = vmatprep.mubr.f32.mxu0 0.0
    %794 = vmatmul.mubr.f32.gmra.mrb[0].mxu0 %v724
    %v795 = vpop.f32.mrb[0].mxu0
    %v796 = vadd.f32 0.0, %v795
    %v797 = vpop.f32.mrb[0].mxu0
    %798 = vmatprep.mubr.f32.mxu0 0.0
    %799 = vmatmul.mubr.f32.gmra.mrb[0].mxu0 %v727
    %v800 = vpop.f32.mrb[0].mxu0
    %v801 = vadd.f32 0.0, %v800
    %v802 = vpop.f32.mrb[0].mxu0
    %803 = vdwg.mxu0
    %804 = vrot.lane.b32.xlu0 %v201, 96
    %v805 = vpop.permute.xlu0 %804
    %806 = vrot.lane.b32.xlu0 %v203, 96
    %v807 = vpop.permute.xlu0 %806
    %v811 = vsel %vm541, %v626, 0
    %v814 = vsel %vm541, %v627, 0
    %816 = vmatprep.subr.mxu0 0.0
    %817 = vmatpush1.msra.mxu0 %v805
    %818 = vmatprep.subr.mxu0 0.0
    %819 = vmatpush1.msra.mxu0 %v807
    %820 = vmatprep.subr.mxu0 0.0
    %821 = vmatpush1.msra.mxu0 0.0
    %822 = vmatprep.subr.mxu0 0.0
    %823 = vmatpush1.msra.mxu0 0.0
    %824 = vmatprep.subr.mxu0 0.0
    %825 = vmatpush1.msra.mxu0 0.0
    %826 = vmatprep.subr.mxu0 0.0
    %827 = vmatpush1.msra.mxu0 0.0
    %828 = vmatprep.subr.mxu0 0.0
    %829 = vmatpush1.msra.mxu0 0.0
    %830 = vmatprep.subr.mxu0 0.0
    %831 = vmatpush1.msra.mxu0 0.0
    %832 = vmatprep.subr.mxu0 0.0
    %833 = vmatpush1.msra.mxu0 0.0
    %834 = vmatprep.subr.mxu0 0.0
    %835 = vmatpush1.msra.mxu0 0.0
    %836 = vmatprep.subr.mxu0 0.0
    %837 = vmatpush1.msra.mxu0 0.0
    %838 = vmatprep.subr.mxu0 0.0
    %839 = vmatpush1.msra.mxu0 0.0
    %840 = vmatprep.subr.mxu0 0.0
    %841 = vmatpush1.msra.mxu0 0.0
    %842 = vmatprep.subr.mxu0 0.0
    %843 = vmatpush1.msra.mxu0 0.0
    %844 = vmatprep.subr.mxu0 0.0
    %845 = vmatpush1.msra.mxu0 0.0
    %846 = vmatprep.subr.mxu0 0.0
    %847 = vmatpush1.msra.mxu0 0.0
    %848 = vmatprep.subr.mxu0 0.0
    %849 = vmatpush1.msra.mxu0 0.0
    %850 = vmatprep.subr.mxu0 0.0
    %851 = vmatpush1.msra.mxu0 0.0
    %852 = vmatprep.subr.mxu0 0.0
    %853 = vmatpush1.msra.mxu0 0.0
    %854 = vmatprep.subr.mxu0 0.0
    %855 = vmatpush1.msra.mxu0 0.0
    %856 = vmatprep.subr.mxu0 0.0
    %857 = vmatpush1.msra.mxu0 0.0
    %858 = vmatprep.subr.mxu0 0.0
    %859 = vmatpush1.msra.mxu0 0.0
    %860 = vmatprep.subr.mxu0 0.0
    %861 = vmatpush1.msra.mxu0 0.0
    %862 = vmatprep.subr.mxu0 0.0
    %863 = vmatpush1.msra.mxu0 0.0
    %864 = vmatprep.subr.mxu0 0.0
    %865 = vmatpush1.msra.mxu0 0.0
    %866 = vmatprep.subr.mxu0 0.0
    %867 = vmatpush1.msra.mxu0 0.0
    %868 = vmatprep.subr.mxu0 0.0
    %869 = vmatpush1.msra.mxu0 0.0
    %870 = vmatprep.subr.mxu0 0.0
    %871 = vmatpush1.msra.mxu0 0.0
    %872 = vmatprep.subr.mxu0 0.0
    %873 = vmatpush1.msra.mxu0 0.0
    %874 = vmatprep.subr.mxu0 0.0
    %875 = vmatpush1.msra.mxu0 0.0
    %876 = vmatprep.subr.mxu0 0.0
    %877 = vmatpush1.msra.mxu0 0.0
    %878 = vmatprep.subr.mxu0 0.0
    %879 = vmatpush1.msra.mxu0 0.0
    %880 = vmatprep.mubr.f32.mxu0 0.0
    %881 = vmatmul.mubr.f32.gmra.mrb[0].mxu0 %v811
    %v882 = vpop.f32.mrb[0].mxu0
    %v883 = vadd.f32 0.0, %v882
    %v884 = vpop.f32.mrb[0].mxu0
    %885 = vmatprep.mubr.f32.mxu0 0.0
    %886 = vmatmul.mubr.f32.gmra.mrb[0].mxu0 %v814
    %v887 = vpop.f32.mrb[0].mxu0
    %v888 = vadd.f32 0.0, %v887
    %v889 = vpop.f32.mrb[0].mxu0
    %890 = vdwg.mxu0
    %891 = vrot.lane.b32.xlu0 %v205, 96
    %v892 = vpop.permute.xlu0 %891
    %893 = vrot.lane.b32.xlu0 %v207, 96
    %v894 = vpop.permute.xlu0 %893
    %v898 = vsel %vm541, %v628, 0
    %v901 = vsel %vm541, %v629, 0
    %903 = vmatprep.subr.mxu0 0.0
    %904 = vmatpush1.msra.mxu0 %v892
    %905 = vmatprep.subr.mxu0 0.0
    %906 = vmatpush1.msra.mxu0 %v894
    %907 = vmatprep.subr.mxu0 0.0
    %908 = vmatpush1.msra.mxu0 0.0
    %909 = vmatprep.subr.mxu0 0.0
    %910 = vmatpush1.msra.mxu0 0.0
    %911 = vmatprep.subr.mxu0 0.0
    %912 = vmatpush1.msra.mxu0 0.0
    %913 = vmatprep.subr.mxu0 0.0
    %914 = vmatpush1.msra.mxu0 0.0
    %915 = vmatprep.subr.mxu0 0.0
    %916 = vmatpush1.msra.mxu0 0.0
    %917 = vmatprep.subr.mxu0 0.0
    %918 = vmatpush1.msra.mxu0 0.0
    %919 = vmatprep.subr.mxu0 0.0
    %920 = vmatpush1.msra.mxu0 0.0
    %921 = vmatprep.subr.mxu0 0.0
    %922 = vmatpush1.msra.mxu0 0.0
    %923 = vmatprep.subr.mxu0 0.0
    %924 = vmatpush1.msra.mxu0 0.0
    %925 = vmatprep.subr.mxu0 0.0
    %926 = vmatpush1.msra.mxu0 0.0
    %927 = vmatprep.subr.mxu0 0.0
    %928 = vmatpush1.msra.mxu0 0.0
    %929 = vmatprep.subr.mxu0 0.0
    %930 = vmatpush1.msra.mxu0 0.0
    %931 = vmatprep.subr.mxu0 0.0
    %932 = vmatpush1.msra.mxu0 0.0
    %933 = vmatprep.subr.mxu0 0.0
    %934 = vmatpush1.msra.mxu0 0.0
    %935 = vmatprep.subr.mxu0 0.0
    %936 = vmatpush1.msra.mxu0 0.0
    %937 = vmatprep.subr.mxu0 0.0
    %938 = vmatpush1.msra.mxu0 0.0
    %939 = vmatprep.subr.mxu0 0.0
    %940 = vmatpush1.msra.mxu0 0.0
    %941 = vmatprep.subr.mxu0 0.0
    %942 = vmatpush1.msra.mxu0 0.0
    %943 = vmatprep.subr.mxu0 0.0
    %944 = vmatpush1.msra.mxu0 0.0
    %945 = vmatprep.subr.mxu0 0.0
    %946 = vmatpush1.msra.mxu0 0.0
    %947 = vmatprep.subr.mxu0 0.0
    %948 = vmatpush1.msra.mxu0 0.0
    %949 = vmatprep.subr.mxu0 0.0
    %950 = vmatpush1.msra.mxu0 0.0
    %951 = vmatprep.subr.mxu0 0.0
    %952 = vmatpush1.msra.mxu0 0.0
    %953 = vmatprep.subr.mxu0 0.0
    %954 = vmatpush1.msra.mxu0 0.0
    %955 = vmatprep.subr.mxu0 0.0
    %956 = vmatpush1.msra.mxu0 0.0
    %957 = vmatprep.subr.mxu0 0.0
    %958 = vmatpush1.msra.mxu0 0.0
    %959 = vmatprep.subr.mxu0 0.0
    %960 = vmatpush1.msra.mxu0 0.0
    %961 = vmatprep.subr.mxu0 0.0
    %962 = vmatpush1.msra.mxu0 0.0
    %963 = vmatprep.subr.mxu0 0.0
    %964 = vmatpush1.msra.mxu0 0.0
    %965 = vmatprep.subr.mxu0 0.0
    %966 = vmatpush1.msra.mxu0 0.0
    %967 = vmatprep.mubr.f32.mxu0 0.0
    %968 = vmatmul.mubr.f32.gmra.mrb[0].mxu0 %v898
    %v969 = vpop.f32.mrb[0].mxu0
    %v970 = vadd.f32 0.0, %v969
    %v971 = vpop.f32.mrb[0].mxu0
    %972 = vmatprep.mubr.f32.mxu0 0.0
    %973 = vmatmul.mubr.f32.gmra.mrb[0].mxu0 %v901
    %v974 = vpop.f32.mrb[0].mxu0
    %v975 = vadd.f32 0.0, %v974
    %v976 = vpop.f32.mrb[0].mxu0
    %977 = vdwg.mxu0
    %v979 = vsel %vm208, %v709, 0
    %v982 = vsel %vm208, %v714, 0
    %984 = vmatprep.subr.mxu0 0.0
    %985 = vmatpush1.msra.mxu0 %v44
    %986 = vmatprep.subr.mxu0 0.0
    %987 = vmatpush1.msra.mxu0 0.0
    %988 = vmatprep.subr.mxu0 0.0
    %989 = vmatpush1.msra.mxu0 0.0
    %990 = vmatprep.subr.mxu0 0.0
    %991 = vmatpush1.msra.mxu0 0.0
    %992 = vmatprep.subr.mxu0 0.0
    %993 = vmatpush1.msra.mxu0 0.0
    %994 = vmatprep.subr.mxu0 0.0
    %995 = vmatpush1.msra.mxu0 0.0
    %996 = vmatprep.subr.mxu0 0.0
    %997 = vmatpush1.msra.mxu0 0.0
    %998 = vmatprep.subr.mxu0 0.0
    %999 = vmatpush1.msra.mxu0 0.0
    %1000 = vmatprep.subr.mxu0 0.0
    %1001 = vmatpush1.msra.mxu0 0.0
    %1002 = vmatprep.subr.mxu0 0.0
    %1003 = vmatpush1.msra.mxu0 0.0
    %1004 = vmatprep.subr.mxu0 0.0
    %1005 = vmatpush1.msra.mxu0 0.0
    %1006 = vmatprep.subr.mxu0 0.0
    %1007 = vmatpush1.msra.mxu0 0.0
    %1008 = vmatprep.subr.mxu0 0.0
    %1009 = vmatpush1.msra.mxu0 0.0
    %1010 = vmatprep.subr.mxu0 0.0
    %1011 = vmatpush1.msra.mxu0 0.0
    %1012 = vmatprep.subr.mxu0 0.0
    %1013 = vmatpush1.msra.mxu0 0.0
    %1014 = vmatprep.subr.mxu0 0.0
    %1015 = vmatpush1.msra.mxu0 0.0
    %1016 = vmatprep.subr.mxu0 0.0
    %1017 = vmatpush1.msra.mxu0 0.0
    %1018 = vmatprep.subr.mxu0 0.0
    %1019 = vmatpush1.msra.mxu0 0.0
    %1020 = vmatprep.subr.mxu0 0.0
    %1021 = vmatpush1.msra.mxu0 0.0
    %1022 = vmatprep.subr.mxu0 0.0
    %1023 = vmatpush1.msra.mxu0 0.0
    %1024 = vmatprep.subr.mxu0 0.0
    %1025 = vmatpush1.msra.mxu0 0.0
    %1026 = vmatprep.subr.mxu0 0.0
    %1027 = vmatpush1.msra.mxu0 0.0
    %1028 = vmatprep.subr.mxu0 0.0
    %1029 = vmatpush1.msra.mxu0 0.0
    %1030 = vmatprep.subr.mxu0 0.0
    %1031 = vmatpush1.msra.mxu0 0.0
    %1032 = vmatprep.subr.mxu0 0.0
    %1033 = vmatpush1.msra.mxu0 0.0
    %1034 = vmatprep.subr.mxu0 0.0
    %1035 = vmatpush1.msra.mxu0 0.0
    %1036 = vmatprep.subr.mxu0 0.0
    %1037 = vmatpush1.msra.mxu0 0.0
    %1038 = vmatprep.subr.mxu0 0.0
    %1039 = vmatpush1.msra.mxu0 0.0
    %1040 = vmatprep.subr.mxu0 0.0
    %1041 = vmatpush1.msra.mxu0 0.0
    %1042 = vmatprep.subr.mxu0 0.0
    %1043 = vmatpush1.msra.mxu0 0.0
    %1044 = vmatprep.subr.mxu0 0.0
    %1045 = vmatpush1.msra.mxu0 0.0
    %1046 = vmatprep.subr.mxu0 0.0
    %1047 = vmatpush1.msra.mxu0 0.0
    %1048 = vmatprep.mubr.f32.mxu0 0.0
    %1049 = vmatmul.mubr.f32.gmra.mrb[0].mxu0 %v979
    %v1050 = vpop.f32.mrb[0].mxu0
    %v1051 = vadd.f32 0.0, %v1050
    %v1052 = vpop.f32.mrb[0].mxu0
    %1053 = vmatprep.mubr.f32.mxu0 0.0
    %1054 = vmatmul.mubr.f32.gmra.mrb[0].mxu0 %v982
    %v1055 = vpop.f32.mrb[0].mxu0
    %v1056 = vadd.f32 0.0, %v1055
    %v1057 = vpop.f32.mrb[0].mxu0
    %1058 = vdwg.mxu0
    %v1059 = vlaneseq
    %v1060 = vshrl.u32 %v1059, 7
    %v1061 = vsub.s32 7, %v1060
    %v1062 = vrot.slane %v52, %v1061
    %v1063 = vadd.f32 %v1062, %v1051
    %v1064 = vadd.f32 %v1062, %v1056
    %v1066 = vsel %vm208, %v796, 0
    %v1069 = vsel %vm208, %v801, 0
    %1071 = vmatprep.subr.mxu0 0.0
    %1072 = vmatpush1.msra.mxu0 %v45
    %1073 = vmatprep.subr.mxu0 0.0
    %1074 = vmatpush1.msra.mxu0 0.0
    %1075 = vmatprep.subr.mxu0 0.0
    %1076 = vmatpush1.msra.mxu0 0.0
    %1077 = vmatprep.subr.mxu0 0.0
    %1078 = vmatpush1.msra.mxu0 0.0
    %1079 = vmatprep.subr.mxu0 0.0
    %1080 = vmatpush1.msra.mxu0 0.0
    %1081 = vmatprep.subr.mxu0 0.0
    %1082 = vmatpush1.msra.mxu0 0.0
    %1083 = vmatprep.subr.mxu0 0.0
    %1084 = vmatpush1.msra.mxu0 0.0
    %1085 = vmatprep.subr.mxu0 0.0
    %1086 = vmatpush1.msra.mxu0 0.0
    %1087 = vmatprep.subr.mxu0 0.0
    %1088 = vmatpush1.msra.mxu0 0.0
    %1089 = vmatprep.subr.mxu0 0.0
    %1090 = vmatpush1.msra.mxu0 0.0
    %1091 = vmatprep.subr.mxu0 0.0
    %1092 = vmatpush1.msra.mxu0 0.0
    %1093 = vmatprep.subr.mxu0 0.0
    %1094 = vmatpush1.msra.mxu0 0.0
    %1095 = vmatprep.subr.mxu0 0.0
    %1096 = vmatpush1.msra.mxu0 0.0
    %1097 = vmatprep.subr.mxu0 0.0
    %1098 = vmatpush1.msra.mxu0 0.0
    %1099 = vmatprep.subr.mxu0 0.0
    %1100 = vmatpush1.msra.mxu0 0.0
    %1101 = vmatprep.subr.mxu0 0.0
    %1102 = vmatpush1.msra.mxu0 0.0
    %1103 = vmatprep.subr.mxu0 0.0
    %1104 = vmatpush1.msra.mxu0 0.0
    %1105 = vmatprep.subr.mxu0 0.0
    %1106 = vmatpush1.msra.mxu0 0.0
    %1107 = vmatprep.subr.mxu0 0.0
    %1108 = vmatpush1.msra.mxu0 0.0
    %1109 = vmatprep.subr.mxu0 0.0
    %1110 = vmatpush1.msra.mxu0 0.0
    %1111 = vmatprep.subr.mxu0 0.0
    %1112 = vmatpush1.msra.mxu0 0.0
    %1113 = vmatprep.subr.mxu0 0.0
    %1114 = vmatpush1.msra.mxu0 0.0
    %1115 = vmatprep.subr.mxu0 0.0
    %1116 = vmatpush1.msra.mxu0 0.0
    %1117 = vmatprep.subr.mxu0 0.0
    %1118 = vmatpush1.msra.mxu0 0.0
    %1119 = vmatprep.subr.mxu0 0.0
    %1120 = vmatpush1.msra.mxu0 0.0
    %1121 = vmatprep.subr.mxu0 0.0
    %1122 = vmatpush1.msra.mxu0 0.0
    %1123 = vmatprep.subr.mxu0 0.0
    %1124 = vmatpush1.msra.mxu0 0.0
    %1125 = vmatprep.subr.mxu0 0.0
    %1126 = vmatpush1.msra.mxu0 0.0
    %1127 = vmatprep.subr.mxu0 0.0
    %1128 = vmatpush1.msra.mxu0 0.0
    %1129 = vmatprep.subr.mxu0 0.0
    %1130 = vmatpush1.msra.mxu0 0.0
    %1131 = vmatprep.subr.mxu0 0.0
    %1132 = vmatpush1.msra.mxu0 0.0
    %1133 = vmatprep.subr.mxu0 0.0
    %1134 = vmatpush1.msra.mxu0 0.0
    %1135 = vmatprep.mubr.f32.mxu0 0.0
    %1136 = vmatmul.mubr.f32.gmra.mrb[0].mxu0 %v1066
    %v1137 = vpop.f32.mrb[0].mxu0
    %v1138 = vadd.f32 0.0, %v1137
    %v1139 = vpop.f32.mrb[0].mxu0
    %1140 = vmatprep.mubr.f32.mxu0 0.0
    %1141 = vmatmul.mubr.f32.gmra.mrb[0].mxu0 %v1069
    %v1142 = vpop.f32.mrb[0].mxu0
    %v1143 = vadd.f32 0.0, %v1142
    %v1144 = vpop.f32.mrb[0].mxu0
    %1145 = vdwg.mxu0
    %v1146 = vadd.f32 %v1063, %v1138
    %v1147 = vadd.f32 %v1064, %v1143
    %v1149 = vsel %vm208, %v883, 0
    %v1152 = vsel %vm208, %v888, 0
    %1154 = vmatprep.subr.mxu0 0.0
    %1155 = vmatpush1.msra.mxu0 %v46
    %1156 = vmatprep.subr.mxu0 0.0
    %1157 = vmatpush1.msra.mxu0 0.0
    %1158 = vmatprep.subr.mxu0 0.0
    %1159 = vmatpush1.msra.mxu0 0.0
    %1160 = vmatprep.subr.mxu0 0.0
    %1161 = vmatpush1.msra.mxu0 0.0
    %1162 = vmatprep.subr.mxu0 0.0
    %1163 = vmatpush1.msra.mxu0 0.0
    %1164 = vmatprep.subr.mxu0 0.0
    %1165 = vmatpush1.msra.mxu0 0.0
    %1166 = vmatprep.subr.mxu0 0.0
    %1167 = vmatpush1.msra.mxu0 0.0
    %1168 = vmatprep.subr.mxu0 0.0
    %1169 = vmatpush1.msra.mxu0 0.0
    %1170 = vmatprep.subr.mxu0 0.0
    %1171 = vmatpush1.msra.mxu0 0.0
    %1172 = vmatprep.subr.mxu0 0.0
    %1173 = vmatpush1.msra.mxu0 0.0
    %1174 = vmatprep.subr.mxu0 0.0
    %1175 = vmatpush1.msra.mxu0 0.0
    %1176 = vmatprep.subr.mxu0 0.0
    %1177 = vmatpush1.msra.mxu0 0.0
    %1178 = vmatprep.subr.mxu0 0.0
    %1179 = vmatpush1.msra.mxu0 0.0
    %1180 = vmatprep.subr.mxu0 0.0
    %1181 = vmatpush1.msra.mxu0 0.0
    %1182 = vmatprep.subr.mxu0 0.0
    %1183 = vmatpush1.msra.mxu0 0.0
    %1184 = vmatprep.subr.mxu0 0.0
    %1185 = vmatpush1.msra.mxu0 0.0
    %1186 = vmatprep.subr.mxu0 0.0
    %1187 = vmatpush1.msra.mxu0 0.0
    %1188 = vmatprep.subr.mxu0 0.0
    %1189 = vmatpush1.msra.mxu0 0.0
    %1190 = vmatprep.subr.mxu0 0.0
    %1191 = vmatpush1.msra.mxu0 0.0
    %1192 = vmatprep.subr.mxu0 0.0
    %1193 = vmatpush1.msra.mxu0 0.0
    %1194 = vmatprep.subr.mxu0 0.0
    %1195 = vmatpush1.msra.mxu0 0.0
    %1196 = vmatprep.subr.mxu0 0.0
    %1197 = vmatpush1.msra.mxu0 0.0
    %1198 = vmatprep.subr.mxu0 0.0
    %1199 = vmatpush1.msra.mxu0 0.0
    %1200 = vmatprep.subr.mxu0 0.0
    %1201 = vmatpush1.msra.mxu0 0.0
    %1202 = vmatprep.subr.mxu0 0.0
    %1203 = vmatpush1.msra.mxu0 0.0
    %1204 = vmatprep.subr.mxu0 0.0
    %1205 = vmatpush1.msra.mxu0 0.0
    %1206 = vmatprep.subr.mxu0 0.0
    %1207 = vmatpush1.msra.mxu0 0.0
    %1208 = vmatprep.subr.mxu0 0.0
    %1209 = vmatpush1.msra.mxu0 0.0
    %1210 = vmatprep.subr.mxu0 0.0
    %1211 = vmatpush1.msra.mxu0 0.0
    %1212 = vmatprep.subr.mxu0 0.0
    %1213 = vmatpush1.msra.mxu0 0.0
    %1214 = vmatprep.subr.mxu0 0.0
    %1215 = vmatpush1.msra.mxu0 0.0
    %1216 = vmatprep.subr.mxu0 0.0
    %1217 = vmatpush1.msra.mxu0 0.0
    %1218 = vmatprep.mubr.f32.mxu0 0.0
    %1219 = vmatmul.mubr.f32.gmra.mrb[0].mxu0 %v1149
    %v1220 = vpop.f32.mrb[0].mxu0
    %v1221 = vadd.f32 0.0, %v1220
    %v1222 = vpop.f32.mrb[0].mxu0
    %1223 = vmatprep.mubr.f32.mxu0 0.0
    %1224 = vmatmul.mubr.f32.gmra.mrb[0].mxu0 %v1152
    %v1225 = vpop.f32.mrb[0].mxu0
    %v1226 = vadd.f32 0.0, %v1225
    %v1227 = vpop.f32.mrb[0].mxu0
    %1228 = vdwg.mxu0
    %v1229 = vadd.f32 %v1146, %v1221
    %v1230 = vadd.f32 %v1147, %v1226
    %v1232 = vsel %vm208, %v970, 0
    %v1235 = vsel %vm208, %v975, 0
    %1237 = vmatprep.subr.mxu0 0.0
    %1238 = vmatpush1.msra.mxu0 %v47
    %1239 = vmatprep.subr.mxu0 0.0
    %1240 = vmatpush1.msra.mxu0 0.0
    %1241 = vmatprep.subr.mxu0 0.0
    %1242 = vmatpush1.msra.mxu0 0.0
    %1243 = vmatprep.subr.mxu0 0.0
    %1244 = vmatpush1.msra.mxu0 0.0
    %1245 = vmatprep.subr.mxu0 0.0
    %1246 = vmatpush1.msra.mxu0 0.0
    %1247 = vmatprep.subr.mxu0 0.0
    %1248 = vmatpush1.msra.mxu0 0.0
    %1249 = vmatprep.subr.mxu0 0.0
    %1250 = vmatpush1.msra.mxu0 0.0
    %1251 = vmatprep.subr.mxu0 0.0
    %1252 = vmatpush1.msra.mxu0 0.0
    %1253 = vmatprep.subr.mxu0 0.0
    %1254 = vmatpush1.msra.mxu0 0.0
    %1255 = vmatprep.subr.mxu0 0.0
    %1256 = vmatpush1.msra.mxu0 0.0
    %1257 = vmatprep.subr.mxu0 0.0
    %1258 = vmatpush1.msra.mxu0 0.0
    %1259 = vmatprep.subr.mxu0 0.0
    %1260 = vmatpush1.msra.mxu0 0.0
    %1261 = vmatprep.subr.mxu0 0.0
    %1262 = vmatpush1.msra.mxu0 0.0
    %1263 = vmatprep.subr.mxu0 0.0
    %1264 = vmatpush1.msra.mxu0 0.0
    %1265 = vmatprep.subr.mxu0 0.0
    %1266 = vmatpush1.msra.mxu0 0.0
    %1267 = vmatprep.subr.mxu0 0.0
    %1268 = vmatpush1.msra.mxu0 0.0
    %1269 = vmatprep.subr.mxu0 0.0
    %1270 = vmatpush1.msra.mxu0 0.0
    %1271 = vmatprep.subr.mxu0 0.0
    %1272 = vmatpush1.msra.mxu0 0.0
    %1273 = vmatprep.subr.mxu0 0.0
    %1274 = vmatpush1.msra.mxu0 0.0
    %1275 = vmatprep.subr.mxu0 0.0
    %1276 = vmatpush1.msra.mxu0 0.0
    %1277 = vmatprep.subr.mxu0 0.0
    %1278 = vmatpush1.msra.mxu0 0.0
    %1279 = vmatprep.subr.mxu0 0.0
    %1280 = vmatpush1.msra.mxu0 0.0
    %1281 = vmatprep.subr.mxu0 0.0
    %1282 = vmatpush1.msra.mxu0 0.0
    %1283 = vmatprep.subr.mxu0 0.0
    %1284 = vmatpush1.msra.mxu0 0.0
    %1285 = vmatprep.subr.mxu0 0.0
    %1286 = vmatpush1.msra.mxu0 0.0
    %1287 = vmatprep.subr.mxu0 0.0
    %1288 = vmatpush1.msra.mxu0 0.0
    %1289 = vmatprep.subr.mxu0 0.0
    %1290 = vmatpush1.msra.mxu0 0.0
    %1291 = vmatprep.subr.mxu0 0.0
    %1292 = vmatpush1.msra.mxu0 0.0
    %1293 = vmatprep.subr.mxu0 0.0
    %1294 = vmatpush1.msra.mxu0 0.0
    %1295 = vmatprep.subr.mxu0 0.0
    %1296 = vmatpush1.msra.mxu0 0.0
    %1297 = vmatprep.subr.mxu0 0.0
    %1298 = vmatpush1.msra.mxu0 0.0
    %1299 = vmatprep.subr.mxu0 0.0
    %1300 = vmatpush1.msra.mxu0 0.0
    %1301 = vmatprep.mubr.f32.mxu0 0.0
    %1302 = vmatmul.mubr.f32.gmra.mrb[0].mxu0 %v1232
    %v1303 = vpop.f32.mrb[0].mxu0
    %v1304 = vadd.f32 0.0, %v1303
    %v1305 = vpop.f32.mrb[0].mxu0
    %1306 = vmatprep.mubr.f32.mxu0 0.0
    %1307 = vmatmul.mubr.f32.gmra.mrb[0].mxu0 %v1235
    %v1308 = vpop.f32.mrb[0].mxu0
    %v1309 = vadd.f32 0.0, %v1308
    %v1310 = vpop.f32.mrb[0].mxu0
    %1311 = vdwg.mxu0
    %v1312 = vadd.f32 %v1229, %v1304
    %v1313 = vadd.f32 %v1230, %v1309
    %v1314 = vadd.f32 %v18, %v1312
    %v1315 = vadd.f32 %v19, %v1313
    %v1316 = vsel %vm54, %v1314, 0.0
    %1317 = vadd.xlane.f32.xlu0 %v1316
    %v1318 = vpop.xlane.xlu0 %1317
    %v1319 = vsel %vm54, %v1315, 0.0
    %1320 = vadd.xlane.f32.xlu0 %v1319
    %v1321 = vpop.xlane.xlu0 %1320
    %v1322 = vmul.f32 %v1318, %v61
    %v1323 = vmul.f32 %v1321, %v61
    %v1324 = vsub.f32 %v1314, %v1322
    %v1325 = vsub.f32 %v1315, %v1323
    %v1326 = vmul.f32 %v1324, %v1324
    %v1327 = vmul.f32 %v1325, %v1325
    %v1328 = vsel %vm54, %v1326, 0.0
    %1329 = vadd.xlane.f32.xlu0 %v1328
    %v1330 = vpop.xlane.xlu0 %1329
    %v1331 = vsel %vm54, %v1327, 0.0
    %1332 = vadd.xlane.f32.xlu0 %v1331
    %v1333 = vpop.xlane.xlu0 %1332
    %v1334 = vmul.f32 %v1330, %v74
    %v1335 = vmul.f32 %v1333, %v74
    %v1336 = vrsqrt.pop %v1334
    %v1337 = vmul.f32 %v1334, %v1336
    %vm1338 = vcmp.eq.f32.partialorder %v1334, inf
    %v1339 = vsel %vm1338, %v1334, %v1337
    %vm1340 = vcmp.eq.f32.partialorder %v1334, 0.0
    %v1341 = vand.u32 %v1334, 2147483648
    %v1342 = vsel %vm1340, %v1341, %v1339
    %v1343 = vrsqrt.pop %v1335
    %v1344 = vmul.f32 %v1335, %v1343
    %vm1345 = vcmp.eq.f32.partialorder %v1335, inf
    %v1346 = vsel %vm1345, %v1335, %v1344
    %vm1347 = vcmp.eq.f32.partialorder %v1335, 0.0
    %v1348 = vand.u32 %v1335, 2147483648
    %v1349 = vsel %vm1347, %v1348, %v1346
    %v1350 = vadd.f32 %v1342, 1e-06
    %v1351 = vadd.f32 %v1349, 1e-06
    %v1352 = vrcp.pop %v1350
    %v1353 = vrcp.pop %v1351
    %v1354 = vlaneseq
    %v1355 = vshrl.u32 %v1354, 7
    %v1356 = vsub.s32 2, %v1355
    %v1357 = vrot.slane %v52, %v1356
    %v1358 = vmul.f32 %v1357, %v1324
    %v1359 = vmul.f32 %v1357, %v1325
    %v1360 = vmul.f32 %v1358, %v1352
    %v1361 = vmul.f32 %v1359, %v1353
    %v1362 = vlaneseq
    %v1363 = vshrl.u32 %v1362, 7
    %v1364 = vsub.s32 3, %v1363
    %v1365 = vrot.slane %v52, %v1364
    %v1366 = vadd.f32 %v1360, %v1365
    %v1367 = vadd.f32 %v1361, %v1365
    %v1368 = vlaneseq
    %v1369 = vshrl.u32 %v1368, 7
    %v1370 = vsub.s32 0, %v1369
    %v1371 = vrot.slane %v53, %v1370
    %v1373 = vsel %vm54, %v1366, 0
    %v1376 = vsel %vm54, %v1367, 0
    %1378 = vmatprep.subr.mxu0 0.0
    %1379 = vmatpush1.msra.mxu0 %v28
    %1380 = vmatprep.subr.mxu0 0.0
    %1381 = vmatpush1.msra.mxu0 %v29
    %1382 = vmatprep.subr.mxu0 0.0
    %1383 = vmatpush1.msra.mxu0 %v30
    %1384 = vmatprep.subr.mxu0 0.0
    %1385 = vmatpush1.msra.mxu0 %v31
    %1386 = vmatprep.subr.mxu0 0.0
    %1387 = vmatpush1.msra.mxu0 0.0
    %1388 = vmatprep.subr.mxu0 0.0
    %1389 = vmatpush1.msra.mxu0 0.0
    %1390 = vmatprep.subr.mxu0 0.0
    %1391 = vmatpush1.msra.mxu0 0.0
    %1392 = vmatprep.subr.mxu0 0.0
    %1393 = vmatpush1.msra.mxu0 0.0
    %1394 = vmatprep.subr.mxu0 0.0
    %1395 = vmatpush1.msra.mxu0 0.0
    %1396 = vmatprep.subr.mxu0 0.0
    %1397 = vmatpush1.msra.mxu0 0.0
    %1398 = vmatprep.subr.mxu0 0.0
    %1399 = vmatpush1.msra.mxu0 0.0
    %1400 = vmatprep.subr.mxu0 0.0
    %1401 = vmatpush1.msra.mxu0 0.0
    %1402 = vmatprep.subr.mxu0 0.0
    %1403 = vmatpush1.msra.mxu0 0.0
    %1404 = vmatprep.subr.mxu0 0.0
    %1405 = vmatpush1.msra.mxu0 0.0
    %1406 = vmatprep.subr.mxu0 0.0
    %1407 = vmatpush1.msra.mxu0 0.0
    %1408 = vmatprep.subr.mxu0 0.0
    %1409 = vmatpush1.msra.mxu0 0.0
    %1410 = vmatprep.subr.mxu0 0.0
    %1411 = vmatpush1.msra.mxu0 0.0
    %1412 = vmatprep.subr.mxu0 0.0
    %1413 = vmatpush1.msra.mxu0 0.0
    %1414 = vmatprep.subr.mxu0 0.0
    %1415 = vmatpush1.msra.mxu0 0.0
    %1416 = vmatprep.subr.mxu0 0.0
    %1417 = vmatpush1.msra.mxu0 0.0
    %1418 = vmatprep.subr.mxu0 0.0
    %1419 = vmatpush1.msra.mxu0 0.0
    %1420 = vmatprep.subr.mxu0 0.0
    %1421 = vmatpush1.msra.mxu0 0.0
    %1422 = vmatprep.subr.mxu0 0.0
    %1423 = vmatpush1.msra.mxu0 0.0
    %1424 = vmatprep.subr.mxu0 0.0
    %1425 = vmatpush1.msra.mxu0 0.0
    %1426 = vmatprep.subr.mxu0 0.0
    %1427 = vmatpush1.msra.mxu0 0.0
    %1428 = vmatprep.subr.mxu0 0.0
    %1429 = vmatpush1.msra.mxu0 0.0
    %1430 = vmatprep.subr.mxu0 0.0
    %1431 = vmatpush1.msra.mxu0 0.0
    %1432 = vmatprep.subr.mxu0 0.0
    %1433 = vmatpush1.msra.mxu0 0.0
    %1434 = vmatprep.subr.mxu0 0.0
    %1435 = vmatpush1.msra.mxu0 0.0
    %1436 = vmatprep.subr.mxu0 0.0
    %1437 = vmatpush1.msra.mxu0 0.0
    %1438 = vmatprep.subr.mxu0 0.0
    %1439 = vmatpush1.msra.mxu0 0.0
    %1440 = vmatprep.subr.mxu0 0.0
    %1441 = vmatpush1.msra.mxu0 0.0
    %1442 = vmatprep.mubr.f32.mxu0 0.0
    %1443 = vmatmul.mubr.f32.gmra.mrb[0].mxu0 %v1373
    %v1444 = vpop.f32.mrb[0].mxu0
    %v1445 = vadd.f32 %v1371, %v1444
    %v1446 = vpop.f32.mrb[0].mxu0
    %1447 = vmatprep.mubr.f32.mxu0 0.0
    %1448 = vmatmul.mubr.f32.gmra.mrb[0].mxu0 %v1376
    %v1449 = vpop.f32.mrb[0].mxu0
    %v1450 = vadd.f32 %v1371, %v1449
    %v1451 = vpop.f32.mrb[0].mxu0
    %1452 = vdwg.mxu0
    %1455 = vrot.lane.b32.xlu0 %v1445, 120
    %v1456 = vpop.permute.xlu0 %1455
    %1457 = vrot.lane.b32.xlu0 %v1450, 120
    %v1458 = vpop.permute.xlu0 %1457
    %1459 = vrot.lane.b32.xlu0 %v1445, 112
    %v1460 = vpop.permute.xlu0 %1459
    %1461 = vrot.lane.b32.xlu0 %v1450, 112
    %v1462 = vpop.permute.xlu0 %1461
    %1463 = vrot.lane.b32.xlu0 %v1445, 104
    %v1464 = vpop.permute.xlu0 %1463
    %1465 = vrot.lane.b32.xlu0 %v1450, 104
    %v1466 = vpop.permute.xlu0 %1465
    %v1467 = vsel %vm208, %v1445, 0
    %v1469 = vsel %vm208, %v1450, 0
    %1471 = vmatprep.subr.mxu0 0.0
    %1472 = vmatpush1.xpose.msra.mxu0 %v1467
    %1473 = vmatprep.subr.mxu0 0.0
    %1474 = vmatpush1.xpose.msra.mxu0 %v1469
    %1475 = vmatprep.subr.mxu0 0.0
    %1476 = vmatpush1.xpose.msra.mxu0 0.0
    %1477 = vmatprep.subr.mxu0 0.0
    %1478 = vmatpush1.xpose.msra.mxu0 0.0
    %1479 = vmatprep.subr.mxu0 0.0
    %1480 = vmatpush1.xpose.msra.mxu0 0.0
    %1481 = vmatprep.subr.mxu0 0.0
    %1482 = vmatpush1.xpose.msra.mxu0 0.0
    %1483 = vmatprep.subr.mxu0 0.0
    %1484 = vmatpush1.xpose.msra.mxu0 0.0
    %1485 = vmatprep.subr.mxu0 0.0
    %1486 = vmatpush1.xpose.msra.mxu0 0.0
    %1487 = vmatprep.subr.mxu0 0.0
    %1488 = vmatpush1.xpose.msra.mxu0 0.0
    %1489 = vmatprep.subr.mxu0 0.0
    %1490 = vmatpush1.xpose.msra.mxu0 0.0
    %1491 = vmatprep.subr.mxu0 0.0
    %1492 = vmatpush1.xpose.msra.mxu0 0.0
    %1493 = vmatprep.subr.mxu0 0.0
    %1494 = vmatpush1.xpose.msra.mxu0 0.0
    %1495 = vmatprep.subr.mxu0 0.0
    %1496 = vmatpush1.xpose.msra.mxu0 0.0
    %1497 = vmatprep.subr.mxu0 0.0
    %1498 = vmatpush1.xpose.msra.mxu0 0.0
    %1499 = vmatprep.subr.mxu0 0.0
    %1500 = vmatpush1.xpose.msra.mxu0 0.0
    %1501 = vmatprep.subr.mxu0 0.0
    %1502 = vmatpush1.xpose.msra.mxu0 0.0
    %1503 = vmatprep.subr.mxu0 0.0
    %1504 = vmatpush1.xpose.msra.mxu0 0.0
    %1505 = vmatprep.subr.mxu0 0.0
    %1506 = vmatpush1.xpose.msra.mxu0 0.0
    %1507 = vmatprep.subr.mxu0 0.0
    %1508 = vmatpush1.xpose.msra.mxu0 0.0
    %1509 = vmatprep.subr.mxu0 0.0
    %1510 = vmatpush1.xpose.msra.mxu0 0.0
    %1511 = vmatprep.subr.mxu0 0.0
    %1512 = vmatpush1.xpose.msra.mxu0 0.0
    %1513 = vmatprep.subr.mxu0 0.0
    %1514 = vmatpush1.xpose.msra.mxu0 0.0
    %1515 = vmatprep.subr.mxu0 0.0
    %1516 = vmatpush1.xpose.msra.mxu0 0.0
    %1517 = vmatprep.subr.mxu0 0.0
    %1518 = vmatpush1.xpose.msra.mxu0 0.0
    %1519 = vmatprep.subr.mxu0 0.0
    %1520 = vmatpush1.xpose.msra.mxu0 0.0
    %1521 = vmatprep.subr.mxu0 0.0
    %1522 = vmatpush1.xpose.msra.mxu0 0.0
    %1523 = vmatprep.subr.mxu0 0.0
    %1524 = vmatpush1.xpose.msra.mxu0 0.0
    %1525 = vmatprep.subr.mxu0 0.0
    %1526 = vmatpush1.xpose.msra.mxu0 0.0
    %1527 = vmatprep.subr.mxu0 0.0
    %1528 = vmatpush1.xpose.msra.mxu0 0.0
    %1529 = vmatprep.subr.mxu0 0.0
    %1530 = vmatpush1.xpose.msra.mxu0 0.0
    %1531 = vmatprep.subr.mxu0 0.0
    %1532 = vmatpush1.xpose.msra.mxu0 0.0
    %1533 = vmatprep.subr.mxu0 0.0
    %1534 = vmatpush1.xpose.msra.mxu0 0.0
    %1535 = vmatprep.mubr.f32.mxu0 0.0
    %1536 = vmatmul.mubr.f32.gmra.mrb[0].mxu0 %v1467
    %v1537 = vpop.f32.mrb[0].mxu0
    %v1538 = vadd.f32 0.0, %v1537
    %v1539 = vpop.f32.mrb[0].mxu0
    %1540 = vmatprep.mubr.f32.mxu0 0.0
    %1541 = vmatmul.mubr.f32.gmra.mrb[0].mxu0 %v1469
    %v1542 = vpop.f32.mrb[0].mxu0
    %v1543 = vadd.f32 0.0, %v1542
    %v1544 = vpop.f32.mrb[0].mxu0
    %1545 = vdwg.mxu0
    %v1546 = vsel %vm208, %v1456, 0
    %v1548 = vsel %vm208, %v1458, 0
    %1550 = vmatprep.subr.mxu0 0.0
    %1551 = vmatpush1.xpose.msra.mxu0 %v1546
    %1552 = vmatprep.subr.mxu0 0.0
    %1553 = vmatpush1.xpose.msra.mxu0 %v1548
    %1554 = vmatprep.subr.mxu0 0.0
    %1555 = vmatpush1.xpose.msra.mxu0 0.0
    %1556 = vmatprep.subr.mxu0 0.0
    %1557 = vmatpush1.xpose.msra.mxu0 0.0
    %1558 = vmatprep.subr.mxu0 0.0
    %1559 = vmatpush1.xpose.msra.mxu0 0.0
    %1560 = vmatprep.subr.mxu0 0.0
    %1561 = vmatpush1.xpose.msra.mxu0 0.0
    %1562 = vmatprep.subr.mxu0 0.0
    %1563 = vmatpush1.xpose.msra.mxu0 0.0
    %1564 = vmatprep.subr.mxu0 0.0
    %1565 = vmatpush1.xpose.msra.mxu0 0.0
    %1566 = vmatprep.subr.mxu0 0.0
    %1567 = vmatpush1.xpose.msra.mxu0 0.0
    %1568 = vmatprep.subr.mxu0 0.0
    %1569 = vmatpush1.xpose.msra.mxu0 0.0
    %1570 = vmatprep.subr.mxu0 0.0
    %1571 = vmatpush1.xpose.msra.mxu0 0.0
    %1572 = vmatprep.subr.mxu0 0.0
    %1573 = vmatpush1.xpose.msra.mxu0 0.0
    %1574 = vmatprep.subr.mxu0 0.0
    %1575 = vmatpush1.xpose.msra.mxu0 0.0
    %1576 = vmatprep.subr.mxu0 0.0
    %1577 = vmatpush1.xpose.msra.mxu0 0.0
    %1578 = vmatprep.subr.mxu0 0.0
    %1579 = vmatpush1.xpose.msra.mxu0 0.0
    %1580 = vmatprep.subr.mxu0 0.0
    %1581 = vmatpush1.xpose.msra.mxu0 0.0
    %1582 = vmatprep.subr.mxu0 0.0
    %1583 = vmatpush1.xpose.msra.mxu0 0.0
    %1584 = vmatprep.subr.mxu0 0.0
    %1585 = vmatpush1.xpose.msra.mxu0 0.0
    %1586 = vmatprep.subr.mxu0 0.0
    %1587 = vmatpush1.xpose.msra.mxu0 0.0
    %1588 = vmatprep.subr.mxu0 0.0
    %1589 = vmatpush1.xpose.msra.mxu0 0.0
    %1590 = vmatprep.subr.mxu0 0.0
    %1591 = vmatpush1.xpose.msra.mxu0 0.0
    %1592 = vmatprep.subr.mxu0 0.0
    %1593 = vmatpush1.xpose.msra.mxu0 0.0
    %1594 = vmatprep.subr.mxu0 0.0
    %1595 = vmatpush1.xpose.msra.mxu0 0.0
    %1596 = vmatprep.subr.mxu0 0.0
    %1597 = vmatpush1.xpose.msra.mxu0 0.0
    %1598 = vmatprep.subr.mxu0 0.0
    %1599 = vmatpush1.xpose.msra.mxu0 0.0
    %1600 = vmatprep.subr.mxu0 0.0
    %1601 = vmatpush1.xpose.msra.mxu0 0.0
    %1602 = vmatprep.subr.mxu0 0.0
    %1603 = vmatpush1.xpose.msra.mxu0 0.0
    %1604 = vmatprep.subr.mxu0 0.0
    %1605 = vmatpush1.xpose.msra.mxu0 0.0
    %1606 = vmatprep.subr.mxu0 0.0
    %1607 = vmatpush1.xpose.msra.mxu0 0.0
    %1608 = vmatprep.subr.mxu0 0.0
    %1609 = vmatpush1.xpose.msra.mxu0 0.0
    %1610 = vmatprep.subr.mxu0 0.0
    %1611 = vmatpush1.xpose.msra.mxu0 0.0
    %1612 = vmatprep.subr.mxu0 0.0
    %1613 = vmatpush1.xpose.msra.mxu0 0.0
    %1614 = vmatprep.mubr.f32.mxu0 0.0
    %1615 = vmatmul.mubr.f32.gmra.mrb[0].mxu0 %v1546
    %v1616 = vpop.f32.mrb[0].mxu0
    %v1617 = vadd.f32 0.0, %v1616
    %v1618 = vpop.f32.mrb[0].mxu0
    %1619 = vmatprep.mubr.f32.mxu0 0.0
    %1620 = vmatmul.mubr.f32.gmra.mrb[0].mxu0 %v1548
    %v1621 = vpop.f32.mrb[0].mxu0
    %v1622 = vadd.f32 0.0, %v1621
    %v1623 = vpop.f32.mrb[0].mxu0
    %1624 = vdwg.mxu0
    %v1625 = vsel %vm208, %v1460, 0
    %v1627 = vsel %vm208, %v1462, 0
    %1629 = vmatprep.subr.mxu0 0.0
    %1630 = vmatpush1.xpose.msra.mxu0 %v1625
    %1631 = vmatprep.subr.mxu0 0.0
    %1632 = vmatpush1.xpose.msra.mxu0 %v1627
    %1633 = vmatprep.subr.mxu0 0.0
    %1634 = vmatpush1.xpose.msra.mxu0 0.0
    %1635 = vmatprep.subr.mxu0 0.0
    %1636 = vmatpush1.xpose.msra.mxu0 0.0
    %1637 = vmatprep.subr.mxu0 0.0
    %1638 = vmatpush1.xpose.msra.mxu0 0.0
    %1639 = vmatprep.subr.mxu0 0.0
    %1640 = vmatpush1.xpose.msra.mxu0 0.0
    %1641 = vmatprep.subr.mxu0 0.0
    %1642 = vmatpush1.xpose.msra.mxu0 0.0
    %1643 = vmatprep.subr.mxu0 0.0
    %1644 = vmatpush1.xpose.msra.mxu0 0.0
    %1645 = vmatprep.subr.mxu0 0.0
    %1646 = vmatpush1.xpose.msra.mxu0 0.0
    %1647 = vmatprep.subr.mxu0 0.0
    %1648 = vmatpush1.xpose.msra.mxu0 0.0
    %1649 = vmatprep.subr.mxu0 0.0
    %1650 = vmatpush1.xpose.msra.mxu0 0.0
    %1651 = vmatprep.subr.mxu0 0.0
    %1652 = vmatpush1.xpose.msra.mxu0 0.0
    %1653 = vmatprep.subr.mxu0 0.0
    %1654 = vmatpush1.xpose.msra.mxu0 0.0
    %1655 = vmatprep.subr.mxu0 0.0
    %1656 = vmatpush1.xpose.msra.mxu0 0.0
    %1657 = vmatprep.subr.mxu0 0.0
    %1658 = vmatpush1.xpose.msra.mxu0 0.0
    %1659 = vmatprep.subr.mxu0 0.0
    %1660 = vmatpush1.xpose.msra.mxu0 0.0
    %1661 = vmatprep.subr.mxu0 0.0
    %1662 = vmatpush1.xpose.msra.mxu0 0.0
    %1663 = vmatprep.subr.mxu0 0.0
    %1664 = vmatpush1.xpose.msra.mxu0 0.0
    %1665 = vmatprep.subr.mxu0 0.0
    %1666 = vmatpush1.xpose.msra.mxu0 0.0
    %1667 = vmatprep.subr.mxu0 0.0
    %1668 = vmatpush1.xpose.msra.mxu0 0.0
    %1669 = vmatprep.subr.mxu0 0.0
    %1670 = vmatpush1.xpose.msra.mxu0 0.0
    %1671 = vmatprep.subr.mxu0 0.0
    %1672 = vmatpush1.xpose.msra.mxu0 0.0
    %1673 = vmatprep.subr.mxu0 0.0
    %1674 = vmatpush1.xpose.msra.mxu0 0.0
    %1675 = vmatprep.subr.mxu0 0.0
    %1676 = vmatpush1.xpose.msra.mxu0 0.0
    %1677 = vmatprep.subr.mxu0 0.0
    %1678 = vmatpush1.xpose.msra.mxu0 0.0
    %1679 = vmatprep.subr.mxu0 0.0
    %1680 = vmatpush1.xpose.msra.mxu0 0.0
    %1681 = vmatprep.subr.mxu0 0.0
    %1682 = vmatpush1.xpose.msra.mxu0 0.0
    %1683 = vmatprep.subr.mxu0 0.0
    %1684 = vmatpush1.xpose.msra.mxu0 0.0
    %1685 = vmatprep.subr.mxu0 0.0
    %1686 = vmatpush1.xpose.msra.mxu0 0.0
    %1687 = vmatprep.subr.mxu0 0.0
    %1688 = vmatpush1.xpose.msra.mxu0 0.0
    %1689 = vmatprep.subr.mxu0 0.0
    %1690 = vmatpush1.xpose.msra.mxu0 0.0
    %1691 = vmatprep.subr.mxu0 0.0
    %1692 = vmatpush1.xpose.msra.mxu0 0.0
    %1693 = vmatprep.mubr.f32.mxu0 0.0
    %1694 = vmatmul.mubr.f32.gmra.mrb[0].mxu0 %v1625
    %v1695 = vpop.f32.mrb[0].mxu0
    %v1696 = vadd.f32 0.0, %v1695
    %v1697 = vpop.f32.mrb[0].mxu0
    %1698 = vmatprep.mubr.f32.mxu0 0.0
    %1699 = vmatmul.mubr.f32.gmra.mrb[0].mxu0 %v1627
    %v1700 = vpop.f32.mrb[0].mxu0
    %v1701 = vadd.f32 0.0, %v1700
    %v1702 = vpop.f32.mrb[0].mxu0
    %1703 = vdwg.mxu0
    %v1704 = vsel %vm208, %v1464, 0
    %v1706 = vsel %vm208, %v1466, 0
    %1708 = vmatprep.subr.mxu0 0.0
    %1709 = vmatpush1.xpose.msra.mxu0 %v1704
    %1710 = vmatprep.subr.mxu0 0.0
    %1711 = vmatpush1.xpose.msra.mxu0 %v1706
    %1712 = vmatprep.subr.mxu0 0.0
    %1713 = vmatpush1.xpose.msra.mxu0 0.0
    %1714 = vmatprep.subr.mxu0 0.0
    %1715 = vmatpush1.xpose.msra.mxu0 0.0
    %1716 = vmatprep.subr.mxu0 0.0
    %1717 = vmatpush1.xpose.msra.mxu0 0.0
    %1718 = vmatprep.subr.mxu0 0.0
    %1719 = vmatpush1.xpose.msra.mxu0 0.0
    %1720 = vmatprep.subr.mxu0 0.0
    %1721 = vmatpush1.xpose.msra.mxu0 0.0
    %1722 = vmatprep.subr.mxu0 0.0
    %1723 = vmatpush1.xpose.msra.mxu0 0.0
    %1724 = vmatprep.subr.mxu0 0.0
    %1725 = vmatpush1.xpose.msra.mxu0 0.0
    %1726 = vmatprep.subr.mxu0 0.0
    %1727 = vmatpush1.xpose.msra.mxu0 0.0
    %1728 = vmatprep.subr.mxu0 0.0
    %1729 = vmatpush1.xpose.msra.mxu0 0.0
    %1730 = vmatprep.subr.mxu0 0.0
    %1731 = vmatpush1.xpose.msra.mxu0 0.0
    %1732 = vmatprep.subr.mxu0 0.0
    %1733 = vmatpush1.xpose.msra.mxu0 0.0
    %1734 = vmatprep.subr.mxu0 0.0
    %1735 = vmatpush1.xpose.msra.mxu0 0.0
    %1736 = vmatprep.subr.mxu0 0.0
    %1737 = vmatpush1.xpose.msra.mxu0 0.0
    %1738 = vmatprep.subr.mxu0 0.0
    %1739 = vmatpush1.xpose.msra.mxu0 0.0
    %1740 = vmatprep.subr.mxu0 0.0
    %1741 = vmatpush1.xpose.msra.mxu0 0.0
    %1742 = vmatprep.subr.mxu0 0.0
    %1743 = vmatpush1.xpose.msra.mxu0 0.0
    %1744 = vmatprep.subr.mxu0 0.0
    %1745 = vmatpush1.xpose.msra.mxu0 0.0
    %1746 = vmatprep.subr.mxu0 0.0
    %1747 = vmatpush1.xpose.msra.mxu0 0.0
    %1748 = vmatprep.subr.mxu0 0.0
    %1749 = vmatpush1.xpose.msra.mxu0 0.0
    %1750 = vmatprep.subr.mxu0 0.0
    %1751 = vmatpush1.xpose.msra.mxu0 0.0
    %1752 = vmatprep.subr.mxu0 0.0
    %1753 = vmatpush1.xpose.msra.mxu0 0.0
    %1754 = vmatprep.subr.mxu0 0.0
    %1755 = vmatpush1.xpose.msra.mxu0 0.0
    %1756 = vmatprep.subr.mxu0 0.0
    %1757 = vmatpush1.xpose.msra.mxu0 0.0
    %1758 = vmatprep.subr.mxu0 0.0
    %1759 = vmatpush1.xpose.msra.mxu0 0.0
    %1760 = vmatprep.subr.mxu0 0.0
    %1761 = vmatpush1.xpose.msra.mxu0 0.0
    %1762 = vmatprep.subr.mxu0 0.0
    %1763 = vmatpush1.xpose.msra.mxu0 0.0
    %1764 = vmatprep.subr.mxu0 0.0
    %1765 = vmatpush1.xpose.msra.mxu0 0.0
    %1766 = vmatprep.subr.mxu0 0.0
    %1767 = vmatpush1.xpose.msra.mxu0 0.0
    %1768 = vmatprep.subr.mxu0 0.0
    %1769 = vmatpush1.xpose.msra.mxu0 0.0
    %1770 = vmatprep.subr.mxu0 0.0
    %1771 = vmatpush1.xpose.msra.mxu0 0.0
    %1772 = vmatprep.mubr.f32.mxu0 0.0
    %1773 = vmatmul.mubr.f32.gmra.mrb[0].mxu0 %v1704
    %v1774 = vpop.f32.mrb[0].mxu0
    %v1775 = vadd.f32 0.0, %v1774
    %v1776 = vpop.f32.mrb[0].mxu0
    %1777 = vmatprep.mubr.f32.mxu0 0.0
    %1778 = vmatmul.mubr.f32.gmra.mrb[0].mxu0 %v1706
    %v1779 = vpop.f32.mrb[0].mxu0
    %v1780 = vadd.f32 0.0, %v1779
    %v1781 = vpop.f32.mrb[0].mxu0
    %1782 = vdwg.mxu0
    %v1783 = vmul.f32 %v1538, 0.35355338
    %v1784 = vmul.f32 %v1543, 0.35355338
    %v1785 = vmul.f32 %v1617, 0.35355338
    %v1786 = vmul.f32 %v1622, 0.35355338
    %v1787 = vmul.f32 %v1696, 0.35355338
    %v1788 = vmul.f32 %v1701, 0.35355338
    %v1789 = vmul.f32 %v1775, 0.35355338
    %v1790 = vmul.f32 %v1780, 0.35355338
    %v1791 = vadd.f32 %v1783, %v22
    %v1792 = vadd.f32 %v1784, %v23
    %v1793 = vadd.f32 %v1785, %v22
    %v1794 = vadd.f32 %v1786, %v23
    %v1795 = vadd.f32 %v1787, %v22
    %v1796 = vadd.f32 %v1788, %v23
    %v1797 = vadd.f32 %v1789, %v22
    %v1798 = vadd.f32 %v1790, %v23
    %v1799 = vsel %vm541, %v1791, -inf
    %1800 = vmax.xlane.f32.xlu0 %v1799
    %v1801 = vpop.xlane.xlu0 %1800
    %v1802 = vsel %vm541, %v1792, -inf
    %1803 = vmax.xlane.f32.xlu0 %v1802
    %v1804 = vpop.xlane.xlu0 %1803
    %v1805 = vsel %vm541, %v1793, -inf
    %1806 = vmax.xlane.f32.xlu0 %v1805
    %v1807 = vpop.xlane.xlu0 %1806
    %v1808 = vsel %vm541, %v1794, -inf
    %1809 = vmax.xlane.f32.xlu0 %v1808
    %v1810 = vpop.xlane.xlu0 %1809
    %v1811 = vsel %vm541, %v1795, -inf
    %1812 = vmax.xlane.f32.xlu0 %v1811
    %v1813 = vpop.xlane.xlu0 %1812
    %v1814 = vsel %vm541, %v1796, -inf
    %1815 = vmax.xlane.f32.xlu0 %v1814
    %v1816 = vpop.xlane.xlu0 %1815
    %v1817 = vsel %vm541, %v1797, -inf
    %1818 = vmax.xlane.f32.xlu0 %v1817
    %v1819 = vpop.xlane.xlu0 %1818
    %v1820 = vsel %vm541, %v1798, -inf
    %1821 = vmax.xlane.f32.xlu0 %v1820
    %v1822 = vpop.xlane.xlu0 %1821
    %v1823 = vsub.f32 %v1791, %v1801
    %v1824 = vsub.f32 %v1792, %v1804
    %v1825 = vsub.f32 %v1793, %v1807
    %v1826 = vsub.f32 %v1794, %v1810
    %v1827 = vsub.f32 %v1795, %v1813
    %v1828 = vsub.f32 %v1796, %v1816
    %v1829 = vsub.f32 %v1797, %v1819
    %v1830 = vsub.f32 %v1798, %v1822
    %v1831 = vmul.f32 %v1823, 1.442695
    %v1832 = vpow.pop %v1831
    %v1833 = vmul.f32 %v1824, 1.442695
    %v1834 = vpow.pop %v1833
    %v1835 = vmul.f32 %v1825, 1.442695
    %v1836 = vpow.pop %v1835
    %v1837 = vmul.f32 %v1826, 1.442695
    %v1838 = vpow.pop %v1837
    %v1839 = vmul.f32 %v1827, 1.442695
    %v1840 = vpow.pop %v1839
    %v1841 = vmul.f32 %v1828, 1.442695
    %v1842 = vpow.pop %v1841
    %v1843 = vmul.f32 %v1829, 1.442695
    %v1844 = vpow.pop %v1843
    %v1845 = vmul.f32 %v1830, 1.442695
    %v1846 = vpow.pop %v1845
    %v1847 = vsel %vm541, %v1832, 0.0
    %1848 = vadd.xlane.f32.xlu0 %v1847
    %v1849 = vpop.xlane.xlu0 %1848
    %v1850 = vsel %vm541, %v1834, 0.0
    %1851 = vadd.xlane.f32.xlu0 %v1850
    %v1852 = vpop.xlane.xlu0 %1851
    %v1853 = vsel %vm541, %v1836, 0.0
    %1854 = vadd.xlane.f32.xlu0 %v1853
    %v1855 = vpop.xlane.xlu0 %1854
    %v1856 = vsel %vm541, %v1838, 0.0
    %1857 = vadd.xlane.f32.xlu0 %v1856
    %v1858 = vpop.xlane.xlu0 %1857
    %v1859 = vsel %vm541, %v1840, 0.0
    %1860 = vadd.xlane.f32.xlu0 %v1859
    %v1861 = vpop.xlane.xlu0 %1860
    %v1862 = vsel %vm541, %v1842, 0.0
    %1863 = vadd.xlane.f32.xlu0 %v1862
    %v1864 = vpop.xlane.xlu0 %1863
    %v1865 = vsel %vm541, %v1844, 0.0
    %1866 = vadd.xlane.f32.xlu0 %v1865
    %v1867 = vpop.xlane.xlu0 %1866
    %v1868 = vsel %vm541, %v1846, 0.0
    %1869 = vadd.xlane.f32.xlu0 %v1868
    %v1870 = vpop.xlane.xlu0 %1869
    %v1871 = vrcp.pop %v1849
    %v1872 = vrcp.pop %v1852
    %v1873 = vrcp.pop %v1855
    %v1874 = vrcp.pop %v1858
    %v1875 = vrcp.pop %v1861
    %v1876 = vrcp.pop %v1864
    %v1877 = vrcp.pop %v1867
    %v1878 = vrcp.pop %v1870
    %v1879 = vmul.f32 %v1832, %v1871
    %v1880 = vmul.f32 %v1834, %v1872
    %v1881 = vmul.f32 %v1836, %v1873
    %v1882 = vmul.f32 %v1838, %v1874
    %v1883 = vmul.f32 %v1840, %v1875
    %v1884 = vmul.f32 %v1842, %v1876
    %v1885 = vmul.f32 %v1844, %v1877
    %v1886 = vmul.f32 %v1846, %v1878
    %1887 = vrot.lane.b32.xlu0 %v1445, 96
    %v1888 = vpop.permute.xlu0 %1887
    %1889 = vrot.lane.b32.xlu0 %v1450, 96
    %v1890 = vpop.permute.xlu0 %1889
    %v1894 = vsel %vm541, %v1879, 0
    %v1897 = vsel %vm541, %v1880, 0
    %1899 = vmatprep.subr.mxu0 0.0
    %1900 = vmatpush1.msra.mxu0 %v1888
    %1901 = vmatprep.subr.mxu0 0.0
    %1902 = vmatpush1.msra.mxu0 %v1890
    %1903 = vmatprep.subr.mxu0 0.0
    %1904 = vmatpush1.msra.mxu0 0.0
    %1905 = vmatprep.subr.mxu0 0.0
    %1906 = vmatpush1.msra.mxu0 0.0
    %1907 = vmatprep.subr.mxu0 0.0
    %1908 = vmatpush1.msra.mxu0 0.0
    %1909 = vmatprep.subr.mxu0 0.0
    %1910 = vmatpush1.msra.mxu0 0.0
    %1911 = vmatprep.subr.mxu0 0.0
    %1912 = vmatpush1.msra.mxu0 0.0
    %1913 = vmatprep.subr.mxu0 0.0
    %1914 = vmatpush1.msra.mxu0 0.0
    %1915 = vmatprep.subr.mxu0 0.0
    %1916 = vmatpush1.msra.mxu0 0.0
    %1917 = vmatprep.subr.mxu0 0.0
    %1918 = vmatpush1.msra.mxu0 0.0
    %1919 = vmatprep.subr.mxu0 0.0
    %1920 = vmatpush1.msra.mxu0 0.0
    %1921 = vmatprep.subr.mxu0 0.0
    %1922 = vmatpush1.msra.mxu0 0.0
    %1923 = vmatprep.subr.mxu0 0.0
    %1924 = vmatpush1.msra.mxu0 0.0
    %1925 = vmatprep.subr.mxu0 0.0
    %1926 = vmatpush1.msra.mxu0 0.0
    %1927 = vmatprep.subr.mxu0 0.0
    %1928 = vmatpush1.msra.mxu0 0.0
    %1929 = vmatprep.subr.mxu0 0.0
    %1930 = vmatpush1.msra.mxu0 0.0
    %1931 = vmatprep.subr.mxu0 0.0
    %1932 = vmatpush1.msra.mxu0 0.0
    %1933 = vmatprep.subr.mxu0 0.0
    %1934 = vmatpush1.msra.mxu0 0.0
    %1935 = vmatprep.subr.mxu0 0.0
    %1936 = vmatpush1.msra.mxu0 0.0
    %1937 = vmatprep.subr.mxu0 0.0
    %1938 = vmatpush1.msra.mxu0 0.0
    %1939 = vmatprep.subr.mxu0 0.0
    %1940 = vmatpush1.msra.mxu0 0.0
    %1941 = vmatprep.subr.mxu0 0.0
    %1942 = vmatpush1.msra.mxu0 0.0
    %1943 = vmatprep.subr.mxu0 0.0
    %1944 = vmatpush1.msra.mxu0 0.0
    %1945 = vmatprep.subr.mxu0 0.0
    %1946 = vmatpush1.msra.mxu0 0.0
    %1947 = vmatprep.subr.mxu0 0.0
    %1948 = vmatpush1.msra.mxu0 0.0
    %1949 = vmatprep.subr.mxu0 0.0
    %1950 = vmatpush1.msra.mxu0 0.0
    %1951 = vmatprep.subr.mxu0 0.0
    %1952 = vmatpush1.msra.mxu0 0.0
    %1953 = vmatprep.subr.mxu0 0.0
    %1954 = vmatpush1.msra.mxu0 0.0
    %1955 = vmatprep.subr.mxu0 0.0
    %1956 = vmatpush1.msra.mxu0 0.0
    %1957 = vmatprep.subr.mxu0 0.0
    %1958 = vmatpush1.msra.mxu0 0.0
    %1959 = vmatprep.subr.mxu0 0.0
    %1960 = vmatpush1.msra.mxu0 0.0
    %1961 = vmatprep.subr.mxu0 0.0
    %1962 = vmatpush1.msra.mxu0 0.0
    %1963 = vmatprep.mubr.f32.mxu0 0.0
    %1964 = vmatmul.mubr.f32.gmra.mrb[0].mxu0 %v1894
    %v1965 = vpop.f32.mrb[0].mxu0
    %v1966 = vadd.f32 0.0, %v1965
    %v1967 = vpop.f32.mrb[0].mxu0
    %1968 = vmatprep.mubr.f32.mxu0 0.0
    %1969 = vmatmul.mubr.f32.gmra.mrb[0].mxu0 %v1897
    %v1970 = vpop.f32.mrb[0].mxu0
    %v1971 = vadd.f32 0.0, %v1970
    %v1972 = vpop.f32.mrb[0].mxu0
    %1973 = vdwg.mxu0
    %1974 = vrot.lane.b32.xlu0 %v1456, 96
    %v1975 = vpop.permute.xlu0 %1974
    %1976 = vrot.lane.b32.xlu0 %v1458, 96
    %v1977 = vpop.permute.xlu0 %1976
    %v1981 = vsel %vm541, %v1881, 0
    %v1984 = vsel %vm541, %v1882, 0
    %1986 = vmatprep.subr.mxu0 0.0
    %1987 = vmatpush1.msra.mxu0 %v1975
    %1988 = vmatprep.subr.mxu0 0.0
    %1989 = vmatpush1.msra.mxu0 %v1977
    %1990 = vmatprep.subr.mxu0 0.0
    %1991 = vmatpush1.msra.mxu0 0.0
    %1992 = vmatprep.subr.mxu0 0.0
    %1993 = vmatpush1.msra.mxu0 0.0
    %1994 = vmatprep.subr.mxu0 0.0
    %1995 = vmatpush1.msra.mxu0 0.0
    %1996 = vmatprep.subr.mxu0 0.0
    %1997 = vmatpush1.msra.mxu0 0.0
    %1998 = vmatprep.subr.mxu0 0.0
    %1999 = vmatpush1.msra.mxu0 0.0
    %2000 = vmatprep.subr.mxu0 0.0
    %2001 = vmatpush1.msra.mxu0 0.0
    %2002 = vmatprep.subr.mxu0 0.0
    %2003 = vmatpush1.msra.mxu0 0.0
    %2004 = vmatprep.subr.mxu0 0.0
    %2005 = vmatpush1.msra.mxu0 0.0
    %2006 = vmatprep.subr.mxu0 0.0
    %2007 = vmatpush1.msra.mxu0 0.0
    %2008 = vmatprep.subr.mxu0 0.0
    %2009 = vmatpush1.msra.mxu0 0.0
    %2010 = vmatprep.subr.mxu0 0.0
    %2011 = vmatpush1.msra.mxu0 0.0
    %2012 = vmatprep.subr.mxu0 0.0
    %2013 = vmatpush1.msra.mxu0 0.0
    %2014 = vmatprep.subr.mxu0 0.0
    %2015 = vmatpush1.msra.mxu0 0.0
    %2016 = vmatprep.subr.mxu0 0.0
    %2017 = vmatpush1.msra.mxu0 0.0
    %2018 = vmatprep.subr.mxu0 0.0
    %2019 = vmatpush1.msra.mxu0 0.0
    %2020 = vmatprep.subr.mxu0 0.0
    %2021 = vmatpush1.msra.mxu0 0.0
    %2022 = vmatprep.subr.mxu0 0.0
    %2023 = vmatpush1.msra.mxu0 0.0
    %2024 = vmatprep.subr.mxu0 0.0
    %2025 = vmatpush1.msra.mxu0 0.0
    %2026 = vmatprep.subr.mxu0 0.0
    %2027 = vmatpush1.msra.mxu0 0.0
    %2028 = vmatprep.subr.mxu0 0.0
    %2029 = vmatpush1.msra.mxu0 0.0
    %2030 = vmatprep.subr.mxu0 0.0
    %2031 = vmatpush1.msra.mxu0 0.0
    %2032 = vmatprep.subr.mxu0 0.0
    %2033 = vmatpush1.msra.mxu0 0.0
    %2034 = vmatprep.subr.mxu0 0.0
    %2035 = vmatpush1.msra.mxu0 0.0
    %2036 = vmatprep.subr.mxu0 0.0
    %2037 = vmatpush1.msra.mxu0 0.0
    %2038 = vmatprep.subr.mxu0 0.0
    %2039 = vmatpush1.msra.mxu0 0.0
    %2040 = vmatprep.subr.mxu0 0.0
    %2041 = vmatpush1.msra.mxu0 0.0
    %2042 = vmatprep.subr.mxu0 0.0
    %2043 = vmatpush1.msra.mxu0 0.0
    %2044 = vmatprep.subr.mxu0 0.0
    %2045 = vmatpush1.msra.mxu0 0.0
    %2046 = vmatprep.subr.mxu0 0.0
    %2047 = vmatpush1.msra.mxu0 0.0
    %2048 = vmatprep.subr.mxu0 0.0
    %2049 = vmatpush1.msra.mxu0 0.0
    %2050 = vmatprep.mubr.f32.mxu0 0.0
    %2051 = vmatmul.mubr.f32.gmra.mrb[0].mxu0 %v1981
    %v2052 = vpop.f32.mrb[0].mxu0
    %v2053 = vadd.f32 0.0, %v2052
    %v2054 = vpop.f32.mrb[0].mxu0
    %2055 = vmatprep.mubr.f32.mxu0 0.0
    %2056 = vmatmul.mubr.f32.gmra.mrb[0].mxu0 %v1984
    %v2057 = vpop.f32.mrb[0].mxu0
    %v2058 = vadd.f32 0.0, %v2057
    %v2059 = vpop.f32.mrb[0].mxu0
    %2060 = vdwg.mxu0
    %2061 = vrot.lane.b32.xlu0 %v1460, 96
    %v2062 = vpop.permute.xlu0 %2061
    %2063 = vrot.lane.b32.xlu0 %v1462, 96
    %v2064 = vpop.permute.xlu0 %2063
    %v2068 = vsel %vm541, %v1883, 0
    %v2071 = vsel %vm541, %v1884, 0
    %2073 = vmatprep.subr.mxu0 0.0
    %2074 = vmatpush1.msra.mxu0 %v2062
    %2075 = vmatprep.subr.mxu0 0.0
    %2076 = vmatpush1.msra.mxu0 %v2064
    %2077 = vmatprep.subr.mxu0 0.0
    %2078 = vmatpush1.msra.mxu0 0.0
    %2079 = vmatprep.subr.mxu0 0.0
    %2080 = vmatpush1.msra.mxu0 0.0
    %2081 = vmatprep.subr.mxu0 0.0
    %2082 = vmatpush1.msra.mxu0 0.0
    %2083 = vmatprep.subr.mxu0 0.0
    %2084 = vmatpush1.msra.mxu0 0.0
    %2085 = vmatprep.subr.mxu0 0.0
    %2086 = vmatpush1.msra.mxu0 0.0
    %2087 = vmatprep.subr.mxu0 0.0
    %2088 = vmatpush1.msra.mxu0 0.0
    %2089 = vmatprep.subr.mxu0 0.0
    %2090 = vmatpush1.msra.mxu0 0.0
    %2091 = vmatprep.subr.mxu0 0.0
    %2092 = vmatpush1.msra.mxu0 0.0
    %2093 = vmatprep.subr.mxu0 0.0
    %2094 = vmatpush1.msra.mxu0 0.0
    %2095 = vmatprep.subr.mxu0 0.0
    %2096 = vmatpush1.msra.mxu0 0.0
    %2097 = vmatprep.subr.mxu0 0.0
    %2098 = vmatpush1.msra.mxu0 0.0
    %2099 = vmatprep.subr.mxu0 0.0
    %2100 = vmatpush1.msra.mxu0 0.0
    %2101 = vmatprep.subr.mxu0 0.0
    %2102 = vmatpush1.msra.mxu0 0.0
    %2103 = vmatprep.subr.mxu0 0.0
    %2104 = vmatpush1.msra.mxu0 0.0
    %2105 = vmatprep.subr.mxu0 0.0
    %2106 = vmatpush1.msra.mxu0 0.0
    %2107 = vmatprep.subr.mxu0 0.0
    %2108 = vmatpush1.msra.mxu0 0.0
    %2109 = vmatprep.subr.mxu0 0.0
    %2110 = vmatpush1.msra.mxu0 0.0
    %2111 = vmatprep.subr.mxu0 0.0
    %2112 = vmatpush1.msra.mxu0 0.0
    %2113 = vmatprep.subr.mxu0 0.0
    %2114 = vmatpush1.msra.mxu0 0.0
    %2115 = vmatprep.subr.mxu0 0.0
    %2116 = vmatpush1.msra.mxu0 0.0
    %2117 = vmatprep.subr.mxu0 0.0
    %2118 = vmatpush1.msra.mxu0 0.0
    %2119 = vmatprep.subr.mxu0 0.0
    %2120 = vmatpush1.msra.mxu0 0.0
    %2121 = vmatprep.subr.mxu0 0.0
    %2122 = vmatpush1.msra.mxu0 0.0
    %2123 = vmatprep.subr.mxu0 0.0
    %2124 = vmatpush1.msra.mxu0 0.0
    %2125 = vmatprep.subr.mxu0 0.0
    %2126 = vmatpush1.msra.mxu0 0.0
    %2127 = vmatprep.subr.mxu0 0.0
    %2128 = vmatpush1.msra.mxu0 0.0
    %2129 = vmatprep.subr.mxu0 0.0
    %2130 = vmatpush1.msra.mxu0 0.0
    %2131 = vmatprep.subr.mxu0 0.0
    %2132 = vmatpush1.msra.mxu0 0.0
    %2133 = vmatprep.subr.mxu0 0.0
    %2134 = vmatpush1.msra.mxu0 0.0
    %2135 = vmatprep.subr.mxu0 0.0
    %2136 = vmatpush1.msra.mxu0 0.0
    %2137 = vmatprep.mubr.f32.mxu0 0.0
    %2138 = vmatmul.mubr.f32.gmra.mrb[0].mxu0 %v2068
    %v2139 = vpop.f32.mrb[0].mxu0
    %v2140 = vadd.f32 0.0, %v2139
    %v2141 = vpop.f32.mrb[0].mxu0
    %2142 = vmatprep.mubr.f32.mxu0 0.0
    %2143 = vmatmul.mubr.f32.gmra.mrb[0].mxu0 %v2071
    %v2144 = vpop.f32.mrb[0].mxu0
    %v2145 = vadd.f32 0.0, %v2144
    %v2146 = vpop.f32.mrb[0].mxu0
    %2147 = vdwg.mxu0
    %2148 = vrot.lane.b32.xlu0 %v1464, 96
    %v2149 = vpop.permute.xlu0 %2148
    %2150 = vrot.lane.b32.xlu0 %v1466, 96
    %v2151 = vpop.permute.xlu0 %2150
    %v2155 = vsel %vm541, %v1885, 0
    %v2158 = vsel %vm541, %v1886, 0
    %2160 = vmatprep.subr.mxu0 0.0
    %2161 = vmatpush1.msra.mxu0 %v2149
    %2162 = vmatprep.subr.mxu0 0.0
    %2163 = vmatpush1.msra.mxu0 %v2151
    %2164 = vmatprep.subr.mxu0 0.0
    %2165 = vmatpush1.msra.mxu0 0.0
    %2166 = vmatprep.subr.mxu0 0.0
    %2167 = vmatpush1.msra.mxu0 0.0
    %2168 = vmatprep.subr.mxu0 0.0
    %2169 = vmatpush1.msra.mxu0 0.0
    %2170 = vmatprep.subr.mxu0 0.0
    %2171 = vmatpush1.msra.mxu0 0.0
    %2172 = vmatprep.subr.mxu0 0.0
    %2173 = vmatpush1.msra.mxu0 0.0
    %2174 = vmatprep.subr.mxu0 0.0
    %2175 = vmatpush1.msra.mxu0 0.0
    %2176 = vmatprep.subr.mxu0 0.0
    %2177 = vmatpush1.msra.mxu0 0.0
    %2178 = vmatprep.subr.mxu0 0.0
    %2179 = vmatpush1.msra.mxu0 0.0
    %2180 = vmatprep.subr.mxu0 0.0
    %2181 = vmatpush1.msra.mxu0 0.0
    %2182 = vmatprep.subr.mxu0 0.0
    %2183 = vmatpush1.msra.mxu0 0.0
    %2184 = vmatprep.subr.mxu0 0.0
    %2185 = vmatpush1.msra.mxu0 0.0
    %2186 = vmatprep.subr.mxu0 0.0
    %2187 = vmatpush1.msra.mxu0 0.0
    %2188 = vmatprep.subr.mxu0 0.0
    %2189 = vmatpush1.msra.mxu0 0.0
    %2190 = vmatprep.subr.mxu0 0.0
    %2191 = vmatpush1.msra.mxu0 0.0
    %2192 = vmatprep.subr.mxu0 0.0
    %2193 = vmatpush1.msra.mxu0 0.0
    %2194 = vmatprep.subr.mxu0 0.0
    %2195 = vmatpush1.msra.mxu0 0.0
    %2196 = vmatprep.subr.mxu0 0.0
    %2197 = vmatpush1.msra.mxu0 0.0
    %2198 = vmatprep.subr.mxu0 0.0
    %2199 = vmatpush1.msra.mxu0 0.0
    %2200 = vmatprep.subr.mxu0 0.0
    %2201 = vmatpush1.msra.mxu0 0.0
    %2202 = vmatprep.subr.mxu0 0.0
    %2203 = vmatpush1.msra.mxu0 0.0
    %2204 = vmatprep.subr.mxu0 0.0
    %2205 = vmatpush1.msra.mxu0 0.0
    %2206 = vmatprep.subr.mxu0 0.0
    %2207 = vmatpush1.msra.mxu0 0.0
    %2208 = vmatprep.subr.mxu0 0.0
    %2209 = vmatpush1.msra.mxu0 0.0
    %2210 = vmatprep.subr.mxu0 0.0
    %2211 = vmatpush1.msra.mxu0 0.0
    %2212 = vmatprep.subr.mxu0 0.0
    %2213 = vmatpush1.msra.mxu0 0.0
    %2214 = vmatprep.subr.mxu0 0.0
    %2215 = vmatpush1.msra.mxu0 0.0
    %2216 = vmatprep.subr.mxu0 0.0
    %2217 = vmatpush1.msra.mxu0 0.0
    %2218 = vmatprep.subr.mxu0 0.0
    %2219 = vmatpush1.msra.mxu0 0.0
    %2220 = vmatprep.subr.mxu0 0.0
    %2221 = vmatpush1.msra.mxu0 0.0
    %2222 = vmatprep.subr.mxu0 0.0
    %2223 = vmatpush1.msra.mxu0 0.0
    %2224 = vmatprep.mubr.f32.mxu0 0.0
    %2225 = vmatmul.mubr.f32.gmra.mrb[0].mxu0 %v2155
    %v2226 = vpop.f32.mrb[0].mxu0
    %v2227 = vadd.f32 0.0, %v2226
    %v2228 = vpop.f32.mrb[0].mxu0
    %2229 = vmatprep.mubr.f32.mxu0 0.0
    %2230 = vmatmul.mubr.f32.gmra.mrb[0].mxu0 %v2158
    %v2231 = vpop.f32.mrb[0].mxu0
    %v2232 = vadd.f32 0.0, %v2231
    %v2233 = vpop.f32.mrb[0].mxu0
    %2234 = vdwg.mxu0
    %v2236 = vsel %vm208, %v1966, 0
    %v2239 = vsel %vm208, %v1971, 0
    %2241 = vmatprep.subr.mxu0 0.0
    %2242 = vmatpush1.msra.mxu0 %v48
    %2243 = vmatprep.subr.mxu0 0.0
    %2244 = vmatpush1.msra.mxu0 0.0
    %2245 = vmatprep.subr.mxu0 0.0
    %2246 = vmatpush1.msra.mxu0 0.0
    %2247 = vmatprep.subr.mxu0 0.0
    %2248 = vmatpush1.msra.mxu0 0.0
    %2249 = vmatprep.subr.mxu0 0.0
    %2250 = vmatpush1.msra.mxu0 0.0
    %2251 = vmatprep.subr.mxu0 0.0
    %2252 = vmatpush1.msra.mxu0 0.0
    %2253 = vmatprep.subr.mxu0 0.0
    %2254 = vmatpush1.msra.mxu0 0.0
    %2255 = vmatprep.subr.mxu0 0.0
    %2256 = vmatpush1.msra.mxu0 0.0
    %2257 = vmatprep.subr.mxu0 0.0
    %2258 = vmatpush1.msra.mxu0 0.0
    %2259 = vmatprep.subr.mxu0 0.0
    %2260 = vmatpush1.msra.mxu0 0.0
    %2261 = vmatprep.subr.mxu0 0.0
    %2262 = vmatpush1.msra.mxu0 0.0
    %2263 = vmatprep.subr.mxu0 0.0
    %2264 = vmatpush1.msra.mxu0 0.0
    %2265 = vmatprep.subr.mxu0 0.0
    %2266 = vmatpush1.msra.mxu0 0.0
    %2267 = vmatprep.subr.mxu0 0.0
    %2268 = vmatpush1.msra.mxu0 0.0
    %2269 = vmatprep.subr.mxu0 0.0
    %2270 = vmatpush1.msra.mxu0 0.0
    %2271 = vmatprep.subr.mxu0 0.0
    %2272 = vmatpush1.msra.mxu0 0.0
    %2273 = vmatprep.subr.mxu0 0.0
    %2274 = vmatpush1.msra.mxu0 0.0
    %2275 = vmatprep.subr.mxu0 0.0
    %2276 = vmatpush1.msra.mxu0 0.0
    %2277 = vmatprep.subr.mxu0 0.0
    %2278 = vmatpush1.msra.mxu0 0.0
    %2279 = vmatprep.subr.mxu0 0.0
    %2280 = vmatpush1.msra.mxu0 0.0
    %2281 = vmatprep.subr.mxu0 0.0
    %2282 = vmatpush1.msra.mxu0 0.0
    %2283 = vmatprep.subr.mxu0 0.0
    %2284 = vmatpush1.msra.mxu0 0.0
    %2285 = vmatprep.subr.mxu0 0.0
    %2286 = vmatpush1.msra.mxu0 0.0
    %2287 = vmatprep.subr.mxu0 0.0
    %2288 = vmatpush1.msra.mxu0 0.0
    %2289 = vmatprep.subr.mxu0 0.0
    %2290 = vmatpush1.msra.mxu0 0.0
    %2291 = vmatprep.subr.mxu0 0.0
    %2292 = vmatpush1.msra.mxu0 0.0
    %2293 = vmatprep.subr.mxu0 0.0
    %2294 = vmatpush1.msra.mxu0 0.0
    %2295 = vmatprep.subr.mxu0 0.0
    %2296 = vmatpush1.msra.mxu0 0.0
    %2297 = vmatprep.subr.mxu0 0.0
    %2298 = vmatpush1.msra.mxu0 0.0
    %2299 = vmatprep.subr.mxu0 0.0
    %2300 = vmatpush1.msra.mxu0 0.0
    %2301 = vmatprep.subr.mxu0 0.0
    %2302 = vmatpush1.msra.mxu0 0.0
    %2303 = vmatprep.subr.mxu0 0.0
    %2304 = vmatpush1.msra.mxu0 0.0
    %2305 = vmatprep.mubr.f32.mxu0 0.0
    %2306 = vmatmul.mubr.f32.gmra.mrb[0].mxu0 %v2236
    %v2307 = vpop.f32.mrb[0].mxu0
    %v2308 = vadd.f32 0.0, %v2307
    %v2309 = vpop.f32.mrb[0].mxu0
    %2310 = vmatprep.mubr.f32.mxu0 0.0
    %2311 = vmatmul.mubr.f32.gmra.mrb[0].mxu0 %v2239
    %v2312 = vpop.f32.mrb[0].mxu0
    %v2313 = vadd.f32 0.0, %v2312
    %v2314 = vpop.f32.mrb[0].mxu0
    %2315 = vdwg.mxu0
    %v2316 = vlaneseq
    %v2317 = vshrl.u32 %v2316, 7
    %v2318 = vsub.s32 1, %v2317
    %v2319 = vrot.slane %v53, %v2318
    %v2320 = vadd.f32 %v2319, %v2308
    %v2321 = vadd.f32 %v2319, %v2313
    %v2323 = vsel %vm208, %v2053, 0
    %v2326 = vsel %vm208, %v2058, 0
    %2328 = vmatprep.subr.mxu0 0.0
    %2329 = vmatpush1.msra.mxu0 %v49
    %2330 = vmatprep.subr.mxu0 0.0
    %2331 = vmatpush1.msra.mxu0 0.0
    %2332 = vmatprep.subr.mxu0 0.0
    %2333 = vmatpush1.msra.mxu0 0.0
    %2334 = vmatprep.subr.mxu0 0.0
    %2335 = vmatpush1.msra.mxu0 0.0
    %2336 = vmatprep.subr.mxu0 0.0
    %2337 = vmatpush1.msra.mxu0 0.0
    %2338 = vmatprep.subr.mxu0 0.0
    %2339 = vmatpush1.msra.mxu0 0.0
    %2340 = vmatprep.subr.mxu0 0.0
    %2341 = vmatpush1.msra.mxu0 0.0
    %2342 = vmatprep.subr.mxu0 0.0
    %2343 = vmatpush1.msra.mxu0 0.0
    %2344 = vmatprep.subr.mxu0 0.0
    %2345 = vmatpush1.msra.mxu0 0.0
    %2346 = vmatprep.subr.mxu0 0.0
    %2347 = vmatpush1.msra.mxu0 0.0
    %2348 = vmatprep.subr.mxu0 0.0
    %2349 = vmatpush1.msra.mxu0 0.0
    %2350 = vmatprep.subr.mxu0 0.0
    %2351 = vmatpush1.msra.mxu0 0.0
    %2352 = vmatprep.subr.mxu0 0.0
    %2353 = vmatpush1.msra.mxu0 0.0
    %2354 = vmatprep.subr.mxu0 0.0
    %2355 = vmatpush1.msra.mxu0 0.0
    %2356 = vmatprep.subr.mxu0 0.0
    %2357 = vmatpush1.msra.mxu0 0.0
    %2358 = vmatprep.subr.mxu0 0.0
    %2359 = vmatpush1.msra.mxu0 0.0
    %2360 = vmatprep.subr.mxu0 0.0
    %2361 = vmatpush1.msra.mxu0 0.0
    %2362 = vmatprep.subr.mxu0 0.0
    %2363 = vmatpush1.msra.mxu0 0.0
    %2364 = vmatprep.subr.mxu0 0.0
    %2365 = vmatpush1.msra.mxu0 0.0
    %2366 = vmatprep.subr.mxu0 0.0
    %2367 = vmatpush1.msra.mxu0 0.0
    %2368 = vmatprep.subr.mxu0 0.0
    %2369 = vmatpush1.msra.mxu0 0.0
    %2370 = vmatprep.subr.mxu0 0.0
    %2371 = vmatpush1.msra.mxu0 0.0
    %2372 = vmatprep.subr.mxu0 0.0
    %2373 = vmatpush1.msra.mxu0 0.0
    %2374 = vmatprep.subr.mxu0 0.0
    %2375 = vmatpush1.msra.mxu0 0.0
    %2376 = vmatprep.subr.mxu0 0.0
    %2377 = vmatpush1.msra.mxu0 0.0
    %2378 = vmatprep.subr.mxu0 0.0
    %2379 = vmatpush1.msra.mxu0 0.0
    %2380 = vmatprep.subr.mxu0 0.0
    %2381 = vmatpush1.msra.mxu0 0.0
    %2382 = vmatprep.subr.mxu0 0.0
    %2383 = vmatpush1.msra.mxu0 0.0
    %2384 = vmatprep.subr.mxu0 0.0
    %2385 = vmatpush1.msra.mxu0 0.0
    %2386 = vmatprep.subr.mxu0 0.0
    %2387 = vmatpush1.msra.mxu0 0.0
    %2388 = vmatprep.subr.mxu0 0.0
    %2389 = vmatpush1.msra.mxu0 0.0
    %2390 = vmatprep.subr.mxu0 0.0
    %2391 = vmatpush1.msra.mxu0 0.0
    %2392 = vmatprep.mubr.f32.mxu0 0.0
    %2393 = vmatmul.mubr.f32.gmra.mrb[0].mxu0 %v2323
    %v2394 = vpop.f32.mrb[0].mxu0
    %v2395 = vadd.f32 0.0, %v2394
    %v2396 = vpop.f32.mrb[0].mxu0
    %2397 = vmatprep.mubr.f32.mxu0 0.0
    %2398 = vmatmul.mubr.f32.gmra.mrb[0].mxu0 %v2326
    %v2399 = vpop.f32.mrb[0].mxu0
    %v2400 = vadd.f32 0.0, %v2399
    %v2401 = vpop.f32.mrb[0].mxu0
    %2402 = vdwg.mxu0
    %v2403 = vadd.f32 %v2320, %v2395
    %v2404 = vadd.f32 %v2321, %v2400
    %v2406 = vsel %vm208, %v2140, 0
    %v2409 = vsel %vm208, %v2145, 0
    %2411 = vmatprep.subr.mxu0 0.0
    %2412 = vmatpush1.msra.mxu0 %v50
    %2413 = vmatprep.subr.mxu0 0.0
    %2414 = vmatpush1.msra.mxu0 0.0
    %2415 = vmatprep.subr.mxu0 0.0
    %2416 = vmatpush1.msra.mxu0 0.0
    %2417 = vmatprep.subr.mxu0 0.0
    %2418 = vmatpush1.msra.mxu0 0.0
    %2419 = vmatprep.subr.mxu0 0.0
    %2420 = vmatpush1.msra.mxu0 0.0
    %2421 = vmatprep.subr.mxu0 0.0
    %2422 = vmatpush1.msra.mxu0 0.0
    %2423 = vmatprep.subr.mxu0 0.0
    %2424 = vmatpush1.msra.mxu0 0.0
    %2425 = vmatprep.subr.mxu0 0.0
    %2426 = vmatpush1.msra.mxu0 0.0
    %2427 = vmatprep.subr.mxu0 0.0
    %2428 = vmatpush1.msra.mxu0 0.0
    %2429 = vmatprep.subr.mxu0 0.0
    %2430 = vmatpush1.msra.mxu0 0.0
    %2431 = vmatprep.subr.mxu0 0.0
    %2432 = vmatpush1.msra.mxu0 0.0
    %2433 = vmatprep.subr.mxu0 0.0
    %2434 = vmatpush1.msra.mxu0 0.0
    %2435 = vmatprep.subr.mxu0 0.0
    %2436 = vmatpush1.msra.mxu0 0.0
    %2437 = vmatprep.subr.mxu0 0.0
    %2438 = vmatpush1.msra.mxu0 0.0
    %2439 = vmatprep.subr.mxu0 0.0
    %2440 = vmatpush1.msra.mxu0 0.0
    %2441 = vmatprep.subr.mxu0 0.0
    %2442 = vmatpush1.msra.mxu0 0.0
    %2443 = vmatprep.subr.mxu0 0.0
    %2444 = vmatpush1.msra.mxu0 0.0
    %2445 = vmatprep.subr.mxu0 0.0
    %2446 = vmatpush1.msra.mxu0 0.0
    %2447 = vmatprep.subr.mxu0 0.0
    %2448 = vmatpush1.msra.mxu0 0.0
    %2449 = vmatprep.subr.mxu0 0.0
    %2450 = vmatpush1.msra.mxu0 0.0
    %2451 = vmatprep.subr.mxu0 0.0
    %2452 = vmatpush1.msra.mxu0 0.0
    %2453 = vmatprep.subr.mxu0 0.0
    %2454 = vmatpush1.msra.mxu0 0.0
    %2455 = vmatprep.subr.mxu0 0.0
    %2456 = vmatpush1.msra.mxu0 0.0
    %2457 = vmatprep.subr.mxu0 0.0
    %2458 = vmatpush1.msra.mxu0 0.0
    %2459 = vmatprep.subr.mxu0 0.0
    %2460 = vmatpush1.msra.mxu0 0.0
    %2461 = vmatprep.subr.mxu0 0.0
    %2462 = vmatpush1.msra.mxu0 0.0
    %2463 = vmatprep.subr.mxu0 0.0
    %2464 = vmatpush1.msra.mxu0 0.0
    %2465 = vmatprep.subr.mxu0 0.0
    %2466 = vmatpush1.msra.mxu0 0.0
    %2467 = vmatprep.subr.mxu0 0.0
    %2468 = vmatpush1.msra.mxu0 0.0
    %2469 = vmatprep.subr.mxu0 0.0
    %2470 = vmatpush1.msra.mxu0 0.0
    %2471 = vmatprep.subr.mxu0 0.0
    %2472 = vmatpush1.msra.mxu0 0.0
    %2473 = vmatprep.subr.mxu0 0.0
    %2474 = vmatpush1.msra.mxu0 0.0
    %2475 = vmatprep.mubr.f32.mxu0 0.0
    %2476 = vmatmul.mubr.f32.gmra.mrb[0].mxu0 %v2406
    %v2477 = vpop.f32.mrb[0].mxu0
    %v2478 = vadd.f32 0.0, %v2477
    %v2479 = vpop.f32.mrb[0].mxu0
    %2480 = vmatprep.mubr.f32.mxu0 0.0
    %2481 = vmatmul.mubr.f32.gmra.mrb[0].mxu0 %v2409
    %v2482 = vpop.f32.mrb[0].mxu0
    %v2483 = vadd.f32 0.0, %v2482
    %v2484 = vpop.f32.mrb[0].mxu0
    %2485 = vdwg.mxu0
    %v2486 = vadd.f32 %v2403, %v2478
    %v2487 = vadd.f32 %v2404, %v2483
    %v2489 = vsel %vm208, %v2227, 0
    %v2492 = vsel %vm208, %v2232, 0
    %2494 = vmatprep.subr.mxu0 0.0
    %2495 = vmatpush1.msra.mxu0 %v51
    %2496 = vmatprep.subr.mxu0 0.0
    %2497 = vmatpush1.msra.mxu0 0.0
    %2498 = vmatprep.subr.mxu0 0.0
    %2499 = vmatpush1.msra.mxu0 0.0
    %2500 = vmatprep.subr.mxu0 0.0
    %2501 = vmatpush1.msra.mxu0 0.0
    %2502 = vmatprep.subr.mxu0 0.0
    %2503 = vmatpush1.msra.mxu0 0.0
    %2504 = vmatprep.subr.mxu0 0.0
    %2505 = vmatpush1.msra.mxu0 0.0
    %2506 = vmatprep.subr.mxu0 0.0
    %2507 = vmatpush1.msra.mxu0 0.0
    %2508 = vmatprep.subr.mxu0 0.0
    %2509 = vmatpush1.msra.mxu0 0.0
    %2510 = vmatprep.subr.mxu0 0.0
    %2511 = vmatpush1.msra.mxu0 0.0
    %2512 = vmatprep.subr.mxu0 0.0
    %2513 = vmatpush1.msra.mxu0 0.0
    %2514 = vmatprep.subr.mxu0 0.0
    %2515 = vmatpush1.msra.mxu0 0.0
    %2516 = vmatprep.subr.mxu0 0.0
    %2517 = vmatpush1.msra.mxu0 0.0
    %2518 = vmatprep.subr.mxu0 0.0
    %2519 = vmatpush1.msra.mxu0 0.0
    %2520 = vmatprep.subr.mxu0 0.0
    %2521 = vmatpush1.msra.mxu0 0.0
    %2522 = vmatprep.subr.mxu0 0.0
    %2523 = vmatpush1.msra.mxu0 0.0
    %2524 = vmatprep.subr.mxu0 0.0
    %2525 = vmatpush1.msra.mxu0 0.0
    %2526 = vmatprep.subr.mxu0 0.0
    %2527 = vmatpush1.msra.mxu0 0.0
    %2528 = vmatprep.subr.mxu0 0.0
    %2529 = vmatpush1.msra.mxu0 0.0
    %2530 = vmatprep.subr.mxu0 0.0
    %2531 = vmatpush1.msra.mxu0 0.0
    %2532 = vmatprep.subr.mxu0 0.0
    %2533 = vmatpush1.msra.mxu0 0.0
    %2534 = vmatprep.subr.mxu0 0.0
    %2535 = vmatpush1.msra.mxu0 0.0
    %2536 = vmatprep.subr.mxu0 0.0
    %2537 = vmatpush1.msra.mxu0 0.0
    %2538 = vmatprep.subr.mxu0 0.0
    %2539 = vmatpush1.msra.mxu0 0.0
    %2540 = vmatprep.subr.mxu0 0.0
    %2541 = vmatpush1.msra.mxu0 0.0
    %2542 = vmatprep.subr.mxu0 0.0
    %2543 = vmatpush1.msra.mxu0 0.0
    %2544 = vmatprep.subr.mxu0 0.0
    %2545 = vmatpush1.msra.mxu0 0.0
    %2546 = vmatprep.subr.mxu0 0.0
    %2547 = vmatpush1.msra.mxu0 0.0
    %2548 = vmatprep.subr.mxu0 0.0
    %2549 = vmatpush1.msra.mxu0 0.0
    %2550 = vmatprep.subr.mxu0 0.0
    %2551 = vmatpush1.msra.mxu0 0.0
    %2552 = vmatprep.subr.mxu0 0.0
    %2553 = vmatpush1.msra.mxu0 0.0
    %2554 = vmatprep.subr.mxu0 0.0
    %2555 = vmatpush1.msra.mxu0 0.0
    %2556 = vmatprep.subr.mxu0 0.0
    %2557 = vmatpush1.msra.mxu0 0.0
    %2558 = vmatprep.mubr.f32.mxu0 0.0
    %2559 = vmatmul.mubr.f32.gmra.mrb[0].mxu0 %v2489
    %v2560 = vpop.f32.mrb[0].mxu0
    %v2561 = vadd.f32 0.0, %v2560
    %v2562 = vpop.f32.mrb[0].mxu0
    %2563 = vmatprep.mubr.f32.mxu0 0.0
    %2564 = vmatmul.mubr.f32.gmra.mrb[0].mxu0 %v2492
    %v2565 = vpop.f32.mrb[0].mxu0
    %v2566 = vadd.f32 0.0, %v2565
    %v2567 = vpop.f32.mrb[0].mxu0
    %2568 = vdwg.mxu0
    %v2569 = vadd.f32 %v2486, %v2561
    %v2570 = vadd.f32 %v2487, %v2566
    %v2571 = vadd.f32 %v1314, %v2569
    %v2572 = vadd.f32 %v1315, %v2570
    %v2573 = vsel %vm54, %v2571, 0.0
    %2574 = vadd.xlane.f32.xlu0 %v2573
    %v2575 = vpop.xlane.xlu0 %2574
    %v2576 = vsel %vm54, %v2572, 0.0
    %2577 = vadd.xlane.f32.xlu0 %v2576
    %v2578 = vpop.xlane.xlu0 %2577
    %v2579 = vmul.f32 %v2575, %v61
    %v2580 = vmul.f32 %v2578, %v61
    %v2581 = vsub.f32 %v2571, %v2579
    %v2582 = vsub.f32 %v2572, %v2580
    %v2583 = vmul.f32 %v2581, %v2581
    %v2584 = vmul.f32 %v2582, %v2582
    %v2585 = vsel %vm54, %v2583, 0.0
    %2586 = vadd.xlane.f32.xlu0 %v2585
    %v2587 = vpop.xlane.xlu0 %2586
    %v2588 = vsel %vm54, %v2584, 0.0
    %2589 = vadd.xlane.f32.xlu0 %v2588
    %v2590 = vpop.xlane.xlu0 %2589
    %v2591 = vmul.f32 %v2587, %v74
    %v2592 = vmul.f32 %v2590, %v74
    %v2593 = vrsqrt.pop %v2591
    %v2594 = vmul.f32 %v2591, %v2593
    %vm2595 = vcmp.eq.f32.partialorder %v2591, inf
    %v2596 = vsel %vm2595, %v2591, %v2594
    %vm2597 = vcmp.eq.f32.partialorder %v2591, 0.0
    %v2598 = vand.u32 %v2591, 2147483648
    %v2599 = vsel %vm2597, %v2598, %v2596
    %v2600 = vrsqrt.pop %v2592
    %v2601 = vmul.f32 %v2592, %v2600
    %vm2602 = vcmp.eq.f32.partialorder %v2592, inf
    %v2603 = vsel %vm2602, %v2592, %v2601
    %vm2604 = vcmp.eq.f32.partialorder %v2592, 0.0
    %v2605 = vand.u32 %v2592, 2147483648
    %v2606 = vsel %vm2604, %v2605, %v2603
    %v2607 = vadd.f32 %v2599, 1e-06
    %v2608 = vadd.f32 %v2606, 1e-06
    %v2609 = vrcp.pop %v2607
    %v2610 = vrcp.pop %v2608
    %v2611 = vlaneseq
    %v2612 = vshrl.u32 %v2611, 7
    %v2613 = vsub.s32 4, %v2612
    %v2614 = vrot.slane %v52, %v2613
    %v2615 = vmul.f32 %v2614, %v2581
    %v2616 = vmul.f32 %v2614, %v2582
    %v2617 = vmul.f32 %v2615, %v2609
    %v2618 = vmul.f32 %v2616, %v2610
    %v2619 = vlaneseq
    %v2620 = vshrl.u32 %v2619, 7
    %v2621 = vsub.s32 5, %v2620
    %v2622 = vrot.slane %v52, %v2621
    %v2623 = vadd.f32 %v2617, %v2622
    %v2624 = vadd.f32 %v2618, %v2622
    %v2625 = vlaneseq
    %v2626 = vshrl.u32 %v2625, 7
    %v2627 = vsub.s32 2, %v2626
    %v2628 = vrot.slane %v53, %v2627
    %v2630 = vsel %vm54, %v2623, 0
    %v2633 = vsel %vm54, %v2624, 0
    %2635 = vmatprep.subr.mxu0 0.0
    %2636 = vmatpush1.msra.mxu0 %v32
    %2637 = vmatprep.subr.mxu0 0.0
    %2638 = vmatpush1.msra.mxu0 %v33
    %2639 = vmatprep.subr.mxu0 0.0
    %2640 = vmatpush1.msra.mxu0 %v34
    %2641 = vmatprep.subr.mxu0 0.0
    %2642 = vmatpush1.msra.mxu0 %v35
    %2643 = vmatprep.subr.mxu0 0.0
    %2644 = vmatpush1.msra.mxu0 0.0
    %2645 = vmatprep.subr.mxu0 0.0
    %2646 = vmatpush1.msra.mxu0 0.0
    %2647 = vmatprep.subr.mxu0 0.0
    %2648 = vmatpush1.msra.mxu0 0.0
    %2649 = vmatprep.subr.mxu0 0.0
    %2650 = vmatpush1.msra.mxu0 0.0
    %2651 = vmatprep.subr.mxu0 0.0
    %2652 = vmatpush1.msra.mxu0 0.0
    %2653 = vmatprep.subr.mxu0 0.0
    %2654 = vmatpush1.msra.mxu0 0.0
    %2655 = vmatprep.subr.mxu0 0.0
    %2656 = vmatpush1.msra.mxu0 0.0
    %2657 = vmatprep.subr.mxu0 0.0
    %2658 = vmatpush1.msra.mxu0 0.0
    %2659 = vmatprep.subr.mxu0 0.0
    %2660 = vmatpush1.msra.mxu0 0.0
    %2661 = vmatprep.subr.mxu0 0.0
    %2662 = vmatpush1.msra.mxu0 0.0
    %2663 = vmatprep.subr.mxu0 0.0
    %2664 = vmatpush1.msra.mxu0 0.0
    %2665 = vmatprep.subr.mxu0 0.0
    %2666 = vmatpush1.msra.mxu0 0.0
    %2667 = vmatprep.subr.mxu0 0.0
    %2668 = vmatpush1.msra.mxu0 0.0
    %2669 = vmatprep.subr.mxu0 0.0
    %2670 = vmatpush1.msra.mxu0 0.0
    %2671 = vmatprep.subr.mxu0 0.0
    %2672 = vmatpush1.msra.mxu0 0.0
    %2673 = vmatprep.subr.mxu0 0.0
    %2674 = vmatpush1.msra.mxu0 0.0
    %2675 = vmatprep.subr.mxu0 0.0
    %2676 = vmatpush1.msra.mxu0 0.0
    %2677 = vmatprep.subr.mxu0 0.0
    %2678 = vmatpush1.msra.mxu0 0.0
    %2679 = vmatprep.subr.mxu0 0.0
    %2680 = vmatpush1.msra.mxu0 0.0
    %2681 = vmatprep.subr.mxu0 0.0
    %2682 = vmatpush1.msra.mxu0 0.0
    %2683 = vmatprep.subr.mxu0 0.0
    %2684 = vmatpush1.msra.mxu0 0.0
    %2685 = vmatprep.subr.mxu0 0.0
    %2686 = vmatpush1.msra.mxu0 0.0
    %2687 = vmatprep.subr.mxu0 0.0
    %2688 = vmatpush1.msra.mxu0 0.0
    %2689 = vmatprep.subr.mxu0 0.0
    %2690 = vmatpush1.msra.mxu0 0.0
    %2691 = vmatprep.subr.mxu0 0.0
    %2692 = vmatpush1.msra.mxu0 0.0
    %2693 = vmatprep.subr.mxu0 0.0
    %2694 = vmatpush1.msra.mxu0 0.0
    %2695 = vmatprep.subr.mxu0 0.0
    %2696 = vmatpush1.msra.mxu0 0.0
    %2697 = vmatprep.subr.mxu0 0.0
    %2698 = vmatpush1.msra.mxu0 0.0
    %2699 = vmatprep.mubr.f32.mxu0 0.0
    %2700 = vmatmul.mubr.f32.gmra.mrb[0].mxu0 %v2630
    %v2701 = vpop.f32.mrb[0].mxu0
    %v2702 = vadd.f32 %v2628, %v2701
    %v2703 = vpop.f32.mrb[0].mxu0
    %2704 = vmatprep.mubr.f32.mxu0 0.0
    %2705 = vmatmul.mubr.f32.gmra.mrb[0].mxu0 %v2633
    %v2706 = vpop.f32.mrb[0].mxu0
    %v2707 = vadd.f32 %v2628, %v2706
    %v2708 = vpop.f32.mrb[0].mxu0
    %2709 = vdwg.mxu0
    %v2710 = vmax.f32 %v2702, 0.0
    %v2711 = vmax.f32 %v2707, 0.0
    %vm2712 = vcmask 523264
    %v2714 = vsel %vm2712, %v2710, 0
    %v2717 = vsel %vm2712, %v2711, 0
    %2719 = vmatprep.subr.mxu0 0.0
    %2720 = vmatpush1.msra.mxu0 %v36
    %2721 = vmatprep.subr.mxu0 0.0
    %2722 = vmatpush1.msra.mxu0 %v37
    %2723 = vmatprep.subr.mxu0 0.0
    %2724 = vmatpush1.msra.mxu0 %v38
    %2725 = vmatprep.subr.mxu0 0.0
    %2726 = vmatpush1.msra.mxu0 %v39
    %2727 = vmatprep.subr.mxu0 0.0
    %2728 = vmatpush1.msra.mxu0 %v40
    %2729 = vmatprep.subr.mxu0 0.0
    %2730 = vmatpush1.msra.mxu0 %v41
    %2731 = vmatprep.subr.mxu0 0.0
    %2732 = vmatpush1.msra.mxu0 %v42
    %2733 = vmatprep.subr.mxu0 0.0
    %2734 = vmatpush1.msra.mxu0 %v43
    %2735 = vmatprep.subr.mxu0 0.0
    %2736 = vmatpush1.msra.mxu0 0.0
    %2737 = vmatprep.subr.mxu0 0.0
    %2738 = vmatpush1.msra.mxu0 0.0
    %2739 = vmatprep.subr.mxu0 0.0
    %2740 = vmatpush1.msra.mxu0 0.0
    %2741 = vmatprep.subr.mxu0 0.0
    %2742 = vmatpush1.msra.mxu0 0.0
    %2743 = vmatprep.subr.mxu0 0.0
    %2744 = vmatpush1.msra.mxu0 0.0
    %2745 = vmatprep.subr.mxu0 0.0
    %2746 = vmatpush1.msra.mxu0 0.0
    %2747 = vmatprep.subr.mxu0 0.0
    %2748 = vmatpush1.msra.mxu0 0.0
    %2749 = vmatprep.subr.mxu0 0.0
    %2750 = vmatpush1.msra.mxu0 0.0
    %2751 = vmatprep.subr.mxu0 0.0
    %2752 = vmatpush1.msra.mxu0 0.0
    %2753 = vmatprep.subr.mxu0 0.0
    %2754 = vmatpush1.msra.mxu0 0.0
    %2755 = vmatprep.subr.mxu0 0.0
    %2756 = vmatpush1.msra.mxu0 0.0
    %2757 = vmatprep.subr.mxu0 0.0
    %2758 = vmatpush1.msra.mxu0 0.0
    %2759 = vmatprep.subr.mxu0 0.0
    %2760 = vmatpush1.msra.mxu0 0.0
    %2761 = vmatprep.subr.mxu0 0.0
    %2762 = vmatpush1.msra.mxu0 0.0
    %2763 = vmatprep.subr.mxu0 0.0
    %2764 = vmatpush1.msra.mxu0 0.0
    %2765 = vmatprep.subr.mxu0 0.0
    %2766 = vmatpush1.msra.mxu0 0.0
    %2767 = vmatprep.subr.mxu0 0.0
    %2768 = vmatpush1.msra.mxu0 0.0
    %2769 = vmatprep.subr.mxu0 0.0
    %2770 = vmatpush1.msra.mxu0 0.0
    %2771 = vmatprep.subr.mxu0 0.0
    %2772 = vmatpush1.msra.mxu0 0.0
    %2773 = vmatprep.subr.mxu0 0.0
    %2774 = vmatpush1.msra.mxu0 0.0
    %2775 = vmatprep.subr.mxu0 0.0
    %2776 = vmatpush1.msra.mxu0 0.0
    %2777 = vmatprep.subr.mxu0 0.0
    %2778 = vmatpush1.msra.mxu0 0.0
    %2779 = vmatprep.subr.mxu0 0.0
    %2780 = vmatpush1.msra.mxu0 0.0
    %2781 = vmatprep.subr.mxu0 0.0
    %2782 = vmatpush1.msra.mxu0 0.0
    %2783 = vmatprep.mubr.f32.mxu0 0.0
    %2784 = vmatmul.mubr.f32.gmra.mrb[0].mxu0 %v2714
    %v2785 = vpop.f32.mrb[0].mxu0
    %v2786 = vadd.f32 0.0, %v2785
    %v2787 = vpop.f32.mrb[0].mxu0
    %2788 = vmatprep.mubr.f32.mxu0 0.0
    %2789 = vmatmul.mubr.f32.gmra.mrb[0].mxu0 %v2717
    %v2790 = vpop.f32.mrb[0].mxu0
    %v2791 = vadd.f32 0.0, %v2790
    %v2792 = vpop.f32.mrb[0].mxu0
    %2793 = vdwg.mxu0
    %v2794 = vadd.f32 %v2571, %v2786
    %v2795 = vadd.f32 %v2572, %v2791
    %v2796 = vlaneseq
    %v2797 = vshrl.u32 %v2796, 7
    %v2798 = vsub.s32 3, %v2797
    %v2799 = vrot.slane %v53, %v2798
    %v2800 = vadd.f32 %v2794, %v2799
    %v2801 = vadd.f32 %v2795, %v2799
    %2802 = vst.msk [vmem:[#allocation2] sm:$0xff] %vm54, %v2800
    %2803 = vst.msk [vmem:[#allocation2 + $0x8] sm:$0xff] %vm54, %v2801
    // Predicated region
    $region18: #{tpu_custom_call.1} parent=1 // pred_check
      _
    $region19: #{tpu_custom_call.1} parent=1 // pred_check_branch
      %2805 = sbr.rel (0) target = $region21
    $region20: #{tpu_custom_call.1} parent=1 // pred_region
      %s2807 = ssub.s32 256, 256
      %2808 = vsyncadd [#allocation3], %s2807
      %s2809 = sshll.u32 [#allocation2], 4
      %s2810 = int_to_ptr.vmem [resolvable:$true] %s2809
      %2815 = dma.vmem_to_hbm [thread:$0]  %s2810, 256, %s4, [#allocation3], 128, 128, 8
    $region21: #{tpu_custom_call.1} parent=1 // pred_fallthru
      _
    // Predicated region
    $region22: #{tpu_custom_call.1} parent=1 // pred_check
      _
    $region23: #{tpu_custom_call.1} parent=1 // pred_check_branch
      %2817 = sbr.rel (0) target = $region25
    $region24: #{tpu_custom_call.1} parent=1 // pred_region
      %2818 = dma.done [#allocation3], 256
    $region25: #{tpu_custom_call.1} parent=1 // pred_fallthru
      _
    %2819 = vsyncpa [#allocation3], 1

</llo_original>
